<compile_context>
chip_gen: v5e
topology: v5e:2x2
jax: 0.10.0
libtpu: 0.0.40
codegen_flags: <defaults>
</compile_context>

<pallas_src>
import functools

import jax
import jax.numpy as jnp
from jax import lax
from jax.experimental import pallas as pl
from jax.experimental.pallas import tpu as pltpu

EPS = 1e-5  # torch.nn.InstanceNorm2d default eps

_TAPS = tuple((ki, kj) for ki in range(3) for kj in range(3))


def _resnet_block_kernel(x_ref, w1_ref, w2_ref, o_ref, xp_ref, yp_ref,
                         *, H, W, C, d):
    # x_ref / o_ref : (H, W, C) f32  (C already lane-padded by the wrapper)
    # w*_ref        : (9*C, C)       (per-tap row blocks: kh, kw, cin -> cout)
    # xp_ref        : (H+2d, W+2d, C) f32 scratch (reflection-padded input)
    # yp_ref        : (H+2,  W+2,  C) f32 scratch (reflection-padded intermediate)
    HW = H * W
    cdt = w1_ref.dtype

    # ---- ReflectionPad2d(d): center + halo strips, straight from the input ref ----
    xp_ref[d:d + H, d:d + W, :] = x_ref[...]
    for k in range(1, d + 1):
        xp_ref[d - k:d - k + 1, d:d + W, :] = x_ref[k:k + 1, :, :]
        xp_ref[d + H - 1 + k:d + H + k, d:d + W, :] = x_ref[H - 1 - k:H - k, :, :]
    for k in range(1, d + 1):
        # Column pads read the already row-padded scratch (corners handled);
        # keep these as ref ops to rely on in-order same-ref RAW semantics.
        xp_ref[:, d - k:d - k + 1, :] = xp_ref[:, d + k:d + k + 1, :]
        xp_ref[:, d + W - 1 + k:d + W + k, :] = xp_ref[:, d + W - 1 - k:d + W - k, :]

    def conv3x3(src_ref, w_ref, dil):
        # 9 tap GEMMs accumulated in f32; taps are ref-sliced (no im2col temp).
        acc = None
        for t, (ki, kj) in enumerate(_TAPS):
            tap = src_ref[ki * dil:ki * dil + H, kj * dil:kj * dil + W, :]
            part = jnp.dot(tap.reshape(HW, C).astype(cdt),
                           w_ref[t * C:(t + 1) * C, :],
                           preferred_element_type=jnp.float32)
            acc = part if acc is None else acc + part
        return acc

    def instance_norm(a):  # (HW, C): per-channel over H*W, biased variance
        mu = jnp.mean(a, axis=0, keepdims=True)
        ac = a - mu
        var = jnp.mean(ac * ac, axis=0, keepdims=True)
        return ac * lax.rsqrt(var + EPS)

    # ---- conv1 (dilated) -> InstanceNorm -> ReLU ----
    y = jnp.maximum(instance_norm(conv3x3(xp_ref, w1_ref, d)), 0.0)
    y = y.reshape(H, W, C)

    # ---- ReflectionPad2d(1) of the intermediate ----
    yp_ref[1:H + 1, 1:W + 1, :] = y
    yp_ref[0:1, 1:W + 1, :] = y[1:2]
    yp_ref[H + 1:H + 2, 1:W + 1, :] = y[H - 2:H - 1]
    yp_ref[:, 0:1, :] = yp_ref[:, 2:3, :]
    yp_ref[:, W + 1:W + 2, :] = yp_ref[:, W - 1:W, :]

    # ---- conv2 (dil=1) -> InstanceNorm ----
    y2 = instance_norm(conv3x3(yp_ref, w2_ref, 1))

    # ---- residual add: re-read the input block from VMEM (short live ranges) ----
    o_ref[...] = (x_ref[...] + y2.reshape(H, W, C)).astype(o_ref.dtype)


def resnet_block_forward(x_nchw, w1, b1, w2, b2, dilation=1):
    """x_nchw: (N, C, H, W); w*: (Cout, Cin, 3, 3) PyTorch OIHW; b*: (C,)."""
    N, C, H, W = x_nchw.shape
    d = dilation

    # Lane-dense channel count: pad C to 128 when C < 128 (zero channels are a
    # no-op through conv + non-affine InstanceNorm + residual); moot for C >= 128.
    Cp = 128 if C < 128 else C
    # bf16 matmul operands only when C is large (MXU throughput); small C stays
    # f32 for accuracy and to avoid bf16 elementwise traffic on v5e.
    cdt = jnp.bfloat16 if C >= 64 else jnp.float32

    x = jnp.transpose(x_nchw, (0, 2, 3, 1))                      # NHWC
    if Cp != C:
        x = jnp.pad(x, ((0, 0), (0, 0), (0, 0), (0, Cp - C)))

    def prep_w(w):
        wt = jnp.transpose(w, (2, 3, 1, 0))                      # (kh, kw, Cin, Cout)
        if Cp != C:
            wt = jnp.pad(wt, ((0, 0), (0, 0), (0, Cp - C), (0, Cp - C)))
        return wt.reshape(9 * Cp, Cp).astype(cdt)                # rows: kh, kw, cin

    w1m, w2m = prep_w(w1), prep_w(w2)
    # b1/b2 intentionally unused: bias immediately before a non-affine
    # InstanceNorm is cancelled exactly by the mean subtraction.
    del b1, b2

    def w_spec():
        if C >= 64:
            # Big weights: single-buffer them (constant index_map across the
            # grid) to save VMEM on v7x; negligible either way for tiny C.
            return pl.BlockSpec((9 * Cp, Cp), lambda n: (0, 0),
                                pipeline_mode=pl.Buffered(1))
        return pl.BlockSpec((9 * Cp, Cp), lambda n: (0, 0))

    # VMEM limit derived from the actual per-step footprint (+2x headroom),
    # never below the compiler's scoped default.
    f32b = 4
    wbytes = 9 * Cp * Cp * jnp.dtype(cdt).itemsize
    est = (2 * 2 * H * W * Cp * f32b                                   # in/out blocks (dbl buf)
           + (1 if C >= 64 else 2) * 2 * wbytes                        # two weight matrices
           + ((H + 2 * d) * (W + 2 * d) + (H + 2) * (W + 2)) * Cp * f32b  # pad scratch
           + 2 * H * W * Cp * f32b)                                    # acc + tap temporaries
    vmem_limit = int(min(max(2 * est + (1 << 20), 32 << 20), 100 << 20))

    kernel = functools.partial(_resnet_block_kernel, H=H, W=W, C=Cp, d=d)

    out = pl.pallas_call(
        kernel,
        out_shape=jax.ShapeDtypeStruct((N, H, W, Cp), x.dtype),
        grid_spec=pltpu.PrefetchScalarGridSpec(
            num_scalar_prefetch=0,
            grid=(N,),
            in_specs=[
                pl.BlockSpec((None, H, W, Cp), lambda n: (n, 0, 0, 0)),
                w_spec(),
                w_spec(),
            ],
            out_specs=pl.BlockSpec((None, H, W, Cp), lambda n: (n, 0, 0, 0)),
            scratch_shapes=[
                pltpu.VMEM((H + 2 * d, W + 2 * d, Cp), jnp.float32),
                pltpu.VMEM((H + 2, W + 2, Cp), jnp.float32),
            ],
        ),
        compiler_params=pltpu.CompilerParams(
            dimension_semantics=("parallel",),
            vmem_limit_bytes=vmem_limit,
        ),
    )(x, w1m, w2m)

    if Cp != C:
        out = out[..., :C]
    return jnp.transpose(out, (0, 3, 1, 2))                      # back to NCHW


def resnet_block_ref(x, w1, b1, w2, b2, dilation=1):
    """Pure-JAX f32 reference (NCHW), mirrors the PyTorch module (biases applied)."""
    d = dilation

    def inorm(y):
        mu = jnp.mean(y, axis=(2, 3), keepdims=True)
        var = jnp.mean((y - mu) ** 2, axis=(2, 3), keepdims=True)
        return (y - mu) / jnp.sqrt(var + EPS)

    xp = jnp.pad(x, ((0, 0), (0, 0), (d, d), (d, d)), mode="reflect")
    c1 = lax.conv_general_dilated(xp, w1, (1, 1), "VALID", rhs_dilation=(d, d),
                                  dimension_numbers=("NCHW", "OIHW", "NCHW"))
    c1 = c1 + b1[None, :, None, None]
    y = jax.nn.relu(inorm(c1))
    yp = jnp.pad(y, ((0, 0), (0, 0), (1, 1), (1, 1)), mode="reflect")
    c2 = lax.conv_general_dilated(yp, w2, (1, 1), "VALID",
                                  dimension_numbers=("NCHW", "OIHW", "NCHW"))
    c2 = c2 + b2[None, :, None, None]
    return x + inorm(c2)


if __name__ == "__main__":
    N, C, H, W = 2, 4, 16, 16
    dilation = 1

    key = jax.random.PRNGKey(0)
    kx, kw1, kb1, kw2, kb2 = jax.random.split(key, 5)

    x = jax.random.normal(kx, (N, C, H, W), dtype=jnp.float32)

    # Deterministic PyTorch-style init: U(-1/sqrt(fan_in), 1/sqrt(fan_in))
    fan_in = C * 3 * 3
    bound = 1.0 / (fan_in ** 0.5)
    w1 = jax.random.uniform(kw1, (C, C, 3, 3), jnp.float32, -bound, bound)
    b1 = jax.random.uniform(kb1, (C,), jnp.float32, -bound, bound)
    w2 = jax.random.uniform(kw2, (C, C, 3, 3), jnp.float32, -bound, bound)
    b2 = jax.random.uniform(kb2, (C,), jnp.float32, -bound, bound)

    out = resnet_block_forward(x, w1, b1, w2, b2, dilation=dilation)
    out = jax.block_until_ready(out)

    ref = jax.block_until_ready(resnet_block_ref(x, w1, b1, w2, b2, dilation=dilation))
    assert out.shape == (N, C, H, W)
    # Small-C path runs the GEMMs in f32, so the tolerance is much tighter than
    # the previous bf16 version (kept with margin for MXU default precision).
    assert jnp.allclose(out, ref, atol=5e-2, rtol=5e-2), (
        f"max abs err {jnp.max(jnp.abs(out - ref))}")

    print("KERNEL_OK")
</pallas_src>

<mosaic_0001>
module attributes {stable_mosaic.version = 11 : i64} {
  func.func @_resnet_block_kernel(%arg0: i32, %arg1: memref<1x16x16x128xf32, #tpu.memory_space<vmem>>, %arg2: memref<1152x128xf32, #tpu.memory_space<vmem>>, %arg3: memref<1152x128xf32, #tpu.memory_space<vmem>>, %arg4: memref<1x16x16x128xf32, #tpu.memory_space<vmem>>, %arg5: memref<18x18x128xf32, #tpu.memory_space<vmem>>, %arg6: memref<18x18x128xf32, #tpu.memory_space<vmem>>) attributes {dimension_semantics = [#tpu.dimension_semantics<parallel>], iteration_bounds = array<i64: 2>, scalar_prefetch = 0 : i64, scratch_operands = 2 : i64, tpu.core_type = #tpu.core_type<tc>, window_params = [{transform_indices = @transform_0, window_bounds = array<i64: 1, 16, 16, 128>}, {pipeline_mode = #tpu.pipeline_mode<synchronous>, transform_indices = @transform_1, window_bounds = array<i64: 1152, 128>}, {pipeline_mode = #tpu.pipeline_mode<synchronous>, transform_indices = @transform_2, window_bounds = array<i64: 1152, 128>}, {transform_indices = @transform_3, window_bounds = array<i64: 1, 16, 16, 128>}]} {
    %c0 = arith.constant 0 : index
    %c0_0 = arith.constant 0 : index
    %c0_1 = arith.constant 0 : index
    %c0_2 = arith.constant 0 : index
    %0 = vector.load %arg1[%c0, %c0_0, %c0_1, %c0_2] : memref<1x16x16x128xf32, #tpu.memory_space<vmem>>, vector<1x16x16x128xf32>
    %1 = vector.shape_cast %0 : vector<1x16x16x128xf32> to vector<16x16x128xf32>
    %c1 = arith.constant 1 : index
    %c1_3 = arith.constant 1 : index
    %c0_4 = arith.constant 0 : index
    %2 = vector.load %arg5[%c1, %c1_3, %c0_4] : memref<18x18x128xf32, #tpu.memory_space<vmem>>, vector<16x16x128xf32>
    tpu.vector_store %arg5[%c1, %c1_3, %c0_4], %1 {strides = array<i32>} : memref<18x18x128xf32, #tpu.memory_space<vmem>>, vector<16x16x128xf32>,
    %c0_5 = arith.constant 0 : index
    %c1_6 = arith.constant 1 : index
    %c0_7 = arith.constant 0 : index
    %c0_8 = arith.constant 0 : index
    %3 = vector.load %arg1[%c0_5, %c1_6, %c0_7, %c0_8] : memref<1x16x16x128xf32, #tpu.memory_space<vmem>>, vector<1x1x16x128xf32>
    %4 = vector.shape_cast %3 : vector<1x1x16x128xf32> to vector<1x16x128xf32>
    %c0_9 = arith.constant 0 : index
    %c1_10 = arith.constant 1 : index
    %c0_11 = arith.constant 0 : index
    %5 = vector.load %arg5[%c0_9, %c1_10, %c0_11] : memref<18x18x128xf32, #tpu.memory_space<vmem>>, vector<1x16x128xf32>
    tpu.vector_store %arg5[%c0_9, %c1_10, %c0_11], %4 {strides = array<i32>} : memref<18x18x128xf32, #tpu.memory_space<vmem>>, vector<1x16x128xf32>,
    %c0_12 = arith.constant 0 : index
    %c14 = arith.constant 14 : index
    %c0_13 = arith.constant 0 : index
    %c0_14 = arith.constant 0 : index
    %6 = vector.load %arg1[%c0_12, %c14, %c0_13, %c0_14] : memref<1x16x16x128xf32, #tpu.memory_space<vmem>>, vector<1x1x16x128xf32>
    %7 = vector.shape_cast %6 : vector<1x1x16x128xf32> to vector<1x16x128xf32>
    %c17 = arith.constant 17 : index
    %c1_15 = arith.constant 1 : index
    %c0_16 = arith.constant 0 : index
    %8 = vector.load %arg5[%c17, %c1_15, %c0_16] : memref<18x18x128xf32, #tpu.memory_space<vmem>>, vector<1x16x128xf32>
    tpu.vector_store %arg5[%c17, %c1_15, %c0_16], %7 {strides = array<i32>} : memref<18x18x128xf32, #tpu.memory_space<vmem>>, vector<1x16x128xf32>,
    %c0_17 = arith.constant 0 : index
    %c2 = arith.constant 2 : index
    %c0_18 = arith.constant 0 : index
    %9 = vector.load %arg5[%c0_17, %c2, %c0_18] : memref<18x18x128xf32, #tpu.memory_space<vmem>>, vector<18x1x128xf32>
    %c0_19 = arith.constant 0 : index
    %c0_20 = arith.constant 0 : index
    %c0_21 = arith.constant 0 : index
    %10 = vector.load %arg5[%c0_19, %c0_20, %c0_21] : memref<18x18x128xf32, #tpu.memory_space<vmem>>, vector<18x1x128xf32>
    tpu.vector_store %arg5[%c0_19, %c0_20, %c0_21], %9 {strides = array<i32>} : memref<18x18x128xf32, #tpu.memory_space<vmem>>, vector<18x1x128xf32>,
    %c0_22 = arith.constant 0 : index
    %c15 = arith.constant 15 : index
    %c0_23 = arith.constant 0 : index
    %11 = vector.load %arg5[%c0_22, %c15, %c0_23] : memref<18x18x128xf32, #tpu.memory_space<vmem>>, vector<18x1x128xf32>
    %c0_24 = arith.constant 0 : index
    %c17_25 = arith.constant 17 : index
    %c0_26 = arith.constant 0 : index
    %12 = vector.load %arg5[%c0_24, %c17_25, %c0_26] : memref<18x18x128xf32, #tpu.memory_space<vmem>>, vector<18x1x128xf32>
    tpu.vector_store %arg5[%c0_24, %c17_25, %c0_26], %11 {strides = array<i32>} : memref<18x18x128xf32, #tpu.memory_space<vmem>>, vector<18x1x128xf32>,
    %c0_27 = arith.constant 0 : index
    %c0_28 = arith.constant 0 : index
    %c0_29 = arith.constant 0 : index
    %13 = vector.load %arg5[%c0_27, %c0_28, %c0_29] : memref<18x18x128xf32, #tpu.memory_space<vmem>>, vector<16x16x128xf32>
    %14 = vector.shape_cast %13 : vector<16x16x128xf32> to vector<256x128xf32>
    %c0_30 = arith.constant 0 : index
    %c0_31 = arith.constant 0 : index
    %15 = vector.load %arg2[%c0_30, %c0_31] : memref<1152x128xf32, #tpu.memory_space<vmem>>, vector<128x128xf32>
    %cst = arith.constant dense<0.000000e+00> : vector<256x128xf32>
    %16 = tpu.matmul %14, %15, %cst {dimension_numbers = #tpu.dot_dimension_numbers<[1], [0], [0], [1], [0, 0, 1, 1], [], []>} : vector<256x128xf32>, vector<128x128xf32>, vector<256x128xf32> -> vector<256x128xf32>
    %c0_32 = arith.constant 0 : index
    %c1_33 = arith.constant 1 : index
    %c0_34 = arith.constant 0 : index
    %17 = vector.load %arg5[%c0_32, %c1_33, %c0_34] : memref<18x18x128xf32, #tpu.memory_space<vmem>>, vector<16x16x128xf32>
    %18 = vector.shape_cast %17 : vector<16x16x128xf32> to vector<256x128xf32>
    %c128 = arith.constant 128 : index
    %c0_35 = arith.constant 0 : index
    %19 = vector.load %arg2[%c128, %c0_35] : memref<1152x128xf32, #tpu.memory_space<vmem>>, vector<128x128xf32>
    %cst_36 = arith.constant dense<0.000000e+00> : vector<256x128xf32>
    %20 = tpu.matmul %18, %19, %cst_36 {dimension_numbers = #tpu.dot_dimension_numbers<[1], [0], [0], [1], [0, 0, 1, 1], [], []>} : vector<256x128xf32>, vector<128x128xf32>, vector<256x128xf32> -> vector<256x128xf32>
    %21 = arith.addf %16, %20 : vector<256x128xf32>
    %c0_37 = arith.constant 0 : index
    %c2_38 = arith.constant 2 : index
    %c0_39 = arith.constant 0 : index
    %22 = vector.load %arg5[%c0_37, %c2_38, %c0_39] : memref<18x18x128xf32, #tpu.memory_space<vmem>>, vector<16x16x128xf32>
    %23 = vector.shape_cast %22 : vector<16x16x128xf32> to vector<256x128xf32>
    %c256 = arith.constant 256 : index
    %c0_40 = arith.constant 0 : index
    %24 = vector.load %arg2[%c256, %c0_40] : memref<1152x128xf32, #tpu.memory_space<vmem>>, vector<128x128xf32>
    %cst_41 = arith.constant dense<0.000000e+00> : vector<256x128xf32>
    %25 = tpu.matmul %23, %24, %cst_41 {dimension_numbers = #tpu.dot_dimension_numbers<[1], [0], [0], [1], [0, 0, 1, 1], [], []>} : vector<256x128xf32>, vector<128x128xf32>, vector<256x128xf32> -> vector<256x128xf32>
    %26 = arith.addf %21, %25 : vector<256x128xf32>
    %c1_42 = arith.constant 1 : index
    %c0_43 = arith.constant 0 : index
    %c0_44 = arith.constant 0 : index
    %27 = vector.load %arg5[%c1_42, %c0_43, %c0_44] : memref<18x18x128xf32, #tpu.memory_space<vmem>>, vector<16x16x128xf32>
    %28 = vector.shape_cast %27 : vector<16x16x128xf32> to vector<256x128xf32>
    %c384 = arith.constant 384 : index
    %c0_45 = arith.constant 0 : index
    %29 = vector.load %arg2[%c384, %c0_45] : memref<1152x128xf32, #tpu.memory_space<vmem>>, vector<128x128xf32>
    %cst_46 = arith.constant dense<0.000000e+00> : vector<256x128xf32>
    %30 = tpu.matmul %28, %29, %cst_46 {dimension_numbers = #tpu.dot_dimension_numbers<[1], [0], [0], [1], [0, 0, 1, 1], [], []>} : vector<256x128xf32>, vector<128x128xf32>, vector<256x128xf32> -> vector<256x128xf32>
    %31 = arith.addf %26, %30 : vector<256x128xf32>
    %c1_47 = arith.constant 1 : index
    %c1_48 = arith.constant 1 : index
    %c0_49 = arith.constant 0 : index
    %32 = vector.load %arg5[%c1_47, %c1_48, %c0_49] : memref<18x18x128xf32, #tpu.memory_space<vmem>>, vector<16x16x128xf32>
    %33 = vector.shape_cast %32 : vector<16x16x128xf32> to vector<256x128xf32>
    %c512 = arith.constant 512 : index
    %c0_50 = arith.constant 0 : index
    %34 = vector.load %arg2[%c512, %c0_50] : memref<1152x128xf32, #tpu.memory_space<vmem>>, vector<128x128xf32>
    %cst_51 = arith.constant dense<0.000000e+00> : vector<256x128xf32>
    %35 = tpu.matmul %33, %34, %cst_51 {dimension_numbers = #tpu.dot_dimension_numbers<[1], [0], [0], [1], [0, 0, 1, 1], [], []>} : vector<256x128xf32>, vector<128x128xf32>, vector<256x128xf32> -> vector<256x128xf32>
    %36 = arith.addf %31, %35 : vector<256x128xf32>
    %c1_52 = arith.constant 1 : index
    %c2_53 = arith.constant 2 : index
    %c0_54 = arith.constant 0 : index
    %37 = vector.load %arg5[%c1_52, %c2_53, %c0_54] : memref<18x18x128xf32, #tpu.memory_space<vmem>>, vector<16x16x128xf32>
    %38 = vector.shape_cast %37 : vector<16x16x128xf32> to vector<256x128xf32>
    %c640 = arith.constant 640 : index
    %c0_55 = arith.constant 0 : index
    %39 = vector.load %arg2[%c640, %c0_55] : memref<1152x128xf32, #tpu.memory_space<vmem>>, vector<128x128xf32>
    %cst_56 = arith.constant dense<0.000000e+00> : vector<256x128xf32>
    %40 = tpu.matmul %38, %39, %cst_56 {dimension_numbers = #tpu.dot_dimension_numbers<[1], [0], [0], [1], [0, 0, 1, 1], [], []>} : vector<256x128xf32>, vector<128x128xf32>, vector<256x128xf32> -> vector<256x128xf32>
    %41 = arith.addf %36, %40 : vector<256x128xf32>
    %c2_57 = arith.constant 2 : index
    %c0_58 = arith.constant 0 : index
    %c0_59 = arith.constant 0 : index
    %42 = vector.load %arg5[%c2_57, %c0_58, %c0_59] : memref<18x18x128xf32, #tpu.memory_space<vmem>>, vector<16x16x128xf32>
    %43 = vector.shape_cast %42 : vector<16x16x128xf32> to vector<256x128xf32>
    %c768 = arith.constant 768 : index
    %c0_60 = arith.constant 0 : index
    %44 = vector.load %arg2[%c768, %c0_60] : memref<1152x128xf32, #tpu.memory_space<vmem>>, vector<128x128xf32>
    %cst_61 = arith.constant dense<0.000000e+00> : vector<256x128xf32>
    %45 = tpu.matmul %43, %44, %cst_61 {dimension_numbers = #tpu.dot_dimension_numbers<[1], [0], [0], [1], [0, 0, 1, 1], [], []>} : vector<256x128xf32>, vector<128x128xf32>, vector<256x128xf32> -> vector<256x128xf32>
    %46 = arith.addf %41, %45 : vector<256x128xf32>
    %c2_62 = arith.constant 2 : index
    %c1_63 = arith.constant 1 : index
    %c0_64 = arith.constant 0 : index
    %47 = vector.load %arg5[%c2_62, %c1_63, %c0_64] : memref<18x18x128xf32, #tpu.memory_space<vmem>>, vector<16x16x128xf32>
    %48 = vector.shape_cast %47 : vector<16x16x128xf32> to vector<256x128xf32>
    %c896 = arith.constant 896 : index
    %c0_65 = arith.constant 0 : index
    %49 = vector.load %arg2[%c896, %c0_65] : memref<1152x128xf32, #tpu.memory_space<vmem>>, vector<128x128xf32>
    %cst_66 = arith.constant dense<0.000000e+00> : vector<256x128xf32>
    %50 = tpu.matmul %48, %49, %cst_66 {dimension_numbers = #tpu.dot_dimension_numbers<[1], [0], [0], [1], [0, 0, 1, 1], [], []>} : vector<256x128xf32>, vector<128x128xf32>, vector<256x128xf32> -> vector<256x128xf32>
    %51 = arith.addf %46, %50 : vector<256x128xf32>
    %c2_67 = arith.constant 2 : index
    %c2_68 = arith.constant 2 : index
    %c0_69 = arith.constant 0 : index
    %52 = vector.load %arg5[%c2_67, %c2_68, %c0_69] : memref<18x18x128xf32, #tpu.memory_space<vmem>>, vector<16x16x128xf32>
    %53 = vector.shape_cast %52 : vector<16x16x128xf32> to vector<256x128xf32>
    %c1024 = arith.constant 1024 : index
    %c0_70 = arith.constant 0 : index
    %54 = vector.load %arg2[%c1024, %c0_70] : memref<1152x128xf32, #tpu.memory_space<vmem>>, vector<128x128xf32>
    %cst_71 = arith.constant dense<0.000000e+00> : vector<256x128xf32>
    %55 = tpu.matmul %53, %54, %cst_71 {dimension_numbers = #tpu.dot_dimension_numbers<[1], [0], [0], [1], [0, 0, 1, 1], [], []>} : vector<256x128xf32>, vector<128x128xf32>, vector<256x128xf32> -> vector<256x128xf32>
    %56 = arith.addf %51, %55 : vector<256x128xf32>
    %cst_72 = arith.constant dense<0.000000e+00> : vector<128xf32>
    %57 = vector.multi_reduction <add>, %56, %cst_72 [0] : vector<256x128xf32> to vector<128xf32>
    %58 = vector.shape_cast %57 : vector<128xf32> to vector<1x128xf32>
    %cst_73 = arith.constant 2.560000e+02 : f32
    %59 = vector.broadcast %cst_73 : f32 to vector<1x128xf32>
    %60 = arith.divf %58, %59 : vector<1x128xf32>
    %61 = vector.broadcast %60 : vector<1x128xf32> to vector<256x128xf32>
    %62 = arith.subf %56, %61 : vector<256x128xf32>
    %63 = arith.mulf %62, %62 : vector<256x128xf32>
    %cst_74 = arith.constant dense<0.000000e+00> : vector<128xf32>
    %64 = vector.multi_reduction <add>, %63, %cst_74 [0] : vector<256x128xf32> to vector<128xf32>
    %65 = vector.shape_cast %64 : vector<128xf32> to vector<1x128xf32>
    %cst_75 = arith.constant 2.560000e+02 : f32
    %66 = vector.broadcast %cst_75 : f32 to vector<1x128xf32>
    %67 = arith.divf %65, %66 : vector<1x128xf32>
    %cst_76 = arith.constant 9.99999974E-6 : f32
    %68 = vector.broadcast %cst_76 : f32 to vector<1x128xf32>
    %69 = arith.addf %67, %68 : vector<1x128xf32>
    %70 = math.rsqrt %69 : vector<1x128xf32>
    %71 = vector.broadcast %70 : vector<1x128xf32> to vector<256x128xf32>
    %72 = arith.mulf %62, %71 : vector<256x128xf32>
    %cst_77 = arith.constant 0.000000e+00 : f32
    %73 = vector.broadcast %cst_77 : f32 to vector<256x128xf32>
    %74 = arith.maximumf %72, %73 : vector<256x128xf32>
    %75 = vector.shape_cast %74 : vector<256x128xf32> to vector<16x16x128xf32>
    %c1_78 = arith.constant 1 : index
    %c1_79 = arith.constant 1 : index
    %c0_80 = arith.constant 0 : index
    %76 = vector.load %arg6[%c1_78, %c1_79, %c0_80] : memref<18x18x128xf32, #tpu.memory_space<vmem>>, vector<16x16x128xf32>
    tpu.vector_store %arg6[%c1_78, %c1_79, %c0_80], %75 {strides = array<i32>} : memref<18x18x128xf32, #tpu.memory_space<vmem>>, vector<16x16x128xf32>,
    %77 = vector.extract_strided_slice %75 {offsets = [1, 0, 0], sizes = [1, 16, 128], strides = [1, 1, 1]} : vector<16x16x128xf32> to vector<1x16x128xf32>
    %c0_81 = arith.constant 0 : index
    %c1_82 = arith.constant 1 : index
    %c0_83 = arith.constant 0 : index
    %78 = vector.load %arg6[%c0_81, %c1_82, %c0_83] : memref<18x18x128xf32, #tpu.memory_space<vmem>>, vector<1x16x128xf32>
    tpu.vector_store %arg6[%c0_81, %c1_82, %c0_83], %77 {strides = array<i32>} : memref<18x18x128xf32, #tpu.memory_space<vmem>>, vector<1x16x128xf32>,
    %79 = vector.extract_strided_slice %75 {offsets = [14, 0, 0], sizes = [1, 16, 128], strides = [1, 1, 1]} : vector<16x16x128xf32> to vector<1x16x128xf32>
    %c17_84 = arith.constant 17 : index
    %c1_85 = arith.constant 1 : index
    %c0_86 = arith.constant 0 : index
    %80 = vector.load %arg6[%c17_84, %c1_85, %c0_86] : memref<18x18x128xf32, #tpu.memory_space<vmem>>, vector<1x16x128xf32>
    tpu.vector_store %arg6[%c17_84, %c1_85, %c0_86], %79 {strides = array<i32>} : memref<18x18x128xf32, #tpu.memory_space<vmem>>, vector<1x16x128xf32>,
    %c0_87 = arith.constant 0 : index
    %c2_88 = arith.constant 2 : index
    %c0_89 = arith.constant 0 : index
    %81 = vector.load %arg6[%c0_87, %c2_88, %c0_89] : memref<18x18x128xf32, #tpu.memory_space<vmem>>, vector<18x1x128xf32>
    %c0_90 = arith.constant 0 : index
    %c0_91 = arith.constant 0 : index
    %c0_92 = arith.constant 0 : index
    %82 = vector.load %arg6[%c0_90, %c0_91, %c0_92] : memref<18x18x128xf32, #tpu.memory_space<vmem>>, vector<18x1x128xf32>
    tpu.vector_store %arg6[%c0_90, %c0_91, %c0_92], %81 {strides = array<i32>} : memref<18x18x128xf32, #tpu.memory_space<vmem>>, vector<18x1x128xf32>,
    %c0_93 = arith.constant 0 : index
    %c15_94 = arith.constant 15 : index
    %c0_95 = arith.constant 0 : index
    %83 = vector.load %arg6[%c0_93, %c15_94, %c0_95] : memref<18x18x128xf32, #tpu.memory_space<vmem>>, vector<18x1x128xf32>
    %c0_96 = arith.constant 0 : index
    %c17_97 = arith.constant 17 : index
    %c0_98 = arith.constant 0 : index
    %84 = vector.load %arg6[%c0_96, %c17_97, %c0_98] : memref<18x18x128xf32, #tpu.memory_space<vmem>>, vector<18x1x128xf32>
    tpu.vector_store %arg6[%c0_96, %c17_97, %c0_98], %83 {strides = array<i32>} : memref<18x18x128xf32, #tpu.memory_space<vmem>>, vector<18x1x128xf32>,
    %c0_99 = arith.constant 0 : index
    %c0_100 = arith.constant 0 : index
    %c0_101 = arith.constant 0 : index
    %85 = vector.load %arg6[%c0_99, %c0_100, %c0_101] : memref<18x18x128xf32, #tpu.memory_space<vmem>>, vector<16x16x128xf32>
    %86 = vector.shape_cast %85 : vector<16x16x128xf32> to vector<256x128xf32>
    %c0_102 = arith.constant 0 : index
    %c0_103 = arith.constant 0 : index
    %87 = vector.load %arg3[%c0_102, %c0_103] : memref<1152x128xf32, #tpu.memory_space<vmem>>, vector<128x128xf32>
    %cst_104 = arith.constant dense<0.000000e+00> : vector<256x128xf32>
    %88 = tpu.matmul %86, %87, %cst_104 {dimension_numbers = #tpu.dot_dimension_numbers<[1], [0], [0], [1], [0, 0, 1, 1], [], []>} : vector<256x128xf32>, vector<128x128xf32>, vector<256x128xf32> -> vector<256x128xf32>
    %c0_105 = arith.constant 0 : index
    %c1_106 = arith.constant 1 : index
    %c0_107 = arith.constant 0 : index
    %89 = vector.load %arg6[%c0_105, %c1_106, %c0_107] : memref<18x18x128xf32, #tpu.memory_space<vmem>>, vector<16x16x128xf32>
    %90 = vector.shape_cast %89 : vector<16x16x128xf32> to vector<256x128xf32>
    %c128_108 = arith.constant 128 : index
    %c0_109 = arith.constant 0 : index
    %91 = vector.load %arg3[%c128_108, %c0_109] : memref<1152x128xf32, #tpu.memory_space<vmem>>, vector<128x128xf32>
    %cst_110 = arith.constant dense<0.000000e+00> : vector<256x128xf32>
    %92 = tpu.matmul %90, %91, %cst_110 {dimension_numbers = #tpu.dot_dimension_numbers<[1], [0], [0], [1], [0, 0, 1, 1], [], []>} : vector<256x128xf32>, vector<128x128xf32>, vector<256x128xf32> -> vector<256x128xf32>
    %93 = arith.addf %88, %92 : vector<256x128xf32>
    %c0_111 = arith.constant 0 : index
    %c2_112 = arith.constant 2 : index
    %c0_113 = arith.constant 0 : index
    %94 = vector.load %arg6[%c0_111, %c2_112, %c0_113] : memref<18x18x128xf32, #tpu.memory_space<vmem>>, vector<16x16x128xf32>
    %95 = vector.shape_cast %94 : vector<16x16x128xf32> to vector<256x128xf32>
    %c256_114 = arith.constant 256 : index
    %c0_115 = arith.constant 0 : index
    %96 = vector.load %arg3[%c256_114, %c0_115] : memref<1152x128xf32, #tpu.memory_space<vmem>>, vector<128x128xf32>
    %cst_116 = arith.constant dense<0.000000e+00> : vector<256x128xf32>
    %97 = tpu.matmul %95, %96, %cst_116 {dimension_numbers = #tpu.dot_dimension_numbers<[1], [0], [0], [1], [0, 0, 1, 1], [], []>} : vector<256x128xf32>, vector<128x128xf32>, vector<256x128xf32> -> vector<256x128xf32>
    %98 = arith.addf %93, %97 : vector<256x128xf32>
    %c1_117 = arith.constant 1 : index
    %c0_118 = arith.constant 0 : index
    %c0_119 = arith.constant 0 : index
    %99 = vector.load %arg6[%c1_117, %c0_118, %c0_119] : memref<18x18x128xf32, #tpu.memory_space<vmem>>, vector<16x16x128xf32>
    %100 = vector.shape_cast %99 : vector<16x16x128xf32> to vector<256x128xf32>
    %c384_120 = arith.constant 384 : index
    %c0_121 = arith.constant 0 : index
    %101 = vector.load %arg3[%c384_120, %c0_121] : memref<1152x128xf32, #tpu.memory_space<vmem>>, vector<128x128xf32>
    %cst_122 = arith.constant dense<0.000000e+00> : vector<256x128xf32>
    %102 = tpu.matmul %100, %101, %cst_122 {dimension_numbers = #tpu.dot_dimension_numbers<[1], [0], [0], [1], [0, 0, 1, 1], [], []>} : vector<256x128xf32>, vector<128x128xf32>, vector<256x128xf32> -> vector<256x128xf32>
    %103 = arith.addf %98, %102 : vector<256x128xf32>
    %c1_123 = arith.constant 1 : index
    %c1_124 = arith.constant 1 : index
    %c0_125 = arith.constant 0 : index
    %104 = vector.load %arg6[%c1_123, %c1_124, %c0_125] : memref<18x18x128xf32, #tpu.memory_space<vmem>>, vector<16x16x128xf32>
    %105 = vector.shape_cast %104 : vector<16x16x128xf32> to vector<256x128xf32>
    %c512_126 = arith.constant 512 : index
    %c0_127 = arith.constant 0 : index
    %106 = vector.load %arg3[%c512_126, %c0_127] : memref<1152x128xf32, #tpu.memory_space<vmem>>, vector<128x128xf32>
    %cst_128 = arith.constant dense<0.000000e+00> : vector<256x128xf32>
    %107 = tpu.matmul %105, %106, %cst_128 {dimension_numbers = #tpu.dot_dimension_numbers<[1], [0], [0], [1], [0, 0, 1, 1], [], []>} : vector<256x128xf32>, vector<128x128xf32>, vector<256x128xf32> -> vector<256x128xf32>
    %108 = arith.addf %103, %107 : vector<256x128xf32>
    %c1_129 = arith.constant 1 : index
    %c2_130 = arith.constant 2 : index
    %c0_131 = arith.constant 0 : index
    %109 = vector.load %arg6[%c1_129, %c2_130, %c0_131] : memref<18x18x128xf32, #tpu.memory_space<vmem>>, vector<16x16x128xf32>
    %110 = vector.shape_cast %109 : vector<16x16x128xf32> to vector<256x128xf32>
    %c640_132 = arith.constant 640 : index
    %c0_133 = arith.constant 0 : index
    %111 = vector.load %arg3[%c640_132, %c0_133] : memref<1152x128xf32, #tpu.memory_space<vmem>>, vector<128x128xf32>
    %cst_134 = arith.constant dense<0.000000e+00> : vector<256x128xf32>
    %112 = tpu.matmul %110, %111, %cst_134 {dimension_numbers = #tpu.dot_dimension_numbers<[1], [0], [0], [1], [0, 0, 1, 1], [], []>} : vector<256x128xf32>, vector<128x128xf32>, vector<256x128xf32> -> vector<256x128xf32>
    %113 = arith.addf %108, %112 : vector<256x128xf32>
    %c2_135 = arith.constant 2 : index
    %c0_136 = arith.constant 0 : index
    %c0_137 = arith.constant 0 : index
    %114 = vector.load %arg6[%c2_135, %c0_136, %c0_137] : memref<18x18x128xf32, #tpu.memory_space<vmem>>, vector<16x16x128xf32>
    %115 = vector.shape_cast %114 : vector<16x16x128xf32> to vector<256x128xf32>
    %c768_138 = arith.constant 768 : index
    %c0_139 = arith.constant 0 : index
    %116 = vector.load %arg3[%c768_138, %c0_139] : memref<1152x128xf32, #tpu.memory_space<vmem>>, vector<128x128xf32>
    %cst_140 = arith.constant dense<0.000000e+00> : vector<256x128xf32>
    %117 = tpu.matmul %115, %116, %cst_140 {dimension_numbers = #tpu.dot_dimension_numbers<[1], [0], [0], [1], [0, 0, 1, 1], [], []>} : vector<256x128xf32>, vector<128x128xf32>, vector<256x128xf32> -> vector<256x128xf32>
    %118 = arith.addf %113, %117 : vector<256x128xf32>
    %c2_141 = arith.constant 2 : index
    %c1_142 = arith.constant 1 : index
    %c0_143 = arith.constant 0 : index
    %119 = vector.load %arg6[%c2_141, %c1_142, %c0_143] : memref<18x18x128xf32, #tpu.memory_space<vmem>>, vector<16x16x128xf32>
    %120 = vector.shape_cast %119 : vector<16x16x128xf32> to vector<256x128xf32>
    %c896_144 = arith.constant 896 : index
    %c0_145 = arith.constant 0 : index
    %121 = vector.load %arg3[%c896_144, %c0_145] : memref<1152x128xf32, #tpu.memory_space<vmem>>, vector<128x128xf32>
    %cst_146 = arith.constant dense<0.000000e+00> : vector<256x128xf32>
    %122 = tpu.matmul %120, %121, %cst_146 {dimension_numbers = #tpu.dot_dimension_numbers<[1], [0], [0], [1], [0, 0, 1, 1], [], []>} : vector<256x128xf32>, vector<128x128xf32>, vector<256x128xf32> -> vector<256x128xf32>
    %123 = arith.addf %118, %122 : vector<256x128xf32>
    %c2_147 = arith.constant 2 : index
    %c2_148 = arith.constant 2 : index
    %c0_149 = arith.constant 0 : index
    %124 = vector.load %arg6[%c2_147, %c2_148, %c0_149] : memref<18x18x128xf32, #tpu.memory_space<vmem>>, vector<16x16x128xf32>
    %125 = vector.shape_cast %124 : vector<16x16x128xf32> to vector<256x128xf32>
    %c1024_150 = arith.constant 1024 : index
    %c0_151 = arith.constant 0 : index
    %126 = vector.load %arg3[%c1024_150, %c0_151] : memref<1152x128xf32, #tpu.memory_space<vmem>>, vector<128x128xf32>
    %cst_152 = arith.constant dense<0.000000e+00> : vector<256x128xf32>
    %127 = tpu.matmul %125, %126, %cst_152 {dimension_numbers = #tpu.dot_dimension_numbers<[1], [0], [0], [1], [0, 0, 1, 1], [], []>} : vector<256x128xf32>, vector<128x128xf32>, vector<256x128xf32> -> vector<256x128xf32>
    %128 = arith.addf %123, %127 : vector<256x128xf32>
    %cst_153 = arith.constant dense<0.000000e+00> : vector<128xf32>
    %129 = vector.multi_reduction <add>, %128, %cst_153 [0] : vector<256x128xf32> to vector<128xf32>
    %130 = vector.shape_cast %129 : vector<128xf32> to vector<1x128xf32>
    %cst_154 = arith.constant 2.560000e+02 : f32
    %131 = vector.broadcast %cst_154 : f32 to vector<1x128xf32>
    %132 = arith.divf %130, %131 : vector<1x128xf32>
    %133 = vector.broadcast %132 : vector<1x128xf32> to vector<256x128xf32>
    %134 = arith.subf %128, %133 : vector<256x128xf32>
    %135 = arith.mulf %134, %134 : vector<256x128xf32>
    %cst_155 = arith.constant dense<0.000000e+00> : vector<128xf32>
    %136 = vector.multi_reduction <add>, %135, %cst_155 [0] : vector<256x128xf32> to vector<128xf32>
    %137 = vector.shape_cast %136 : vector<128xf32> to vector<1x128xf32>
    %cst_156 = arith.constant 2.560000e+02 : f32
    %138 = vector.broadcast %cst_156 : f32 to vector<1x128xf32>
    %139 = arith.divf %137, %138 : vector<1x128xf32>
    %cst_157 = arith.constant 9.99999974E-6 : f32
    %140 = vector.broadcast %cst_157 : f32 to vector<1x128xf32>
    %141 = arith.addf %139, %140 : vector<1x128xf32>
    %142 = math.rsqrt %141 : vector<1x128xf32>
    %143 = vector.broadcast %142 : vector<1x128xf32> to vector<256x128xf32>
    %144 = arith.mulf %134, %143 : vector<256x128xf32>
    %c0_158 = arith.constant 0 : index
    %c0_159 = arith.constant 0 : index
    %c0_160 = arith.constant 0 : index
    %c0_161 = arith.constant 0 : index
    %145 = vector.load %arg1[%c0_158, %c0_159, %c0_160, %c0_161] : memref<1x16x16x128xf32, #tpu.memory_space<vmem>>, vector<1x16x16x128xf32>
    %146 = vector.shape_cast %145 : vector<1x16x16x128xf32> to vector<16x16x128xf32>
    %147 = vector.shape_cast %144 : vector<256x128xf32> to vector<16x16x128xf32>
    %148 = arith.addf %146, %147 : vector<16x16x128xf32>
    %c0_162 = arith.constant 0 : index
    %c0_163 = arith.constant 0 : index
    %c0_164 = arith.constant 0 : index
    %c0_165 = arith.constant 0 : index
    %149 = vector.load %arg4[%c0_162, %c0_163, %c0_164, %c0_165] : memref<1x16x16x128xf32, #tpu.memory_space<vmem>>, vector<1x16x16x128xf32>
    %150 = vector.shape_cast %149 : vector<1x16x16x128xf32> to vector<16x16x128xf32>
    %151 = vector.shape_cast %148 : vector<16x16x128xf32> to vector<1x16x16x128xf32>
    tpu.vector_store %arg4[%c0_162, %c0_163, %c0_164, %c0_165], %151 {strides = array<i32>} : memref<1x16x16x128xf32, #tpu.memory_space<vmem>>, vector<1x16x16x128xf32>,
    return
  }
  func.func @transform_0(%arg0: i32) -> (i32, i32, i32, i32) {
    %c0_i32 = arith.constant 0 : i32
    %c0_i32_0 = arith.constant 0 : i32
    %c0_i32_1 = arith.constant 0 : i32
    %c0_i32_2 = arith.constant 0 : i32
    return %arg0, %c0_i32, %c0_i32_0, %c0_i32_1 : i32, i32, i32, i32
  }
  func.func @transform_1(%arg0: i32) -> (i32, i32) {
    %c0_i32 = arith.constant 0 : i32
    %c0_i32_0 = arith.constant 0 : i32
    %c0_i32_1 = arith.constant 0 : i32
    return %c0_i32, %c0_i32_0 : i32, i32
  }
  func.func @transform_2(%arg0: i32) -> (i32, i32) {
    %c0_i32 = arith.constant 0 : i32
    %c0_i32_0 = arith.constant 0 : i32
    %c0_i32_1 = arith.constant 0 : i32
    return %c0_i32, %c0_i32_0 : i32, i32
  }
  func.func @transform_3(%arg0: i32) -> (i32, i32, i32, i32) {
    %c0_i32 = arith.constant 0 : i32
    %c0_i32_0 = arith.constant 0 : i32
    %c0_i32_1 = arith.constant 0 : i32
    %c0_i32_2 = arith.constant 0 : i32
    return %arg0, %c0_i32, %c0_i32_0, %c0_i32_1 : i32, i32, i32, i32
  }
}

</mosaic_0001>

<llo_original>
// kernel: tpu_custom_call.1
$region0: #{tpu_custom_call.1}
  #allocation0 [shape = 'u32[]', space=smem, size = 0x4, offset = 0x4, fixed_abs, tag = 'smem constant byte address 0x4 - core index']
  #allocation1 [shape = 'u32[72,128]{1,0:T(1,128)}', space=vmem, size = 0x9000, scoped, tag = 'internal scratch']
  #allocation2 [shape = 'f32[18,18,128]{2,1,0:T(8,128)}', space=vmem, size = 0x36000, scoped, tag = 'scratch operand']
  #allocation3 [shape = 'f32[18,18,128]{2,1,0:T(8,128)}', space=vmem, size = 0x36000, scoped, tag = 'scratch operand']
  %s0 = inlined_call_operand.hbm [shape: f32[2,16,16,128], index: 0, kind: input, shape index: {}]
  %s1 = inlined_call_operand.hbm [shape: f32[1152,128], index: 1, kind: input, shape index: {}]
  %s2 = inlined_call_operand.hbm [shape: f32[1152,128], index: 2, kind: input, shape index: {}]
  %s3 = inlined_call_operand.hbm [shape: f32[2,16,16,128], index: 3, kind: output, shape index: {}]
  %s4 = sld [smem:[#allocation0]]
  $region57: #{tpu_custom_call.1} parent=0
    _
  %s6 = ssub.s32 1, %s4
  %s7 = scalar_select 0, %s6, %s4
  $region1: #{tpu_custom_call.1} parent=0
    #allocation4 [shape = 'u8[262144]{0}', space=vmem, size = 0x40000, scoped, tag = 'input window, operand 0']
    #allocation5 [shape = 's32[2]{0}', space=sflag, size = 0x8, scoped, tag = 'scoped memory for tpu_custom_call.1']
    #allocation6 [shape = 's32[2]{0}', space=sflag, size = 0x8, scoped, tag = 'scoped memory for tpu_custom_call.1']
    #allocation7 [shape = 'u8[589824]{0}', space=vmem, size = 0x90000, scoped, tag = 'input window, operand 1, single buffered']
    #allocation8 [shape = 's32[1]{0}', space=sflag, size = 0x4, scoped, tag = 'scoped memory for tpu_custom_call.1']
    #allocation9 [shape = 'u8[589824]{0}', space=vmem, size = 0x90000, scoped, tag = 'input window, operand 2, single buffered']
    #allocation10 [shape = 'u8[262144]{0}', space=vmem, size = 0x40000, scoped, tag = 'output window, operand 0']
    %8 = vsyncpa [#allocation5], 0
    %s9 = scalar_lea.sflag [#allocation5], 1
    %10 = vsyncpa %s9, 0
    %11 = vsyncpa [#allocation8], 0
    %12 = vsyncpa [#allocation6], 0
    %s13 = scalar_lea.sflag [#allocation6], 1
    %14 = vsyncpa %s13, 0
    loop: start=0, step=1, limit=4
    $region2: #{tpu_custom_call.1} parent=1 // loop_pre_header
      _
    $region3: #{tpu_custom_call.1} parent=1 // loop_header
      %s16 = sphi 0, %s20
      %p17 = scmp.ge.s32.totalorder %s16, 4
      %s26 = sphi 0, %s28
      %s29 = sphi 0, %s26
      %s30 = sphi 0, %s29
      %s46 = sphi 0, %s30
      %s50 = sphi 0, %s50
      %s52 = sphi 0, %s50
      %s53 = sphi 0, %s52
      %s67 = sphi 0, %s53
      %s71 = sphi 0, %s71
      %s73 = sphi 0, %s71
      %s74 = sphi 0, %s73
      %s88 = sphi 0, %s74
      %s94 = sphi 0, %s96
      %s97 = sphi 0, %s94
      %s98 = sphi 0, %s97
      %s114 = sphi 0, %s98
    $region4: #{tpu_custom_call.1} parent=1 // loop_header_branch
      %19 = sbr.rel (%p17) target = $region8
    $region5: #{tpu_custom_call.1} parent=1 // loop_body
      %s21 = ssub.s32 %s16, 1
      %s22 = ssub.s32 %s16, 2
      %s23 = sadd.s32 %s16, 1
      %s24 = ssub.s32 %s16, %s23
      %p25 = scmp.eq.s32.totalorder %s24, 0
      %s27 = sadd.s32 %s26, 1
      %s28 = scalar_select %p25, %s26, %s27
      %p31 = pneg %p25
      %p32 = scmp.eq.s32.totalorder %s16, 1
      %p33 = por %p31, %p32
      %p34 = scmp.ne.s32.totalorder %s26, %s29
      %p35 = scmp.eq.s32.totalorder %s16, 0
      %p36 = por %p34, %p35
      %p37 = scmp.ne.s32.totalorder %s26, %s29
      %p38 = scmp.eq.s32.totalorder %s21, 1
      %p39 = por %p37, %p38
      %p40 = scmp.ne.s32.totalorder %s29, %s30
      %p41 = scmp.eq.s32.totalorder %s21, 0
      %p42 = por %p40, %p41
      %p43 = scmp.ne.s32.totalorder %s29, %s30
      %p44 = scmp.eq.s32.totalorder %s22, 1
      %p45 = por %p43, %p44
      %p47 = scmp.ne.s32.totalorder %s30, %s46
      %p48 = scmp.eq.s32.totalorder %s22, 0
      %p49 = por %p47, %p48
      %s51 = sadd.s32 %s50, 1
      %p54 = scmp.eq.s32.totalorder %s16, 1
      %p55 = scmp.ne.s32.totalorder %s50, %s52
      %p56 = scmp.eq.s32.totalorder %s16, 0
      %p57 = por %p55, %p56
      %p58 = scmp.ne.s32.totalorder %s50, %s52
      %p59 = scmp.eq.s32.totalorder %s21, 1
      %p60 = por %p58, %p59
      %p61 = scmp.ne.s32.totalorder %s52, %s53
      %p62 = scmp.eq.s32.totalorder %s21, 0
      %p63 = por %p61, %p62
      %p64 = scmp.ne.s32.totalorder %s52, %s53
      %p65 = scmp.eq.s32.totalorder %s22, 1
      %p66 = por %p64, %p65
      %p68 = scmp.ne.s32.totalorder %s53, %s67
      %p69 = scmp.eq.s32.totalorder %s22, 0
      %p70 = por %p68, %p69
      %s72 = sadd.s32 %s71, 1
      %p75 = scmp.eq.s32.totalorder %s16, 1
      %p76 = scmp.ne.s32.totalorder %s71, %s73
      %p77 = scmp.eq.s32.totalorder %s16, 0
      %p78 = por %p76, %p77
      %p79 = scmp.ne.s32.totalorder %s71, %s73
      %p80 = scmp.eq.s32.totalorder %s21, 1
      %p81 = por %p79, %p80
      %p82 = scmp.ne.s32.totalorder %s73, %s74
      %p83 = scmp.eq.s32.totalorder %s21, 0
      %p84 = por %p82, %p83
      %p85 = scmp.ne.s32.totalorder %s73, %s74
      %p86 = scmp.eq.s32.totalorder %s22, 1
      %p87 = por %p85, %p86
      %p89 = scmp.ne.s32.totalorder %s74, %s88
      %p90 = scmp.eq.s32.totalorder %s22, 0
      %p91 = por %p89, %p90
      %s92 = ssub.s32 %s16, %s23
      %p93 = scmp.eq.s32.totalorder %s92, 0
      %s95 = sadd.s32 %s94, 1
      %s96 = scalar_select %p93, %s94, %s95
      %p99 = pneg %p93
      %p100 = scmp.eq.s32.totalorder %s16, 1
      %p101 = por %p99, %p100
      %p102 = scmp.ne.s32.totalorder %s94, %s97
      %p103 = scmp.eq.s32.totalorder %s16, 0
      %p104 = por %p102, %p103
      %p105 = scmp.ne.s32.totalorder %s94, %s97
      %p106 = scmp.eq.s32.totalorder %s21, 1
      %p107 = por %p105, %p106
      %p108 = scmp.ne.s32.totalorder %s97, %s98
      %p109 = scmp.eq.s32.totalorder %s21, 0
      %p110 = por %p108, %p109
      %p111 = scmp.ne.s32.totalorder %s97, %s98
      %p112 = scmp.eq.s32.totalorder %s22, 1
      %p113 = por %p111, %p112
      %p115 = scmp.ne.s32.totalorder %s98, %s114
      %p116 = scmp.eq.s32.totalorder %s22, 0
      %p117 = por %p115, %p116
      %p118 = scmp.le.s32.totalorder 1, %s16
      %p119 = scmp.lt.s32.totalorder %s16, 3
      %p120 = pnand %p118, %p119
      %p121 = pneg %p120
      // Predicated region
      $region9: #{tpu_custom_call.1} parent=5 // pred_check
        _
      $region10: #{tpu_custom_call.1} parent=5 // pred_check_branch
        %123 = sbr.rel (%p120) target = $region12
      $region11: #{tpu_custom_call.1} parent=5 // pred_region
        %s124 = ssub.s32 %s16, 1
        // Predicated region
        $region13: #{tpu_custom_call.1} parent=11 // pred_check
          %p125 = pneg %p63
        $region14: #{tpu_custom_call.1} parent=11 // pred_check_branch
          %127 = sbr.rel (%p125) target = $region16
        $region15: #{tpu_custom_call.1} parent=11 // pred_region
          %129 = vsyncadd [#allocation8], 0
          %s130 = sshll.u32 %s1, 4
          %s131 = int_to_ptr.hbm [resolvable:$true] %s130
          %s132 = sshll.u32 [#allocation7], 4
          %s133 = int_to_ptr.vmem [resolvable:$true] %s132
          %138 = dma.hbm_to_vmem [thread:$0]  %s131, 18432, %s133, [#allocation8], 128, 128, 8
        $region16: #{tpu_custom_call.1} parent=11 // pred_fallthru
          _
        // Predicated region
        $region17: #{tpu_custom_call.1} parent=11 // pred_check
          %p139 = pneg %p84
        $region18: #{tpu_custom_call.1} parent=11 // pred_check_branch
          %141 = sbr.rel (%p139) target = $region20
        $region19: #{tpu_custom_call.1} parent=11 // pred_region
          %143 = vsyncadd [#allocation8], 0
          %s144 = sshll.u32 %s2, 4
          %s145 = int_to_ptr.hbm [resolvable:$true] %s144
          %s146 = sshll.u32 [#allocation9], 4
          %s147 = int_to_ptr.vmem [resolvable:$true] %s146
          %152 = dma.hbm_to_vmem [thread:$0]  %s145, 18432, %s147, [#allocation8], 128, 128, 8
        $region20: #{tpu_custom_call.1} parent=11 // pred_fallthru
          _
      $region12: #{tpu_custom_call.1} parent=5 // pred_fallthru
        _
      %p153 = scmp.lt.s32.totalorder %s16, 2
      // Predicated region
      $region21: #{tpu_custom_call.1} parent=5 // pred_check
        %p154 = pneg %p153
      $region22: #{tpu_custom_call.1} parent=5 // pred_check_branch
        %156 = sbr.rel (%p154) target = $region24
      $region23: #{tpu_custom_call.1} parent=5 // pred_region
        // Predicated region
        $region25: #{tpu_custom_call.1} parent=23 // pred_check
          %p157 = pneg %p36
        $region26: #{tpu_custom_call.1} parent=23 // pred_check_branch
          %159 = sbr.rel (%p157) target = $region28
        $region27: #{tpu_custom_call.1} parent=23 // pred_region
          %s160 = sand.u32 %s26, 1
          %s161 = scalar_lea.sflag [#allocation5], %s160
          %s162 = sand.u32 %s26, 1
          %s163 = smul.addr %s162, 256
          %s164 = scalar_lea.vmem [#allocation4], %s163
          %166 = vsyncadd %s161, 0
          %s167 = smul.addr %s16, 32
          %s168 = smul.addr %s167, 8
          %s169 = scalar_lea.hbm %s0, %s168
          %s170 = sshll.u32 %s169, 4
          %s171 = int_to_ptr.hbm [resolvable:$true] %s170
          %s172 = sshll.u32 %s164, 4
          %s173 = int_to_ptr.vmem [resolvable:$true] %s172
          %178 = dma.hbm_to_vmem [thread:$0]  %s171, 4096, %s173, %s161, 128, 128, 8
        $region28: #{tpu_custom_call.1} parent=23 // pred_fallthru
          _
      $region24: #{tpu_custom_call.1} parent=5 // pred_fallthru
        _
      %p179 = scmp.le.s32.totalorder 1, %s16
      %p180 = scmp.lt.s32.totalorder %s16, 3
      %p181 = pnand %p179, %p180
      %p182 = pneg %p181
      // Predicated region
      $region29: #{tpu_custom_call.1} parent=5 // pred_check
        _
      $region30: #{tpu_custom_call.1} parent=5 // pred_check_branch
        %184 = sbr.rel (%p181) target = $region32
      $region31: #{tpu_custom_call.1} parent=5 // pred_region
        %s185 = ssub.s32 %s16, 1
        %s186 = sand.u32 %s29, 1
        %s187 = scalar_lea.sflag [#allocation5], %s186
        %s188 = sand.u32 %s29, 1
        %s189 = smul.addr %s188, 256
        %s190 = scalar_lea.vmem [#allocation4], %s189
        // Predicated region
        $region33: #{tpu_custom_call.1} parent=31 // pred_check
          %p191 = pneg %p42
        $region34: #{tpu_custom_call.1} parent=31 // pred_check_branch
          %193 = sbr.rel (%p191) target = $region36
        $region35: #{tpu_custom_call.1} parent=31 // pred_region
          %195 = dma.done %s187, 4096
        $region36: #{tpu_custom_call.1} parent=31 // pred_fallthru
          _
        // Predicated region
        $region37: #{tpu_custom_call.1} parent=31 // pred_check
          %p196 = pneg %p63
        $region38: #{tpu_custom_call.1} parent=31 // pred_check_branch
          %198 = sbr.rel (%p196) target = $region40
        $region39: #{tpu_custom_call.1} parent=31 // pred_region
          %200 = dma.done [#allocation8], 18432
        $region40: #{tpu_custom_call.1} parent=31 // pred_fallthru
          _
        // Predicated region
        $region41: #{tpu_custom_call.1} parent=31 // pred_check
          %p201 = pneg %p84
        $region42: #{tpu_custom_call.1} parent=31 // pred_check_branch
          %203 = sbr.rel (%p201) target = $region44
        $region43: #{tpu_custom_call.1} parent=31 // pred_region
          %205 = dma.done [#allocation8], 18432
        $region44: #{tpu_custom_call.1} parent=31 // pred_fallthru
          _
        %s206 = sand.u32 %s29, 1
        %s207 = scalar_lea.sflag [#allocation5], %s206
        %s208 = sand.u32 %s29, 1
        %s209 = smul.addr %s208, 256
        %s210 = scalar_lea.vmem [#allocation4], %s209
        %p211 = pneg %p42
        %p212 = pneg %p39
        %p213 = pneg %p63
        %p214 = pneg %p60
        %p215 = pneg %p84
        %p216 = pneg %p81
        %p217 = pneg %p110
        %p218 = pneg %p107
        %s219 = sand.u32 %s97, 1
        %s220 = scalar_lea.sflag [#allocation6], %s219
        %s221 = sand.u32 %s97, 1
        %s222 = smul.addr %s221, 256
        %s223 = scalar_lea.vmem [#allocation10], %s222
        %v224 = vld [vmem:[%s190] sm:$0xff]
        %v225 = vld [vmem:[%s190 + $0x8] sm:$0xff]
        %v226 = vld [vmem:[%s190 + $0x10] sm:$0xff]
        %v227 = vld [vmem:[%s190 + $0x18] sm:$0xff]
        %v228 = vld [vmem:[%s190 + $0x20] sm:$0xff]
        %v229 = vld [vmem:[%s190 + $0x28] sm:$0xff]
        %v230 = vld [vmem:[%s190 + $0x30] sm:$0xff]
        %v231 = vld [vmem:[%s190 + $0x38] sm:$0xff]
        %v232 = vld [vmem:[%s190 + $0x40] sm:$0xff]
        %v233 = vld [vmem:[%s190 + $0x48] sm:$0xff]
        %v234 = vld [vmem:[%s190 + $0x50] sm:$0xff]
        %v235 = vld [vmem:[%s190 + $0x58] sm:$0xff]
        %v236 = vld [vmem:[%s190 + $0x60] sm:$0xff]
        %v237 = vld [vmem:[%s190 + $0x68] sm:$0xff]
        %v238 = vld [vmem:[%s190 + $0x70] sm:$0xff]
        %v239 = vld [vmem:[%s190 + $0x78] sm:$0xff]
        %v240 = vld [vmem:[%s190 + $0x80] sm:$0xff]
        %v241 = vld [vmem:[%s190 + $0x88] sm:$0xff]
        %v242 = vld [vmem:[%s190 + $0x90] sm:$0xff]
        %v243 = vld [vmem:[%s190 + $0x98] sm:$0xff]
        %v244 = vld [vmem:[%s190 + $0xa0] sm:$0xff]
        %v245 = vld [vmem:[%s190 + $0xa8] sm:$0xff]
        %v246 = vld [vmem:[%s190 + $0xb0] sm:$0xff]
        %v247 = vld [vmem:[%s190 + $0xb8] sm:$0xff]
        %v248 = vld [vmem:[%s190 + $0xc0] sm:$0xff]
        %v249 = vld [vmem:[%s190 + $0xc8] sm:$0xff]
        %v250 = vld [vmem:[%s190 + $0xd0] sm:$0xff]
        %v251 = vld [vmem:[%s190 + $0xd8] sm:$0xff]
        %v252 = vld [vmem:[%s190 + $0xe0] sm:$0xff]
        %v253 = vld [vmem:[%s190 + $0xe8] sm:$0xff]
        %v254 = vld [vmem:[%s190 + $0xf0] sm:$0xff]
        %v255 = vld [vmem:[%s190 + $0xf8] sm:$0xff]
        %s256 = scalar_lea.vmem [#allocation2], 24
        %257 = vst [vmem:[%s256 + $0x1] sm:$0xff] %v224
        %258 = vst [vmem:[%s256 + $0x9] sm:$0xff] %v225
        %259 = vst [vmem:[%s256 + $0x19] sm:$0xff] %v226
        %260 = vst [vmem:[%s256 + $0x21] sm:$0xff] %v227
        %261 = vst [vmem:[%s256 + $0x31] sm:$0xff] %v228
        %262 = vst [vmem:[%s256 + $0x39] sm:$0xff] %v229
        %263 = vst [vmem:[%s256 + $0x49] sm:$0xff] %v230
        %264 = vst [vmem:[%s256 + $0x51] sm:$0xff] %v231
        %265 = vst [vmem:[%s256 + $0x61] sm:$0xff] %v232
        %266 = vst [vmem:[%s256 + $0x69] sm:$0xff] %v233
        %267 = vst [vmem:[%s256 + $0x79] sm:$0xff] %v234
        %268 = vst [vmem:[%s256 + $0x81] sm:$0xff] %v235
        %269 = vst [vmem:[%s256 + $0x91] sm:$0xff] %v236
        %270 = vst [vmem:[%s256 + $0x99] sm:$0xff] %v237
        %271 = vst [vmem:[%s256 + $0xa9] sm:$0xff] %v238
        %272 = vst [vmem:[%s256 + $0xb1] sm:$0xff] %v239
        %273 = vst [vmem:[%s256 + $0xc1] sm:$0xff] %v240
        %274 = vst [vmem:[%s256 + $0xc9] sm:$0xff] %v241
        %275 = vst [vmem:[%s256 + $0xd9] sm:$0xff] %v242
        %276 = vst [vmem:[%s256 + $0xe1] sm:$0xff] %v243
        %277 = vst [vmem:[%s256 + $0xf1] sm:$0xff] %v244
        %278 = vst [vmem:[%s256 + $0xf9] sm:$0xff] %v245
        %279 = vst [vmem:[%s256 + $0x109] sm:$0xff] %v246
        %280 = vst [vmem:[%s256 + $0x111] sm:$0xff] %v247
        %281 = vst [vmem:[%s256 + $0x121] sm:$0xff] %v248
        %282 = vst [vmem:[%s256 + $0x129] sm:$0xff] %v249
        %283 = vst [vmem:[%s256 + $0x139] sm:$0xff] %v250
        %284 = vst [vmem:[%s256 + $0x141] sm:$0xff] %v251
        %285 = vst [vmem:[%s256 + $0x151] sm:$0xff] %v252
        %286 = vst [vmem:[%s256 + $0x159] sm:$0xff] %v253
        %287 = vst [vmem:[%s256 + $0x169] sm:$0xff] %v254
        %288 = vst [vmem:[%s256 + $0x171] sm:$0xff] %v255
        %s289 = scalar_lea.vmem %s190, 16 [#allocation4]
        %v290 = vld [vmem:[%s289] sm:$0xff]
        %v291 = vld [vmem:[%s289 + $0x8] sm:$0xff]
        %292 = vst [vmem:[#allocation2 + $0x1] sm:$0xff] %v290
        %293 = vst [vmem:[#allocation2 + $0x9] sm:$0xff] %v291
        %s294 = scalar_lea.vmem %s190, 224 [#allocation4]
        %v295 = vld [vmem:[%s294] sm:$0xff]
        %v296 = vld [vmem:[%s294 + $0x8] sm:$0xff]
        %s297 = scalar_lea.vmem [#allocation2], 408
        %298 = vst [vmem:[%s297 + $0x1] sm:$0xff] %v295
        %299 = vst [vmem:[%s297 + $0x9] sm:$0xff] %v296
        %v300 = vld [vmem:[#allocation2 + $0x2] sm:$0x1]
        %v301 = vld [vmem:[#allocation2 + $0x1a] sm:$0x1]
        %v302 = vld [vmem:[#allocation2 + $0x32] sm:$0x1]
        %v303 = vld [vmem:[#allocation2 + $0x4a] sm:$0x1]
        %v304 = vld [vmem:[#allocation2 + $0x62] sm:$0x1]
        %v305 = vld [vmem:[#allocation2 + $0x7a] sm:$0x1]
        %v306 = vld [vmem:[#allocation2 + $0x92] sm:$0x1]
        %v307 = vld [vmem:[#allocation2 + $0xaa] sm:$0x1]
        %v308 = vld [vmem:[#allocation2 + $0xc2] sm:$0x1]
        %v309 = vld [vmem:[#allocation2 + $0xda] sm:$0x1]
        %v310 = vld [vmem:[#allocation2 + $0xf2] sm:$0x1]
        %v311 = vld [vmem:[#allocation2 + $0x10a] sm:$0x1]
        %v312 = vld [vmem:[#allocation2 + $0x122] sm:$0x1]
        %v313 = vld [vmem:[#allocation2 + $0x13a] sm:$0x1]
        %v314 = vld [vmem:[#allocation2 + $0x152] sm:$0x1]
        %v315 = vld [vmem:[#allocation2 + $0x16a] sm:$0x1]
        %v316 = vld [vmem:[#allocation2 + $0x182] sm:$0x1]
        %v317 = vld [vmem:[#allocation2 + $0x19a] sm:$0x1]
        %318 = vst [vmem:[#allocation2] sm:$0x1] %v300
        %319 = vst [vmem:[#allocation2 + $0x18] sm:$0x1] %v301
        %320 = vst [vmem:[#allocation2 + $0x30] sm:$0x1] %v302
        %321 = vst [vmem:[#allocation2 + $0x48] sm:$0x1] %v303
        %322 = vst [vmem:[#allocation2 + $0x60] sm:$0x1] %v304
        %323 = vst [vmem:[#allocation2 + $0x78] sm:$0x1] %v305
        %324 = vst [vmem:[#allocation2 + $0x90] sm:$0x1] %v306
        %325 = vst [vmem:[#allocation2 + $0xa8] sm:$0x1] %v307
        %326 = vst [vmem:[#allocation2 + $0xc0] sm:$0x1] %v308
        %327 = vst [vmem:[#allocation2 + $0xd8] sm:$0x1] %v309
        %328 = vst [vmem:[#allocation2 + $0xf0] sm:$0x1] %v310
        %329 = vst [vmem:[#allocation2 + $0x108] sm:$0x1] %v311
        %330 = vst [vmem:[#allocation2 + $0x120] sm:$0x1] %v312
        %331 = vst [vmem:[#allocation2 + $0x138] sm:$0x1] %v313
        %332 = vst [vmem:[#allocation2 + $0x150] sm:$0x1] %v314
        %333 = vst [vmem:[#allocation2 + $0x168] sm:$0x1] %v315
        %334 = vst [vmem:[#allocation2 + $0x180] sm:$0x1] %v316
        %335 = vst [vmem:[#allocation2 + $0x198] sm:$0x1] %v317
        %v336 = vld [vmem:[#allocation2 + $0xf] sm:$0x1]
        %v337 = vld [vmem:[#allocation2 + $0x27] sm:$0x1]
        %v338 = vld [vmem:[#allocation2 + $0x3f] sm:$0x1]
        %v339 = vld [vmem:[#allocation2 + $0x57] sm:$0x1]
        %v340 = vld [vmem:[#allocation2 + $0x6f] sm:$0x1]
        %v341 = vld [vmem:[#allocation2 + $0x87] sm:$0x1]
        %v342 = vld [vmem:[#allocation2 + $0x9f] sm:$0x1]
        %v343 = vld [vmem:[#allocation2 + $0xb7] sm:$0x1]
        %v344 = vld [vmem:[#allocation2 + $0xcf] sm:$0x1]
        %v345 = vld [vmem:[#allocation2 + $0xe7] sm:$0x1]
        %v346 = vld [vmem:[#allocation2 + $0xff] sm:$0x1]
        %v347 = vld [vmem:[#allocation2 + $0x117] sm:$0x1]
        %v348 = vld [vmem:[#allocation2 + $0x12f] sm:$0x1]
        %v349 = vld [vmem:[#allocation2 + $0x147] sm:$0x1]
        %v350 = vld [vmem:[#allocation2 + $0x15f] sm:$0x1]
        %v351 = vld [vmem:[#allocation2 + $0x177] sm:$0x1]
        %v352 = vld [vmem:[#allocation2 + $0x18f] sm:$0x1]
        %v353 = vld [vmem:[#allocation2 + $0x1a7] sm:$0x1]
        %354 = vst [vmem:[#allocation2 + $0x11] sm:$0x1] %v336
        %355 = vst [vmem:[#allocation2 + $0x29] sm:$0x1] %v337
        %356 = vst [vmem:[#allocation2 + $0x41] sm:$0x1] %v338
        %357 = vst [vmem:[#allocation2 + $0x59] sm:$0x1] %v339
        %358 = vst [vmem:[#allocation2 + $0x71] sm:$0x1] %v340
        %359 = vst [vmem:[#allocation2 + $0x89] sm:$0x1] %v341
        %360 = vst [vmem:[#allocation2 + $0xa1] sm:$0x1] %v342
        %361 = vst [vmem:[#allocation2 + $0xb9] sm:$0x1] %v343
        %362 = vst [vmem:[#allocation2 + $0xd1] sm:$0x1] %v344
        %363 = vst [vmem:[#allocation2 + $0xe9] sm:$0x1] %v345
        %364 = vst [vmem:[#allocation2 + $0x101] sm:$0x1] %v346
        %365 = vst [vmem:[#allocation2 + $0x119] sm:$0x1] %v347
        %366 = vst [vmem:[#allocation2 + $0x131] sm:$0x1] %v348
        %367 = vst [vmem:[#allocation2 + $0x149] sm:$0x1] %v349
        %368 = vst [vmem:[#allocation2 + $0x161] sm:$0x1] %v350
        %369 = vst [vmem:[#allocation2 + $0x179] sm:$0x1] %v351
        %370 = vst [vmem:[#allocation2 + $0x191] sm:$0x1] %v352
        %371 = vst [vmem:[#allocation2 + $0x1a9] sm:$0x1] %v353
        %v372 = vld [vmem:[#allocation2] sm:$0xff]
        %v373 = vld [vmem:[#allocation2 + $0x8] sm:$0xff]
        %v374 = vld [vmem:[#allocation2 + $0x18] sm:$0xff]
        %v375 = vld [vmem:[#allocation2 + $0x20] sm:$0xff]
        %v376 = vld [vmem:[#allocation2 + $0x30] sm:$0xff]
        %v377 = vld [vmem:[#allocation2 + $0x38] sm:$0xff]
        %v378 = vld [vmem:[#allocation2 + $0x48] sm:$0xff]
        %v379 = vld [vmem:[#allocation2 + $0x50] sm:$0xff]
        %v380 = vld [vmem:[#allocation2 + $0x60] sm:$0xff]
        %v381 = vld [vmem:[#allocation2 + $0x68] sm:$0xff]
        %v382 = vld [vmem:[#allocation2 + $0x78] sm:$0xff]
        %v383 = vld [vmem:[#allocation2 + $0x80] sm:$0xff]
        %v384 = vld [vmem:[#allocation2 + $0x90] sm:$0xff]
        %v385 = vld [vmem:[#allocation2 + $0x98] sm:$0xff]
        %v386 = vld [vmem:[#allocation2 + $0xa8] sm:$0xff]
        %v387 = vld [vmem:[#allocation2 + $0xb0] sm:$0xff]
        %v388 = vld [vmem:[#allocation2 + $0xc0] sm:$0xff]
        %v389 = vld [vmem:[#allocation2 + $0xc8] sm:$0xff]
        %v390 = vld [vmem:[#allocation2 + $0xd8] sm:$0xff]
        %v391 = vld [vmem:[#allocation2 + $0xe0] sm:$0xff]
        %v392 = vld [vmem:[#allocation2 + $0xf0] sm:$0xff]
        %v393 = vld [vmem:[#allocation2 + $0xf8] sm:$0xff]
        %v394 = vld [vmem:[#allocation2 + $0x108] sm:$0xff]
        %v395 = vld [vmem:[#allocation2 + $0x110] sm:$0xff]
        %v396 = vld [vmem:[#allocation2 + $0x120] sm:$0xff]
        %v397 = vld [vmem:[#allocation2 + $0x128] sm:$0xff]
        %v398 = vld [vmem:[#allocation2 + $0x138] sm:$0xff]
        %v399 = vld [vmem:[#allocation2 + $0x140] sm:$0xff]
        %v400 = vld [vmem:[#allocation2 + $0x150] sm:$0xff]
        %v401 = vld [vmem:[#allocation2 + $0x158] sm:$0xff]
        %v402 = vld [vmem:[#allocation2 + $0x168] sm:$0xff]
        %v403 = vld [vmem:[#allocation2 + $0x170] sm:$0xff]
        %v404 = vld [vmem:[#allocation7] sm:$0xff]
        %v405 = vld [vmem:[#allocation7 + $0x8] sm:$0xff]
        %v406 = vld [vmem:[#allocation7 + $0x10] sm:$0xff]
        %v407 = vld [vmem:[#allocation7 + $0x18] sm:$0xff]
        %v408 = vld [vmem:[#allocation7 + $0x20] sm:$0xff]
        %v409 = vld [vmem:[#allocation7 + $0x28] sm:$0xff]
        %v410 = vld [vmem:[#allocation7 + $0x30] sm:$0xff]
        %v411 = vld [vmem:[#allocation7 + $0x38] sm:$0xff]
        %v412 = vld [vmem:[#allocation7 + $0x40] sm:$0xff]
        %v413 = vld [vmem:[#allocation7 + $0x48] sm:$0xff]
        %v414 = vld [vmem:[#allocation7 + $0x50] sm:$0xff]
        %v415 = vld [vmem:[#allocation7 + $0x58] sm:$0xff]
        %v416 = vld [vmem:[#allocation7 + $0x60] sm:$0xff]
        %v417 = vld [vmem:[#allocation7 + $0x68] sm:$0xff]
        %v418 = vld [vmem:[#allocation7 + $0x70] sm:$0xff]
        %v419 = vld [vmem:[#allocation7 + $0x78] sm:$0xff]
        %v420 = vld [vmem:[#allocation2 + $0x1] sm:$0xff]
        %v421 = vld [vmem:[#allocation2 + $0x9] sm:$0xff]
        %v422 = vld [vmem:[#allocation2 + $0x19] sm:$0xff]
        %v423 = vld [vmem:[#allocation2 + $0x21] sm:$0xff]
        %v424 = vld [vmem:[#allocation2 + $0x31] sm:$0xff]
        %v425 = vld [vmem:[#allocation2 + $0x39] sm:$0xff]
        %v426 = vld [vmem:[#allocation2 + $0x49] sm:$0xff]
        %v427 = vld [vmem:[#allocation2 + $0x51] sm:$0xff]
        %v428 = vld [vmem:[#allocation2 + $0x61] sm:$0xff]
        %v429 = vld [vmem:[#allocation2 + $0x69] sm:$0xff]
        %v430 = vld [vmem:[#allocation2 + $0x79] sm:$0xff]
        %v431 = vld [vmem:[#allocation2 + $0x81] sm:$0xff]
        %v432 = vld [vmem:[#allocation2 + $0x91] sm:$0xff]
        %v433 = vld [vmem:[#allocation2 + $0x99] sm:$0xff]
        %v434 = vld [vmem:[#allocation2 + $0xa9] sm:$0xff]
        %v435 = vld [vmem:[#allocation2 + $0xb1] sm:$0xff]
        %v436 = vld [vmem:[#allocation2 + $0xc1] sm:$0xff]
        %v437 = vld [vmem:[#allocation2 + $0xc9] sm:$0xff]
        %v438 = vld [vmem:[#allocation2 + $0xd9] sm:$0xff]
        %v439 = vld [vmem:[#allocation2 + $0xe1] sm:$0xff]
        %v440 = vld [vmem:[#allocation2 + $0xf1] sm:$0xff]
        %v441 = vld [vmem:[#allocation2 + $0xf9] sm:$0xff]
        %v442 = vld [vmem:[#allocation2 + $0x109] sm:$0xff]
        %v443 = vld [vmem:[#allocation2 + $0x111] sm:$0xff]
        %v444 = vld [vmem:[#allocation2 + $0x121] sm:$0xff]
        %v445 = vld [vmem:[#allocation2 + $0x129] sm:$0xff]
        %v446 = vld [vmem:[#allocation2 + $0x139] sm:$0xff]
        %v447 = vld [vmem:[#allocation2 + $0x141] sm:$0xff]
        %v448 = vld [vmem:[#allocation2 + $0x151] sm:$0xff]
        %v449 = vld [vmem:[#allocation2 + $0x159] sm:$0xff]
        %v450 = vld [vmem:[#allocation2 + $0x169] sm:$0xff]
        %v451 = vld [vmem:[#allocation2 + $0x171] sm:$0xff]
        %v452 = vld [vmem:[#allocation7 + $0x80] sm:$0xff]
        %v453 = vld [vmem:[#allocation7 + $0x88] sm:$0xff]
        %v454 = vld [vmem:[#allocation7 + $0x90] sm:$0xff]
        %v455 = vld [vmem:[#allocation7 + $0x98] sm:$0xff]
        %v456 = vld [vmem:[#allocation7 + $0xa0] sm:$0xff]
        %v457 = vld [vmem:[#allocation7 + $0xa8] sm:$0xff]
        %v458 = vld [vmem:[#allocation7 + $0xb0] sm:$0xff]
        %v459 = vld [vmem:[#allocation7 + $0xb8] sm:$0xff]
        %v460 = vld [vmem:[#allocation7 + $0xc0] sm:$0xff]
        %v461 = vld [vmem:[#allocation7 + $0xc8] sm:$0xff]
        %v462 = vld [vmem:[#allocation7 + $0xd0] sm:$0xff]
        %v463 = vld [vmem:[#allocation7 + $0xd8] sm:$0xff]
        %v464 = vld [vmem:[#allocation7 + $0xe0] sm:$0xff]
        %v465 = vld [vmem:[#allocation7 + $0xe8] sm:$0xff]
        %v466 = vld [vmem:[#allocation7 + $0xf0] sm:$0xff]
        %v467 = vld [vmem:[#allocation7 + $0xf8] sm:$0xff]
        %468 = vmatpush.msra.mxu0 %v467
        %469 = vmatpush.msra.mxu0 %v466
        %470 = vmatpush.msra.mxu0 %v465
        %471 = vmatpush.msra.mxu0 %v464
        %472 = vmatpush.msra.mxu0 %v463
        %473 = vmatpush.msra.mxu0 %v462
        %474 = vmatpush.msra.mxu0 %v461
        %475 = vmatpush.msra.mxu0 %v460
        %476 = vmatpush.msra.mxu0 %v459
        %477 = vmatpush.msra.mxu0 %v458
        %478 = vmatpush.msra.mxu0 %v457
        %479 = vmatpush.msra.mxu0 %v456
        %480 = vmatpush.msra.mxu0 %v455
        %481 = vmatpush.msra.mxu0 %v454
        %482 = vmatpush.msra.mxu0 %v453
        %483 = vmatpush.msra.mxu0 %v452
        %484 = vmatmul.f32.gmra.mxu0 %v420
        %v485 = vpop.f32.mrf.mxu0
        %v486 = vadd.f32 0.0, %v485
        %487 = vmatmul.f32.gmra.mxu0 %v421
        %v488 = vpop.f32.mrf.mxu0
        %v489 = vadd.f32 0.0, %v488
        %490 = vmatmul.f32.gmra.mxu0 %v422
        %v491 = vpop.f32.mrf.mxu0
        %v492 = vadd.f32 0.0, %v491
        %493 = vmatmul.f32.gmra.mxu0 %v423
        %v494 = vpop.f32.mrf.mxu0
        %v495 = vadd.f32 0.0, %v494
        %496 = vmatmul.f32.gmra.mxu0 %v424
        %v497 = vpop.f32.mrf.mxu0
        %v498 = vadd.f32 0.0, %v497
        %499 = vmatmul.f32.gmra.mxu0 %v425
        %v500 = vpop.f32.mrf.mxu0
        %v501 = vadd.f32 0.0, %v500
        %502 = vmatmul.f32.gmra.mxu0 %v426
        %v503 = vpop.f32.mrf.mxu0
        %v504 = vadd.f32 0.0, %v503
        %505 = vmatmul.f32.gmra.mxu0 %v427
        %v506 = vpop.f32.mrf.mxu0
        %v507 = vadd.f32 0.0, %v506
        %508 = vmatmul.f32.gmra.mxu0 %v428
        %v509 = vpop.f32.mrf.mxu0
        %v510 = vadd.f32 0.0, %v509
        %511 = vmatmul.f32.gmra.mxu0 %v429
        %v512 = vpop.f32.mrf.mxu0
        %v513 = vadd.f32 0.0, %v512
        %514 = vmatmul.f32.gmra.mxu0 %v430
        %v515 = vpop.f32.mrf.mxu0
        %v516 = vadd.f32 0.0, %v515
        %517 = vmatmul.f32.gmra.mxu0 %v431
        %v518 = vpop.f32.mrf.mxu0
        %v519 = vadd.f32 0.0, %v518
        %520 = vmatmul.f32.gmra.mxu0 %v432
        %v521 = vpop.f32.mrf.mxu0
        %v522 = vadd.f32 0.0, %v521
        %523 = vmatmul.f32.gmra.mxu0 %v433
        %v524 = vpop.f32.mrf.mxu0
        %v525 = vadd.f32 0.0, %v524
        %526 = vmatmul.f32.gmra.mxu0 %v434
        %v527 = vpop.f32.mrf.mxu0
        %v528 = vadd.f32 0.0, %v527
        %529 = vmatmul.f32.gmra.mxu0 %v435
        %v530 = vpop.f32.mrf.mxu0
        %v531 = vadd.f32 0.0, %v530
        %532 = vmatmul.f32.gmra.mxu0 %v436
        %v533 = vpop.f32.mrf.mxu0
        %v534 = vadd.f32 0.0, %v533
        %535 = vmatmul.f32.gmra.mxu0 %v437
        %v536 = vpop.f32.mrf.mxu0
        %v537 = vadd.f32 0.0, %v536
        %538 = vmatmul.f32.gmra.mxu0 %v438
        %v539 = vpop.f32.mrf.mxu0
        %v540 = vadd.f32 0.0, %v539
        %541 = vmatmul.f32.gmra.mxu0 %v439
        %v542 = vpop.f32.mrf.mxu0
        %v543 = vadd.f32 0.0, %v542
        %544 = vmatmul.f32.gmra.mxu0 %v440
        %v545 = vpop.f32.mrf.mxu0
        %v546 = vadd.f32 0.0, %v545
        %547 = vmatmul.f32.gmra.mxu0 %v441
        %v548 = vpop.f32.mrf.mxu0
        %v549 = vadd.f32 0.0, %v548
        %550 = vmatmul.f32.gmra.mxu0 %v442
        %v551 = vpop.f32.mrf.mxu0
        %v552 = vadd.f32 0.0, %v551
        %553 = vmatmul.f32.gmra.mxu0 %v443
        %v554 = vpop.f32.mrf.mxu0
        %v555 = vadd.f32 0.0, %v554
        %556 = vmatmul.f32.gmra.mxu0 %v444
        %v557 = vpop.f32.mrf.mxu0
        %v558 = vadd.f32 0.0, %v557
        %559 = vmatmul.f32.gmra.mxu0 %v445
        %v560 = vpop.f32.mrf.mxu0
        %v561 = vadd.f32 0.0, %v560
        %562 = vmatmul.f32.gmra.mxu0 %v446
        %v563 = vpop.f32.mrf.mxu0
        %v564 = vadd.f32 0.0, %v563
        %565 = vmatmul.f32.gmra.mxu0 %v447
        %v566 = vpop.f32.mrf.mxu0
        %v567 = vadd.f32 0.0, %v566
        %568 = vmatmul.f32.gmra.mxu0 %v448
        %v569 = vpop.f32.mrf.mxu0
        %v570 = vadd.f32 0.0, %v569
        %571 = vmatmul.f32.gmra.mxu0 %v449
        %v572 = vpop.f32.mrf.mxu0
        %v573 = vadd.f32 0.0, %v572
        %574 = vmatmul.f32.gmra.mxu0 %v450
        %v575 = vpop.f32.mrf.mxu0
        %v576 = vadd.f32 0.0, %v575
        %577 = vmatmul.f32.gmra.mxu0 %v451
        %v578 = vpop.f32.mrf.mxu0
        %v579 = vadd.f32 0.0, %v578
        %580 = vdwg.mxu0
        %581 = vmatpush.msra.mxu0 %v419
        %582 = vmatpush.msra.mxu0 %v418
        %583 = vmatpush.msra.mxu0 %v417
        %584 = vmatpush.msra.mxu0 %v416
        %585 = vmatpush.msra.mxu0 %v415
        %586 = vmatpush.msra.mxu0 %v414
        %587 = vmatpush.msra.mxu0 %v413
        %588 = vmatpush.msra.mxu0 %v412
        %589 = vmatpush.msra.mxu0 %v411
        %590 = vmatpush.msra.mxu0 %v410
        %591 = vmatpush.msra.mxu0 %v409
        %592 = vmatpush.msra.mxu0 %v408
        %593 = vmatpush.msra.mxu0 %v407
        %594 = vmatpush.msra.mxu0 %v406
        %595 = vmatpush.msra.mxu0 %v405
        %596 = vmatpush.msra.mxu0 %v404
        %597 = vmatmul.f32.gmra.mxu0 %v372
        %v598 = vpop.f32.mrf.mxu0
        %v599 = vadd.f32 %v486, %v598
        %600 = vmatmul.f32.gmra.mxu0 %v373
        %v601 = vpop.f32.mrf.mxu0
        %v602 = vadd.f32 %v489, %v601
        %603 = vmatmul.f32.gmra.mxu0 %v374
        %v604 = vpop.f32.mrf.mxu0
        %v605 = vadd.f32 %v492, %v604
        %606 = vmatmul.f32.gmra.mxu0 %v375
        %v607 = vpop.f32.mrf.mxu0
        %v608 = vadd.f32 %v495, %v607
        %609 = vmatmul.f32.gmra.mxu0 %v376
        %v610 = vpop.f32.mrf.mxu0
        %v611 = vadd.f32 %v498, %v610
        %612 = vmatmul.f32.gmra.mxu0 %v377
        %v613 = vpop.f32.mrf.mxu0
        %v614 = vadd.f32 %v501, %v613
        %615 = vmatmul.f32.gmra.mxu0 %v378
        %v616 = vpop.f32.mrf.mxu0
        %v617 = vadd.f32 %v504, %v616
        %618 = vmatmul.f32.gmra.mxu0 %v379
        %v619 = vpop.f32.mrf.mxu0
        %v620 = vadd.f32 %v507, %v619
        %621 = vmatmul.f32.gmra.mxu0 %v380
        %v622 = vpop.f32.mrf.mxu0
        %v623 = vadd.f32 %v510, %v622
        %624 = vmatmul.f32.gmra.mxu0 %v381
        %v625 = vpop.f32.mrf.mxu0
        %v626 = vadd.f32 %v513, %v625
        %627 = vmatmul.f32.gmra.mxu0 %v382
        %v628 = vpop.f32.mrf.mxu0
        %v629 = vadd.f32 %v516, %v628
        %630 = vmatmul.f32.gmra.mxu0 %v383
        %v631 = vpop.f32.mrf.mxu0
        %v632 = vadd.f32 %v519, %v631
        %633 = vmatmul.f32.gmra.mxu0 %v384
        %v634 = vpop.f32.mrf.mxu0
        %v635 = vadd.f32 %v522, %v634
        %636 = vmatmul.f32.gmra.mxu0 %v385
        %v637 = vpop.f32.mrf.mxu0
        %v638 = vadd.f32 %v525, %v637
        %639 = vmatmul.f32.gmra.mxu0 %v386
        %v640 = vpop.f32.mrf.mxu0
        %v641 = vadd.f32 %v528, %v640
        %642 = vmatmul.f32.gmra.mxu0 %v387
        %v643 = vpop.f32.mrf.mxu0
        %v644 = vadd.f32 %v531, %v643
        %645 = vmatmul.f32.gmra.mxu0 %v388
        %v646 = vpop.f32.mrf.mxu0
        %v647 = vadd.f32 %v534, %v646
        %648 = vmatmul.f32.gmra.mxu0 %v389
        %v649 = vpop.f32.mrf.mxu0
        %v650 = vadd.f32 %v537, %v649
        %651 = vmatmul.f32.gmra.mxu0 %v390
        %v652 = vpop.f32.mrf.mxu0
        %v653 = vadd.f32 %v540, %v652
        %654 = vmatmul.f32.gmra.mxu0 %v391
        %v655 = vpop.f32.mrf.mxu0
        %v656 = vadd.f32 %v543, %v655
        %657 = vmatmul.f32.gmra.mxu0 %v392
        %v658 = vpop.f32.mrf.mxu0
        %v659 = vadd.f32 %v546, %v658
        %660 = vmatmul.f32.gmra.mxu0 %v393
        %v661 = vpop.f32.mrf.mxu0
        %v662 = vadd.f32 %v549, %v661
        %663 = vmatmul.f32.gmra.mxu0 %v394
        %v664 = vpop.f32.mrf.mxu0
        %v665 = vadd.f32 %v552, %v664
        %666 = vmatmul.f32.gmra.mxu0 %v395
        %v667 = vpop.f32.mrf.mxu0
        %v668 = vadd.f32 %v555, %v667
        %669 = vmatmul.f32.gmra.mxu0 %v396
        %v670 = vpop.f32.mrf.mxu0
        %v671 = vadd.f32 %v558, %v670
        %672 = vmatmul.f32.gmra.mxu0 %v397
        %v673 = vpop.f32.mrf.mxu0
        %v674 = vadd.f32 %v561, %v673
        %675 = vmatmul.f32.gmra.mxu0 %v398
        %v676 = vpop.f32.mrf.mxu0
        %v677 = vadd.f32 %v564, %v676
        %678 = vmatmul.f32.gmra.mxu0 %v399
        %v679 = vpop.f32.mrf.mxu0
        %v680 = vadd.f32 %v567, %v679
        %681 = vmatmul.f32.gmra.mxu0 %v400
        %v682 = vpop.f32.mrf.mxu0
        %v683 = vadd.f32 %v570, %v682
        %684 = vmatmul.f32.gmra.mxu0 %v401
        %v685 = vpop.f32.mrf.mxu0
        %v686 = vadd.f32 %v573, %v685
        %687 = vmatmul.f32.gmra.mxu0 %v402
        %v688 = vpop.f32.mrf.mxu0
        %v689 = vadd.f32 %v576, %v688
        %690 = vmatmul.f32.gmra.mxu0 %v403
        %v691 = vpop.f32.mrf.mxu0
        %v692 = vadd.f32 %v579, %v691
        %693 = vdwg.mxu0
        %v694 = vld [vmem:[#allocation2 + $0x2] sm:$0xff]
        %v695 = vld [vmem:[#allocation2 + $0xa] sm:$0xff]
        %v696 = vld [vmem:[#allocation2 + $0x1a] sm:$0xff]
        %v697 = vld [vmem:[#allocation2 + $0x22] sm:$0xff]
        %v698 = vld [vmem:[#allocation2 + $0x32] sm:$0xff]
        %v699 = vld [vmem:[#allocation2 + $0x3a] sm:$0xff]
        %v700 = vld [vmem:[#allocation2 + $0x4a] sm:$0xff]
        %v701 = vld [vmem:[#allocation2 + $0x52] sm:$0xff]
        %v702 = vld [vmem:[#allocation2 + $0x62] sm:$0xff]
        %v703 = vld [vmem:[#allocation2 + $0x6a] sm:$0xff]
        %v704 = vld [vmem:[#allocation2 + $0x7a] sm:$0xff]
        %v705 = vld [vmem:[#allocation2 + $0x82] sm:$0xff]
        %v706 = vld [vmem:[#allocation2 + $0x92] sm:$0xff]
        %v707 = vld [vmem:[#allocation2 + $0x9a] sm:$0xff]
        %v708 = vld [vmem:[#allocation2 + $0xaa] sm:$0xff]
        %v709 = vld [vmem:[#allocation2 + $0xb2] sm:$0xff]
        %v710 = vld [vmem:[#allocation2 + $0xc2] sm:$0xff]
        %v711 = vld [vmem:[#allocation2 + $0xca] sm:$0xff]
        %v712 = vld [vmem:[#allocation2 + $0xda] sm:$0xff]
        %v713 = vld [vmem:[#allocation2 + $0xe2] sm:$0xff]
        %v714 = vld [vmem:[#allocation2 + $0xf2] sm:$0xff]
        %v715 = vld [vmem:[#allocation2 + $0xfa] sm:$0xff]
        %v716 = vld [vmem:[#allocation2 + $0x10a] sm:$0xff]
        %v717 = vld [vmem:[#allocation2 + $0x112] sm:$0xff]
        %v718 = vld [vmem:[#allocation2 + $0x122] sm:$0xff]
        %v719 = vld [vmem:[#allocation2 + $0x12a] sm:$0xff]
        %v720 = vld [vmem:[#allocation2 + $0x13a] sm:$0xff]
        %v721 = vld [vmem:[#allocation2 + $0x142] sm:$0xff]
        %v722 = vld [vmem:[#allocation2 + $0x152] sm:$0xff]
        %v723 = vld [vmem:[#allocation2 + $0x15a] sm:$0xff]
        %v724 = vld [vmem:[#allocation2 + $0x16a] sm:$0xff]
        %v725 = vld [vmem:[#allocation2 + $0x172] sm:$0xff]
        %v726 = vld [vmem:[#allocation7 + $0x100] sm:$0xff]
        %v727 = vld [vmem:[#allocation7 + $0x108] sm:$0xff]
        %v728 = vld [vmem:[#allocation7 + $0x110] sm:$0xff]
        %v729 = vld [vmem:[#allocation7 + $0x118] sm:$0xff]
        %v730 = vld [vmem:[#allocation7 + $0x120] sm:$0xff]
        %v731 = vld [vmem:[#allocation7 + $0x128] sm:$0xff]
        %v732 = vld [vmem:[#allocation7 + $0x130] sm:$0xff]
        %v733 = vld [vmem:[#allocation7 + $0x138] sm:$0xff]
        %v734 = vld [vmem:[#allocation7 + $0x140] sm:$0xff]
        %v735 = vld [vmem:[#allocation7 + $0x148] sm:$0xff]
        %v736 = vld [vmem:[#allocation7 + $0x150] sm:$0xff]
        %v737 = vld [vmem:[#allocation7 + $0x158] sm:$0xff]
        %v738 = vld [vmem:[#allocation7 + $0x160] sm:$0xff]
        %v739 = vld [vmem:[#allocation7 + $0x168] sm:$0xff]
        %v740 = vld [vmem:[#allocation7 + $0x170] sm:$0xff]
        %v741 = vld [vmem:[#allocation7 + $0x178] sm:$0xff]
        %742 = vmatpush.msra.mxu0 %v741
        %743 = vmatpush.msra.mxu0 %v740
        %744 = vmatpush.msra.mxu0 %v739
        %745 = vmatpush.msra.mxu0 %v738
        %746 = vmatpush.msra.mxu0 %v737
        %747 = vmatpush.msra.mxu0 %v736
        %748 = vmatpush.msra.mxu0 %v735
        %749 = vmatpush.msra.mxu0 %v734
        %750 = vmatpush.msra.mxu0 %v733
        %751 = vmatpush.msra.mxu0 %v732
        %752 = vmatpush.msra.mxu0 %v731
        %753 = vmatpush.msra.mxu0 %v730
        %754 = vmatpush.msra.mxu0 %v729
        %755 = vmatpush.msra.mxu0 %v728
        %756 = vmatpush.msra.mxu0 %v727
        %757 = vmatpush.msra.mxu0 %v726
        %758 = vmatmul.f32.gmra.mxu0 %v694
        %v759 = vpop.f32.mrf.mxu0
        %v760 = vadd.f32 0.0, %v759
        %761 = vmatmul.f32.gmra.mxu0 %v695
        %v762 = vpop.f32.mrf.mxu0
        %v763 = vadd.f32 0.0, %v762
        %764 = vmatmul.f32.gmra.mxu0 %v696
        %v765 = vpop.f32.mrf.mxu0
        %v766 = vadd.f32 0.0, %v765
        %767 = vmatmul.f32.gmra.mxu0 %v697
        %v768 = vpop.f32.mrf.mxu0
        %v769 = vadd.f32 0.0, %v768
        %770 = vmatmul.f32.gmra.mxu0 %v698
        %v771 = vpop.f32.mrf.mxu0
        %v772 = vadd.f32 0.0, %v771
        %773 = vmatmul.f32.gmra.mxu0 %v699
        %v774 = vpop.f32.mrf.mxu0
        %v775 = vadd.f32 0.0, %v774
        %776 = vmatmul.f32.gmra.mxu0 %v700
        %v777 = vpop.f32.mrf.mxu0
        %v778 = vadd.f32 0.0, %v777
        %779 = vmatmul.f32.gmra.mxu0 %v701
        %v780 = vpop.f32.mrf.mxu0
        %v781 = vadd.f32 0.0, %v780
        %782 = vmatmul.f32.gmra.mxu0 %v702
        %v783 = vpop.f32.mrf.mxu0
        %v784 = vadd.f32 0.0, %v783
        %785 = vmatmul.f32.gmra.mxu0 %v703
        %v786 = vpop.f32.mrf.mxu0
        %v787 = vadd.f32 0.0, %v786
        %788 = vmatmul.f32.gmra.mxu0 %v704
        %v789 = vpop.f32.mrf.mxu0
        %v790 = vadd.f32 0.0, %v789
        %791 = vmatmul.f32.gmra.mxu0 %v705
        %v792 = vpop.f32.mrf.mxu0
        %v793 = vadd.f32 0.0, %v792
        %794 = vmatmul.f32.gmra.mxu0 %v706
        %v795 = vpop.f32.mrf.mxu0
        %v796 = vadd.f32 0.0, %v795
        %797 = vmatmul.f32.gmra.mxu0 %v707
        %v798 = vpop.f32.mrf.mxu0
        %v799 = vadd.f32 0.0, %v798
        %800 = vmatmul.f32.gmra.mxu0 %v708
        %v801 = vpop.f32.mrf.mxu0
        %v802 = vadd.f32 0.0, %v801
        %803 = vmatmul.f32.gmra.mxu0 %v709
        %v804 = vpop.f32.mrf.mxu0
        %v805 = vadd.f32 0.0, %v804
        %806 = vmatmul.f32.gmra.mxu0 %v710
        %v807 = vpop.f32.mrf.mxu0
        %v808 = vadd.f32 0.0, %v807
        %809 = vmatmul.f32.gmra.mxu0 %v711
        %v810 = vpop.f32.mrf.mxu0
        %v811 = vadd.f32 0.0, %v810
        %812 = vmatmul.f32.gmra.mxu0 %v712
        %v813 = vpop.f32.mrf.mxu0
        %v814 = vadd.f32 0.0, %v813
        %815 = vmatmul.f32.gmra.mxu0 %v713
        %v816 = vpop.f32.mrf.mxu0
        %v817 = vadd.f32 0.0, %v816
        %818 = vmatmul.f32.gmra.mxu0 %v714
        %v819 = vpop.f32.mrf.mxu0
        %v820 = vadd.f32 0.0, %v819
        %821 = vmatmul.f32.gmra.mxu0 %v715
        %v822 = vpop.f32.mrf.mxu0
        %v823 = vadd.f32 0.0, %v822
        %824 = vmatmul.f32.gmra.mxu0 %v716
        %v825 = vpop.f32.mrf.mxu0
        %v826 = vadd.f32 0.0, %v825
        %827 = vmatmul.f32.gmra.mxu0 %v717
        %v828 = vpop.f32.mrf.mxu0
        %v829 = vadd.f32 0.0, %v828
        %830 = vmatmul.f32.gmra.mxu0 %v718
        %v831 = vpop.f32.mrf.mxu0
        %v832 = vadd.f32 0.0, %v831
        %833 = vmatmul.f32.gmra.mxu0 %v719
        %v834 = vpop.f32.mrf.mxu0
        %v835 = vadd.f32 0.0, %v834
        %836 = vmatmul.f32.gmra.mxu0 %v720
        %v837 = vpop.f32.mrf.mxu0
        %v838 = vadd.f32 0.0, %v837
        %839 = vmatmul.f32.gmra.mxu0 %v721
        %v840 = vpop.f32.mrf.mxu0
        %v841 = vadd.f32 0.0, %v840
        %842 = vmatmul.f32.gmra.mxu0 %v722
        %v843 = vpop.f32.mrf.mxu0
        %v844 = vadd.f32 0.0, %v843
        %845 = vmatmul.f32.gmra.mxu0 %v723
        %v846 = vpop.f32.mrf.mxu0
        %v847 = vadd.f32 0.0, %v846
        %848 = vmatmul.f32.gmra.mxu0 %v724
        %v849 = vpop.f32.mrf.mxu0
        %v850 = vadd.f32 0.0, %v849
        %851 = vmatmul.f32.gmra.mxu0 %v725
        %v852 = vpop.f32.mrf.mxu0
        %v853 = vadd.f32 0.0, %v852
        %854 = vdwg.mxu0
        %v855 = vadd.f32 %v599, %v760
        %v856 = vadd.f32 %v602, %v763
        %v857 = vadd.f32 %v605, %v766
        %v858 = vadd.f32 %v608, %v769
        %v859 = vadd.f32 %v611, %v772
        %v860 = vadd.f32 %v614, %v775
        %v861 = vadd.f32 %v617, %v778
        %v862 = vadd.f32 %v620, %v781
        %v863 = vadd.f32 %v623, %v784
        %v864 = vadd.f32 %v626, %v787
        %v865 = vadd.f32 %v629, %v790
        %v866 = vadd.f32 %v632, %v793
        %v867 = vadd.f32 %v635, %v796
        %v868 = vadd.f32 %v638, %v799
        %v869 = vadd.f32 %v641, %v802
        %v870 = vadd.f32 %v644, %v805
        %v871 = vadd.f32 %v647, %v808
        %v872 = vadd.f32 %v650, %v811
        %v873 = vadd.f32 %v653, %v814
        %v874 = vadd.f32 %v656, %v817
        %v875 = vadd.f32 %v659, %v820
        %v876 = vadd.f32 %v662, %v823
        %v877 = vadd.f32 %v665, %v826
        %v878 = vadd.f32 %v668, %v829
        %v879 = vadd.f32 %v671, %v832
        %v880 = vadd.f32 %v674, %v835
        %v881 = vadd.f32 %v677, %v838
        %v882 = vadd.f32 %v680, %v841
        %v883 = vadd.f32 %v683, %v844
        %v884 = vadd.f32 %v686, %v847
        %v885 = vadd.f32 %v689, %v850
        %v886 = vadd.f32 %v692, %v853
        %v887 = vld [vmem:[%s256] sm:$0xff]
        %v888 = vld [vmem:[%s256 + $0x8] sm:$0xff]
        %v889 = vld [vmem:[%s256 + $0x18] sm:$0xff]
        %v890 = vld [vmem:[%s256 + $0x20] sm:$0xff]
        %v891 = vld [vmem:[%s256 + $0x30] sm:$0xff]
        %v892 = vld [vmem:[%s256 + $0x38] sm:$0xff]
        %v893 = vld [vmem:[%s256 + $0x48] sm:$0xff]
        %v894 = vld [vmem:[%s256 + $0x50] sm:$0xff]
        %v895 = vld [vmem:[%s256 + $0x60] sm:$0xff]
        %v896 = vld [vmem:[%s256 + $0x68] sm:$0xff]
        %v897 = vld [vmem:[%s256 + $0x78] sm:$0xff]
        %v898 = vld [vmem:[%s256 + $0x80] sm:$0xff]
        %v899 = vld [vmem:[%s256 + $0x90] sm:$0xff]
        %v900 = vld [vmem:[%s256 + $0x98] sm:$0xff]
        %v901 = vld [vmem:[%s256 + $0xa8] sm:$0xff]
        %v902 = vld [vmem:[%s256 + $0xb0] sm:$0xff]
        %v903 = vld [vmem:[%s256 + $0xc0] sm:$0xff]
        %v904 = vld [vmem:[%s256 + $0xc8] sm:$0xff]
        %v905 = vld [vmem:[%s256 + $0xd8] sm:$0xff]
        %v906 = vld [vmem:[%s256 + $0xe0] sm:$0xff]
        %v907 = vld [vmem:[%s256 + $0xf0] sm:$0xff]
        %v908 = vld [vmem:[%s256 + $0xf8] sm:$0xff]
        %v909 = vld [vmem:[%s256 + $0x108] sm:$0xff]
        %v910 = vld [vmem:[%s256 + $0x110] sm:$0xff]
        %v911 = vld [vmem:[%s256 + $0x120] sm:$0xff]
        %v912 = vld [vmem:[%s256 + $0x128] sm:$0xff]
        %v913 = vld [vmem:[%s256 + $0x138] sm:$0xff]
        %v914 = vld [vmem:[%s256 + $0x140] sm:$0xff]
        %v915 = vld [vmem:[%s256 + $0x150] sm:$0xff]
        %v916 = vld [vmem:[%s256 + $0x158] sm:$0xff]
        %v917 = vld [vmem:[%s256 + $0x168] sm:$0xff]
        %v918 = vld [vmem:[%s256 + $0x170] sm:$0xff]
        %v919 = vld [vmem:[#allocation7 + $0x180] sm:$0xff]
        %v920 = vld [vmem:[#allocation7 + $0x188] sm:$0xff]
        %v921 = vld [vmem:[#allocation7 + $0x190] sm:$0xff]
        %v922 = vld [vmem:[#allocation7 + $0x198] sm:$0xff]
        %v923 = vld [vmem:[#allocation7 + $0x1a0] sm:$0xff]
        %v924 = vld [vmem:[#allocation7 + $0x1a8] sm:$0xff]
        %v925 = vld [vmem:[#allocation7 + $0x1b0] sm:$0xff]
        %v926 = vld [vmem:[#allocation7 + $0x1b8] sm:$0xff]
        %v927 = vld [vmem:[#allocation7 + $0x1c0] sm:$0xff]
        %v928 = vld [vmem:[#allocation7 + $0x1c8] sm:$0xff]
        %v929 = vld [vmem:[#allocation7 + $0x1d0] sm:$0xff]
        %v930 = vld [vmem:[#allocation7 + $0x1d8] sm:$0xff]
        %v931 = vld [vmem:[#allocation7 + $0x1e0] sm:$0xff]
        %v932 = vld [vmem:[#allocation7 + $0x1e8] sm:$0xff]
        %v933 = vld [vmem:[#allocation7 + $0x1f0] sm:$0xff]
        %v934 = vld [vmem:[#allocation7 + $0x1f8] sm:$0xff]
        %935 = vmatpush.msra.mxu0 %v934
        %936 = vmatpush.msra.mxu0 %v933
        %937 = vmatpush.msra.mxu0 %v932
        %938 = vmatpush.msra.mxu0 %v931
        %939 = vmatpush.msra.mxu0 %v930
        %940 = vmatpush.msra.mxu0 %v929
        %941 = vmatpush.msra.mxu0 %v928
        %942 = vmatpush.msra.mxu0 %v927
        %943 = vmatpush.msra.mxu0 %v926
        %944 = vmatpush.msra.mxu0 %v925
        %945 = vmatpush.msra.mxu0 %v924
        %946 = vmatpush.msra.mxu0 %v923
        %947 = vmatpush.msra.mxu0 %v922
        %948 = vmatpush.msra.mxu0 %v921
        %949 = vmatpush.msra.mxu0 %v920
        %950 = vmatpush.msra.mxu0 %v919
        %951 = vmatmul.f32.gmra.mxu0 %v887
        %v952 = vpop.f32.mrf.mxu0
        %v953 = vadd.f32 0.0, %v952
        %954 = vmatmul.f32.gmra.mxu0 %v888
        %v955 = vpop.f32.mrf.mxu0
        %v956 = vadd.f32 0.0, %v955
        %957 = vmatmul.f32.gmra.mxu0 %v889
        %v958 = vpop.f32.mrf.mxu0
        %v959 = vadd.f32 0.0, %v958
        %960 = vmatmul.f32.gmra.mxu0 %v890
        %v961 = vpop.f32.mrf.mxu0
        %v962 = vadd.f32 0.0, %v961
        %963 = vmatmul.f32.gmra.mxu0 %v891
        %v964 = vpop.f32.mrf.mxu0
        %v965 = vadd.f32 0.0, %v964
        %966 = vmatmul.f32.gmra.mxu0 %v892
        %v967 = vpop.f32.mrf.mxu0
        %v968 = vadd.f32 0.0, %v967
        %969 = vmatmul.f32.gmra.mxu0 %v893
        %v970 = vpop.f32.mrf.mxu0
        %v971 = vadd.f32 0.0, %v970
        %972 = vmatmul.f32.gmra.mxu0 %v894
        %v973 = vpop.f32.mrf.mxu0
        %v974 = vadd.f32 0.0, %v973
        %975 = vmatmul.f32.gmra.mxu0 %v895
        %v976 = vpop.f32.mrf.mxu0
        %v977 = vadd.f32 0.0, %v976
        %978 = vmatmul.f32.gmra.mxu0 %v896
        %v979 = vpop.f32.mrf.mxu0
        %v980 = vadd.f32 0.0, %v979
        %981 = vmatmul.f32.gmra.mxu0 %v897
        %v982 = vpop.f32.mrf.mxu0
        %v983 = vadd.f32 0.0, %v982
        %984 = vmatmul.f32.gmra.mxu0 %v898
        %v985 = vpop.f32.mrf.mxu0
        %v986 = vadd.f32 0.0, %v985
        %987 = vmatmul.f32.gmra.mxu0 %v899
        %v988 = vpop.f32.mrf.mxu0
        %v989 = vadd.f32 0.0, %v988
        %990 = vmatmul.f32.gmra.mxu0 %v900
        %v991 = vpop.f32.mrf.mxu0
        %v992 = vadd.f32 0.0, %v991
        %993 = vmatmul.f32.gmra.mxu0 %v901
        %v994 = vpop.f32.mrf.mxu0
        %v995 = vadd.f32 0.0, %v994
        %996 = vmatmul.f32.gmra.mxu0 %v902
        %v997 = vpop.f32.mrf.mxu0
        %v998 = vadd.f32 0.0, %v997
        %999 = vmatmul.f32.gmra.mxu0 %v903
        %v1000 = vpop.f32.mrf.mxu0
        %v1001 = vadd.f32 0.0, %v1000
        %1002 = vmatmul.f32.gmra.mxu0 %v904
        %v1003 = vpop.f32.mrf.mxu0
        %v1004 = vadd.f32 0.0, %v1003
        %1005 = vmatmul.f32.gmra.mxu0 %v905
        %v1006 = vpop.f32.mrf.mxu0
        %v1007 = vadd.f32 0.0, %v1006
        %1008 = vmatmul.f32.gmra.mxu0 %v906
        %v1009 = vpop.f32.mrf.mxu0
        %v1010 = vadd.f32 0.0, %v1009
        %1011 = vmatmul.f32.gmra.mxu0 %v907
        %v1012 = vpop.f32.mrf.mxu0
        %v1013 = vadd.f32 0.0, %v1012
        %1014 = vmatmul.f32.gmra.mxu0 %v908
        %v1015 = vpop.f32.mrf.mxu0
        %v1016 = vadd.f32 0.0, %v1015
        %1017 = vmatmul.f32.gmra.mxu0 %v909
        %v1018 = vpop.f32.mrf.mxu0
        %v1019 = vadd.f32 0.0, %v1018
        %1020 = vmatmul.f32.gmra.mxu0 %v910
        %v1021 = vpop.f32.mrf.mxu0
        %v1022 = vadd.f32 0.0, %v1021
        %1023 = vmatmul.f32.gmra.mxu0 %v911
        %v1024 = vpop.f32.mrf.mxu0
        %v1025 = vadd.f32 0.0, %v1024
        %1026 = vmatmul.f32.gmra.mxu0 %v912
        %v1027 = vpop.f32.mrf.mxu0
        %v1028 = vadd.f32 0.0, %v1027
        %1029 = vmatmul.f32.gmra.mxu0 %v913
        %v1030 = vpop.f32.mrf.mxu0
        %v1031 = vadd.f32 0.0, %v1030
        %1032 = vmatmul.f32.gmra.mxu0 %v914
        %v1033 = vpop.f32.mrf.mxu0
        %v1034 = vadd.f32 0.0, %v1033
        %1035 = vmatmul.f32.gmra.mxu0 %v915
        %v1036 = vpop.f32.mrf.mxu0
        %v1037 = vadd.f32 0.0, %v1036
        %1038 = vmatmul.f32.gmra.mxu0 %v916
        %v1039 = vpop.f32.mrf.mxu0
        %v1040 = vadd.f32 0.0, %v1039
        %1041 = vmatmul.f32.gmra.mxu0 %v917
        %v1042 = vpop.f32.mrf.mxu0
        %v1043 = vadd.f32 0.0, %v1042
        %1044 = vmatmul.f32.gmra.mxu0 %v918
        %v1045 = vpop.f32.mrf.mxu0
        %v1046 = vadd.f32 0.0, %v1045
        %1047 = vdwg.mxu0
        %v1048 = vadd.f32 %v855, %v953
        %v1049 = vadd.f32 %v856, %v956
        %v1050 = vadd.f32 %v857, %v959
        %v1051 = vadd.f32 %v858, %v962
        %v1052 = vadd.f32 %v859, %v965
        %v1053 = vadd.f32 %v860, %v968
        %v1054 = vadd.f32 %v861, %v971
        %v1055 = vadd.f32 %v862, %v974
        %v1056 = vadd.f32 %v863, %v977
        %v1057 = vadd.f32 %v864, %v980
        %v1058 = vadd.f32 %v865, %v983
        %v1059 = vadd.f32 %v866, %v986
        %v1060 = vadd.f32 %v867, %v989
        %v1061 = vadd.f32 %v868, %v992
        %v1062 = vadd.f32 %v869, %v995
        %v1063 = vadd.f32 %v870, %v998
        %v1064 = vadd.f32 %v871, %v1001
        %v1065 = vadd.f32 %v872, %v1004
        %v1066 = vadd.f32 %v873, %v1007
        %v1067 = vadd.f32 %v874, %v1010
        %v1068 = vadd.f32 %v875, %v1013
        %v1069 = vadd.f32 %v876, %v1016
        %v1070 = vadd.f32 %v877, %v1019
        %v1071 = vadd.f32 %v878, %v1022
        %v1072 = vadd.f32 %v879, %v1025
        %v1073 = vadd.f32 %v880, %v1028
        %v1074 = vadd.f32 %v881, %v1031
        %v1075 = vadd.f32 %v882, %v1034
        %v1076 = vadd.f32 %v883, %v1037
        %v1077 = vadd.f32 %v884, %v1040
        %v1078 = vadd.f32 %v885, %v1043
        %v1079 = vadd.f32 %v886, %v1046
        %v1080 = vld [vmem:[%s256 + $0x1] sm:$0xff]
        %v1081 = vld [vmem:[%s256 + $0x9] sm:$0xff]
        %v1082 = vld [vmem:[%s256 + $0x19] sm:$0xff]
        %v1083 = vld [vmem:[%s256 + $0x21] sm:$0xff]
        %v1084 = vld [vmem:[%s256 + $0x31] sm:$0xff]
        %v1085 = vld [vmem:[%s256 + $0x39] sm:$0xff]
        %v1086 = vld [vmem:[%s256 + $0x49] sm:$0xff]
        %v1087 = vld [vmem:[%s256 + $0x51] sm:$0xff]
        %v1088 = vld [vmem:[%s256 + $0x61] sm:$0xff]
        %v1089 = vld [vmem:[%s256 + $0x69] sm:$0xff]
        %v1090 = vld [vmem:[%s256 + $0x79] sm:$0xff]
        %v1091 = vld [vmem:[%s256 + $0x81] sm:$0xff]
        %v1092 = vld [vmem:[%s256 + $0x91] sm:$0xff]
        %v1093 = vld [vmem:[%s256 + $0x99] sm:$0xff]
        %v1094 = vld [vmem:[%s256 + $0xa9] sm:$0xff]
        %v1095 = vld [vmem:[%s256 + $0xb1] sm:$0xff]
        %v1096 = vld [vmem:[%s256 + $0xc1] sm:$0xff]
        %v1097 = vld [vmem:[%s256 + $0xc9] sm:$0xff]
        %v1098 = vld [vmem:[%s256 + $0xd9] sm:$0xff]
        %v1099 = vld [vmem:[%s256 + $0xe1] sm:$0xff]
        %v1100 = vld [vmem:[%s256 + $0xf1] sm:$0xff]
        %v1101 = vld [vmem:[%s256 + $0xf9] sm:$0xff]
        %v1102 = vld [vmem:[%s256 + $0x109] sm:$0xff]
        %v1103 = vld [vmem:[%s256 + $0x111] sm:$0xff]
        %v1104 = vld [vmem:[%s256 + $0x121] sm:$0xff]
        %v1105 = vld [vmem:[%s256 + $0x129] sm:$0xff]
        %v1106 = vld [vmem:[%s256 + $0x139] sm:$0xff]
        %v1107 = vld [vmem:[%s256 + $0x141] sm:$0xff]
        %v1108 = vld [vmem:[%s256 + $0x151] sm:$0xff]
        %v1109 = vld [vmem:[%s256 + $0x159] sm:$0xff]
        %v1110 = vld [vmem:[%s256 + $0x169] sm:$0xff]
        %v1111 = vld [vmem:[%s256 + $0x171] sm:$0xff]
        %v1112 = vld [vmem:[#allocation7 + $0x200] sm:$0xff]
        %v1113 = vld [vmem:[#allocation7 + $0x208] sm:$0xff]
        %v1114 = vld [vmem:[#allocation7 + $0x210] sm:$0xff]
        %v1115 = vld [vmem:[#allocation7 + $0x218] sm:$0xff]
        %v1116 = vld [vmem:[#allocation7 + $0x220] sm:$0xff]
        %v1117 = vld [vmem:[#allocation7 + $0x228] sm:$0xff]
        %v1118 = vld [vmem:[#allocation7 + $0x230] sm:$0xff]
        %v1119 = vld [vmem:[#allocation7 + $0x238] sm:$0xff]
        %v1120 = vld [vmem:[#allocation7 + $0x240] sm:$0xff]
        %v1121 = vld [vmem:[#allocation7 + $0x248] sm:$0xff]
        %v1122 = vld [vmem:[#allocation7 + $0x250] sm:$0xff]
        %v1123 = vld [vmem:[#allocation7 + $0x258] sm:$0xff]
        %v1124 = vld [vmem:[#allocation7 + $0x260] sm:$0xff]
        %v1125 = vld [vmem:[#allocation7 + $0x268] sm:$0xff]
        %v1126 = vld [vmem:[#allocation7 + $0x270] sm:$0xff]
        %v1127 = vld [vmem:[#allocation7 + $0x278] sm:$0xff]
        %1128 = vmatpush.msra.mxu0 %v1127
        %1129 = vmatpush.msra.mxu0 %v1126
        %1130 = vmatpush.msra.mxu0 %v1125
        %1131 = vmatpush.msra.mxu0 %v1124
        %1132 = vmatpush.msra.mxu0 %v1123
        %1133 = vmatpush.msra.mxu0 %v1122
        %1134 = vmatpush.msra.mxu0 %v1121
        %1135 = vmatpush.msra.mxu0 %v1120
        %1136 = vmatpush.msra.mxu0 %v1119
        %1137 = vmatpush.msra.mxu0 %v1118
        %1138 = vmatpush.msra.mxu0 %v1117
        %1139 = vmatpush.msra.mxu0 %v1116
        %1140 = vmatpush.msra.mxu0 %v1115
        %1141 = vmatpush.msra.mxu0 %v1114
        %1142 = vmatpush.msra.mxu0 %v1113
        %1143 = vmatpush.msra.mxu0 %v1112
        %1144 = vmatmul.f32.gmra.mxu0 %v1080
        %v1145 = vpop.f32.mrf.mxu0
        %v1146 = vadd.f32 0.0, %v1145
        %1147 = vmatmul.f32.gmra.mxu0 %v1081
        %v1148 = vpop.f32.mrf.mxu0
        %v1149 = vadd.f32 0.0, %v1148
        %1150 = vmatmul.f32.gmra.mxu0 %v1082
        %v1151 = vpop.f32.mrf.mxu0
        %v1152 = vadd.f32 0.0, %v1151
        %1153 = vmatmul.f32.gmra.mxu0 %v1083
        %v1154 = vpop.f32.mrf.mxu0
        %v1155 = vadd.f32 0.0, %v1154
        %1156 = vmatmul.f32.gmra.mxu0 %v1084
        %v1157 = vpop.f32.mrf.mxu0
        %v1158 = vadd.f32 0.0, %v1157
        %1159 = vmatmul.f32.gmra.mxu0 %v1085
        %v1160 = vpop.f32.mrf.mxu0
        %v1161 = vadd.f32 0.0, %v1160
        %1162 = vmatmul.f32.gmra.mxu0 %v1086
        %v1163 = vpop.f32.mrf.mxu0
        %v1164 = vadd.f32 0.0, %v1163
        %1165 = vmatmul.f32.gmra.mxu0 %v1087
        %v1166 = vpop.f32.mrf.mxu0
        %v1167 = vadd.f32 0.0, %v1166
        %1168 = vmatmul.f32.gmra.mxu0 %v1088
        %v1169 = vpop.f32.mrf.mxu0
        %v1170 = vadd.f32 0.0, %v1169
        %1171 = vmatmul.f32.gmra.mxu0 %v1089
        %v1172 = vpop.f32.mrf.mxu0
        %v1173 = vadd.f32 0.0, %v1172
        %1174 = vmatmul.f32.gmra.mxu0 %v1090
        %v1175 = vpop.f32.mrf.mxu0
        %v1176 = vadd.f32 0.0, %v1175
        %1177 = vmatmul.f32.gmra.mxu0 %v1091
        %v1178 = vpop.f32.mrf.mxu0
        %v1179 = vadd.f32 0.0, %v1178
        %1180 = vmatmul.f32.gmra.mxu0 %v1092
        %v1181 = vpop.f32.mrf.mxu0
        %v1182 = vadd.f32 0.0, %v1181
        %1183 = vmatmul.f32.gmra.mxu0 %v1093
        %v1184 = vpop.f32.mrf.mxu0
        %v1185 = vadd.f32 0.0, %v1184
        %1186 = vmatmul.f32.gmra.mxu0 %v1094
        %v1187 = vpop.f32.mrf.mxu0
        %v1188 = vadd.f32 0.0, %v1187
        %1189 = vmatmul.f32.gmra.mxu0 %v1095
        %v1190 = vpop.f32.mrf.mxu0
        %v1191 = vadd.f32 0.0, %v1190
        %1192 = vmatmul.f32.gmra.mxu0 %v1096
        %v1193 = vpop.f32.mrf.mxu0
        %v1194 = vadd.f32 0.0, %v1193
        %1195 = vmatmul.f32.gmra.mxu0 %v1097
        %v1196 = vpop.f32.mrf.mxu0
        %v1197 = vadd.f32 0.0, %v1196
        %1198 = vmatmul.f32.gmra.mxu0 %v1098
        %v1199 = vpop.f32.mrf.mxu0
        %v1200 = vadd.f32 0.0, %v1199
        %1201 = vmatmul.f32.gmra.mxu0 %v1099
        %v1202 = vpop.f32.mrf.mxu0
        %v1203 = vadd.f32 0.0, %v1202
        %1204 = vmatmul.f32.gmra.mxu0 %v1100
        %v1205 = vpop.f32.mrf.mxu0
        %v1206 = vadd.f32 0.0, %v1205
        %1207 = vmatmul.f32.gmra.mxu0 %v1101
        %v1208 = vpop.f32.mrf.mxu0
        %v1209 = vadd.f32 0.0, %v1208
        %1210 = vmatmul.f32.gmra.mxu0 %v1102
        %v1211 = vpop.f32.mrf.mxu0
        %v1212 = vadd.f32 0.0, %v1211
        %1213 = vmatmul.f32.gmra.mxu0 %v1103
        %v1214 = vpop.f32.mrf.mxu0
        %v1215 = vadd.f32 0.0, %v1214
        %1216 = vmatmul.f32.gmra.mxu0 %v1104
        %v1217 = vpop.f32.mrf.mxu0
        %v1218 = vadd.f32 0.0, %v1217
        %1219 = vmatmul.f32.gmra.mxu0 %v1105
        %v1220 = vpop.f32.mrf.mxu0
        %v1221 = vadd.f32 0.0, %v1220
        %1222 = vmatmul.f32.gmra.mxu0 %v1106
        %v1223 = vpop.f32.mrf.mxu0
        %v1224 = vadd.f32 0.0, %v1223
        %1225 = vmatmul.f32.gmra.mxu0 %v1107
        %v1226 = vpop.f32.mrf.mxu0
        %v1227 = vadd.f32 0.0, %v1226
        %1228 = vmatmul.f32.gmra.mxu0 %v1108
        %v1229 = vpop.f32.mrf.mxu0
        %v1230 = vadd.f32 0.0, %v1229
        %1231 = vmatmul.f32.gmra.mxu0 %v1109
        %v1232 = vpop.f32.mrf.mxu0
        %v1233 = vadd.f32 0.0, %v1232
        %1234 = vmatmul.f32.gmra.mxu0 %v1110
        %v1235 = vpop.f32.mrf.mxu0
        %v1236 = vadd.f32 0.0, %v1235
        %1237 = vmatmul.f32.gmra.mxu0 %v1111
        %v1238 = vpop.f32.mrf.mxu0
        %v1239 = vadd.f32 0.0, %v1238
        %1240 = vdwg.mxu0
        %v1241 = vadd.f32 %v1048, %v1146
        %v1242 = vadd.f32 %v1049, %v1149
        %v1243 = vadd.f32 %v1050, %v1152
        %v1244 = vadd.f32 %v1051, %v1155
        %v1245 = vadd.f32 %v1052, %v1158
        %v1246 = vadd.f32 %v1053, %v1161
        %v1247 = vadd.f32 %v1054, %v1164
        %v1248 = vadd.f32 %v1055, %v1167
        %v1249 = vadd.f32 %v1056, %v1170
        %v1250 = vadd.f32 %v1057, %v1173
        %v1251 = vadd.f32 %v1058, %v1176
        %v1252 = vadd.f32 %v1059, %v1179
        %v1253 = vadd.f32 %v1060, %v1182
        %v1254 = vadd.f32 %v1061, %v1185
        %v1255 = vadd.f32 %v1062, %v1188
        %v1256 = vadd.f32 %v1063, %v1191
        %v1257 = vadd.f32 %v1064, %v1194
        %v1258 = vadd.f32 %v1065, %v1197
        %v1259 = vadd.f32 %v1066, %v1200
        %v1260 = vadd.f32 %v1067, %v1203
        %v1261 = vadd.f32 %v1068, %v1206
        %v1262 = vadd.f32 %v1069, %v1209
        %v1263 = vadd.f32 %v1070, %v1212
        %v1264 = vadd.f32 %v1071, %v1215
        %v1265 = vadd.f32 %v1072, %v1218
        %v1266 = vadd.f32 %v1073, %v1221
        %v1267 = vadd.f32 %v1074, %v1224
        %v1268 = vadd.f32 %v1075, %v1227
        %v1269 = vadd.f32 %v1076, %v1230
        %v1270 = vadd.f32 %v1077, %v1233
        %v1271 = vadd.f32 %v1078, %v1236
        %v1272 = vadd.f32 %v1079, %v1239
        %v1273 = vld [vmem:[%s256 + $0x2] sm:$0xff]
        %v1274 = vld [vmem:[%s256 + $0xa] sm:$0xff]
        %v1275 = vld [vmem:[%s256 + $0x1a] sm:$0xff]
        %v1276 = vld [vmem:[%s256 + $0x22] sm:$0xff]
        %v1277 = vld [vmem:[%s256 + $0x32] sm:$0xff]
        %v1278 = vld [vmem:[%s256 + $0x3a] sm:$0xff]
        %v1279 = vld [vmem:[%s256 + $0x4a] sm:$0xff]
        %v1280 = vld [vmem:[%s256 + $0x52] sm:$0xff]
        %v1281 = vld [vmem:[%s256 + $0x62] sm:$0xff]
        %v1282 = vld [vmem:[%s256 + $0x6a] sm:$0xff]
        %v1283 = vld [vmem:[%s256 + $0x7a] sm:$0xff]
        %v1284 = vld [vmem:[%s256 + $0x82] sm:$0xff]
        %v1285 = vld [vmem:[%s256 + $0x92] sm:$0xff]
        %v1286 = vld [vmem:[%s256 + $0x9a] sm:$0xff]
        %v1287 = vld [vmem:[%s256 + $0xaa] sm:$0xff]
        %v1288 = vld [vmem:[%s256 + $0xb2] sm:$0xff]
        %v1289 = vld [vmem:[%s256 + $0xc2] sm:$0xff]
        %v1290 = vld [vmem:[%s256 + $0xca] sm:$0xff]
        %v1291 = vld [vmem:[%s256 + $0xda] sm:$0xff]
        %v1292 = vld [vmem:[%s256 + $0xe2] sm:$0xff]
        %v1293 = vld [vmem:[%s256 + $0xf2] sm:$0xff]
        %v1294 = vld [vmem:[%s256 + $0xfa] sm:$0xff]
        %v1295 = vld [vmem:[%s256 + $0x10a] sm:$0xff]
        %v1296 = vld [vmem:[%s256 + $0x112] sm:$0xff]
        %v1297 = vld [vmem:[%s256 + $0x122] sm:$0xff]
        %v1298 = vld [vmem:[%s256 + $0x12a] sm:$0xff]
        %v1299 = vld [vmem:[%s256 + $0x13a] sm:$0xff]
        %v1300 = vld [vmem:[%s256 + $0x142] sm:$0xff]
        %v1301 = vld [vmem:[%s256 + $0x152] sm:$0xff]
        %v1302 = vld [vmem:[%s256 + $0x15a] sm:$0xff]
        %v1303 = vld [vmem:[%s256 + $0x16a] sm:$0xff]
        %v1304 = vld [vmem:[%s256 + $0x172] sm:$0xff]
        %v1305 = vld [vmem:[#allocation7 + $0x280] sm:$0xff]
        %v1306 = vld [vmem:[#allocation7 + $0x288] sm:$0xff]
        %v1307 = vld [vmem:[#allocation7 + $0x290] sm:$0xff]
        %v1308 = vld [vmem:[#allocation7 + $0x298] sm:$0xff]
        %v1309 = vld [vmem:[#allocation7 + $0x2a0] sm:$0xff]
        %v1310 = vld [vmem:[#allocation7 + $0x2a8] sm:$0xff]
        %v1311 = vld [vmem:[#allocation7 + $0x2b0] sm:$0xff]
        %v1312 = vld [vmem:[#allocation7 + $0x2b8] sm:$0xff]
        %v1313 = vld [vmem:[#allocation7 + $0x2c0] sm:$0xff]
        %v1314 = vld [vmem:[#allocation7 + $0x2c8] sm:$0xff]
        %v1315 = vld [vmem:[#allocation7 + $0x2d0] sm:$0xff]
        %v1316 = vld [vmem:[#allocation7 + $0x2d8] sm:$0xff]
        %v1317 = vld [vmem:[#allocation7 + $0x2e0] sm:$0xff]
        %v1318 = vld [vmem:[#allocation7 + $0x2e8] sm:$0xff]
        %v1319 = vld [vmem:[#allocation7 + $0x2f0] sm:$0xff]
        %v1320 = vld [vmem:[#allocation7 + $0x2f8] sm:$0xff]
        %1321 = vmatpush.msra.mxu0 %v1320
        %1322 = vmatpush.msra.mxu0 %v1319
        %1323 = vmatpush.msra.mxu0 %v1318
        %1324 = vmatpush.msra.mxu0 %v1317
        %1325 = vmatpush.msra.mxu0 %v1316
        %1326 = vmatpush.msra.mxu0 %v1315
        %1327 = vmatpush.msra.mxu0 %v1314
        %1328 = vmatpush.msra.mxu0 %v1313
        %1329 = vmatpush.msra.mxu0 %v1312
        %1330 = vmatpush.msra.mxu0 %v1311
        %1331 = vmatpush.msra.mxu0 %v1310
        %1332 = vmatpush.msra.mxu0 %v1309
        %1333 = vmatpush.msra.mxu0 %v1308
        %1334 = vmatpush.msra.mxu0 %v1307
        %1335 = vmatpush.msra.mxu0 %v1306
        %1336 = vmatpush.msra.mxu0 %v1305
        %1337 = vmatmul.f32.gmra.mxu0 %v1273
        %v1338 = vpop.f32.mrf.mxu0
        %v1339 = vadd.f32 0.0, %v1338
        %1340 = vmatmul.f32.gmra.mxu0 %v1274
        %v1341 = vpop.f32.mrf.mxu0
        %v1342 = vadd.f32 0.0, %v1341
        %1343 = vmatmul.f32.gmra.mxu0 %v1275
        %v1344 = vpop.f32.mrf.mxu0
        %v1345 = vadd.f32 0.0, %v1344
        %1346 = vmatmul.f32.gmra.mxu0 %v1276
        %v1347 = vpop.f32.mrf.mxu0
        %v1348 = vadd.f32 0.0, %v1347
        %1349 = vmatmul.f32.gmra.mxu0 %v1277
        %v1350 = vpop.f32.mrf.mxu0
        %v1351 = vadd.f32 0.0, %v1350
        %1352 = vmatmul.f32.gmra.mxu0 %v1278
        %v1353 = vpop.f32.mrf.mxu0
        %v1354 = vadd.f32 0.0, %v1353
        %1355 = vmatmul.f32.gmra.mxu0 %v1279
        %v1356 = vpop.f32.mrf.mxu0
        %v1357 = vadd.f32 0.0, %v1356
        %1358 = vmatmul.f32.gmra.mxu0 %v1280
        %v1359 = vpop.f32.mrf.mxu0
        %v1360 = vadd.f32 0.0, %v1359
        %1361 = vmatmul.f32.gmra.mxu0 %v1281
        %v1362 = vpop.f32.mrf.mxu0
        %v1363 = vadd.f32 0.0, %v1362
        %1364 = vmatmul.f32.gmra.mxu0 %v1282
        %v1365 = vpop.f32.mrf.mxu0
        %v1366 = vadd.f32 0.0, %v1365
        %1367 = vmatmul.f32.gmra.mxu0 %v1283
        %v1368 = vpop.f32.mrf.mxu0
        %v1369 = vadd.f32 0.0, %v1368
        %1370 = vmatmul.f32.gmra.mxu0 %v1284
        %v1371 = vpop.f32.mrf.mxu0
        %v1372 = vadd.f32 0.0, %v1371
        %1373 = vmatmul.f32.gmra.mxu0 %v1285
        %v1374 = vpop.f32.mrf.mxu0
        %v1375 = vadd.f32 0.0, %v1374
        %1376 = vmatmul.f32.gmra.mxu0 %v1286
        %v1377 = vpop.f32.mrf.mxu0
        %v1378 = vadd.f32 0.0, %v1377
        %1379 = vmatmul.f32.gmra.mxu0 %v1287
        %v1380 = vpop.f32.mrf.mxu0
        %v1381 = vadd.f32 0.0, %v1380
        %1382 = vmatmul.f32.gmra.mxu0 %v1288
        %v1383 = vpop.f32.mrf.mxu0
        %v1384 = vadd.f32 0.0, %v1383
        %1385 = vmatmul.f32.gmra.mxu0 %v1289
        %v1386 = vpop.f32.mrf.mxu0
        %v1387 = vadd.f32 0.0, %v1386
        %1388 = vmatmul.f32.gmra.mxu0 %v1290
        %v1389 = vpop.f32.mrf.mxu0
        %v1390 = vadd.f32 0.0, %v1389
        %1391 = vmatmul.f32.gmra.mxu0 %v1291
        %v1392 = vpop.f32.mrf.mxu0
        %v1393 = vadd.f32 0.0, %v1392
        %1394 = vmatmul.f32.gmra.mxu0 %v1292
        %v1395 = vpop.f32.mrf.mxu0
        %v1396 = vadd.f32 0.0, %v1395
        %1397 = vmatmul.f32.gmra.mxu0 %v1293
        %v1398 = vpop.f32.mrf.mxu0
        %v1399 = vadd.f32 0.0, %v1398
        %1400 = vmatmul.f32.gmra.mxu0 %v1294
        %v1401 = vpop.f32.mrf.mxu0
        %v1402 = vadd.f32 0.0, %v1401
        %1403 = vmatmul.f32.gmra.mxu0 %v1295
        %v1404 = vpop.f32.mrf.mxu0
        %v1405 = vadd.f32 0.0, %v1404
        %1406 = vmatmul.f32.gmra.mxu0 %v1296
        %v1407 = vpop.f32.mrf.mxu0
        %v1408 = vadd.f32 0.0, %v1407
        %1409 = vmatmul.f32.gmra.mxu0 %v1297
        %v1410 = vpop.f32.mrf.mxu0
        %v1411 = vadd.f32 0.0, %v1410
        %1412 = vmatmul.f32.gmra.mxu0 %v1298
        %v1413 = vpop.f32.mrf.mxu0
        %v1414 = vadd.f32 0.0, %v1413
        %1415 = vmatmul.f32.gmra.mxu0 %v1299
        %v1416 = vpop.f32.mrf.mxu0
        %v1417 = vadd.f32 0.0, %v1416
        %1418 = vmatmul.f32.gmra.mxu0 %v1300
        %v1419 = vpop.f32.mrf.mxu0
        %v1420 = vadd.f32 0.0, %v1419
        %1421 = vmatmul.f32.gmra.mxu0 %v1301
        %v1422 = vpop.f32.mrf.mxu0
        %v1423 = vadd.f32 0.0, %v1422
        %1424 = vmatmul.f32.gmra.mxu0 %v1302
        %v1425 = vpop.f32.mrf.mxu0
        %v1426 = vadd.f32 0.0, %v1425
        %1427 = vmatmul.f32.gmra.mxu0 %v1303
        %v1428 = vpop.f32.mrf.mxu0
        %v1429 = vadd.f32 0.0, %v1428
        %1430 = vmatmul.f32.gmra.mxu0 %v1304
        %v1431 = vpop.f32.mrf.mxu0
        %v1432 = vadd.f32 0.0, %v1431
        %1433 = vdwg.mxu0
        %v1434 = vadd.f32 %v1241, %v1339
        %v1435 = vadd.f32 %v1242, %v1342
        %v1436 = vadd.f32 %v1243, %v1345
        %v1437 = vadd.f32 %v1244, %v1348
        %v1438 = vadd.f32 %v1245, %v1351
        %v1439 = vadd.f32 %v1246, %v1354
        %v1440 = vadd.f32 %v1247, %v1357
        %v1441 = vadd.f32 %v1248, %v1360
        %v1442 = vadd.f32 %v1249, %v1363
        %v1443 = vadd.f32 %v1250, %v1366
        %v1444 = vadd.f32 %v1251, %v1369
        %v1445 = vadd.f32 %v1252, %v1372
        %v1446 = vadd.f32 %v1253, %v1375
        %v1447 = vadd.f32 %v1254, %v1378
        %v1448 = vadd.f32 %v1255, %v1381
        %v1449 = vadd.f32 %v1256, %v1384
        %v1450 = vadd.f32 %v1257, %v1387
        %v1451 = vadd.f32 %v1258, %v1390
        %v1452 = vadd.f32 %v1259, %v1393
        %v1453 = vadd.f32 %v1260, %v1396
        %v1454 = vadd.f32 %v1261, %v1399
        %v1455 = vadd.f32 %v1262, %v1402
        %v1456 = vadd.f32 %v1263, %v1405
        %v1457 = vadd.f32 %v1264, %v1408
        %v1458 = vadd.f32 %v1265, %v1411
        %v1459 = vadd.f32 %v1266, %v1414
        %v1460 = vadd.f32 %v1267, %v1417
        %v1461 = vadd.f32 %v1268, %v1420
        %v1462 = vadd.f32 %v1269, %v1423
        %v1463 = vadd.f32 %v1270, %v1426
        %v1464 = vadd.f32 %v1271, %v1429
        %v1465 = vadd.f32 %v1272, %v1432
        %s1466 = scalar_lea.vmem [#allocation2], 48
        %v1467 = vld [vmem:[%s1466] sm:$0xff]
        %v1468 = vld [vmem:[%s1466 + $0x8] sm:$0xff]
        %v1469 = vld [vmem:[%s1466 + $0x18] sm:$0xff]
        %v1470 = vld [vmem:[%s1466 + $0x20] sm:$0xff]
        %v1471 = vld [vmem:[%s1466 + $0x30] sm:$0xff]
        %v1472 = vld [vmem:[%s1466 + $0x38] sm:$0xff]
        %v1473 = vld [vmem:[%s1466 + $0x48] sm:$0xff]
        %v1474 = vld [vmem:[%s1466 + $0x50] sm:$0xff]
        %v1475 = vld [vmem:[%s1466 + $0x60] sm:$0xff]
        %v1476 = vld [vmem:[%s1466 + $0x68] sm:$0xff]
        %v1477 = vld [vmem:[%s1466 + $0x78] sm:$0xff]
        %v1478 = vld [vmem:[%s1466 + $0x80] sm:$0xff]
        %v1479 = vld [vmem:[%s1466 + $0x90] sm:$0xff]
        %v1480 = vld [vmem:[%s1466 + $0x98] sm:$0xff]
        %v1481 = vld [vmem:[%s1466 + $0xa8] sm:$0xff]
        %v1482 = vld [vmem:[%s1466 + $0xb0] sm:$0xff]
        %v1483 = vld [vmem:[%s1466 + $0xc0] sm:$0xff]
        %v1484 = vld [vmem:[%s1466 + $0xc8] sm:$0xff]
        %v1485 = vld [vmem:[%s1466 + $0xd8] sm:$0xff]
        %v1486 = vld [vmem:[%s1466 + $0xe0] sm:$0xff]
        %v1487 = vld [vmem:[%s1466 + $0xf0] sm:$0xff]
        %v1488 = vld [vmem:[%s1466 + $0xf8] sm:$0xff]
        %v1489 = vld [vmem:[%s1466 + $0x108] sm:$0xff]
        %v1490 = vld [vmem:[%s1466 + $0x110] sm:$0xff]
        %v1491 = vld [vmem:[%s1466 + $0x120] sm:$0xff]
        %v1492 = vld [vmem:[%s1466 + $0x128] sm:$0xff]
        %v1493 = vld [vmem:[%s1466 + $0x138] sm:$0xff]
        %v1494 = vld [vmem:[%s1466 + $0x140] sm:$0xff]
        %v1495 = vld [vmem:[%s1466 + $0x150] sm:$0xff]
        %v1496 = vld [vmem:[%s1466 + $0x158] sm:$0xff]
        %v1497 = vld [vmem:[%s1466 + $0x168] sm:$0xff]
        %v1498 = vld [vmem:[%s1466 + $0x170] sm:$0xff]
        %v1499 = vld [vmem:[#allocation7 + $0x300] sm:$0xff]
        %v1500 = vld [vmem:[#allocation7 + $0x308] sm:$0xff]
        %v1501 = vld [vmem:[#allocation7 + $0x310] sm:$0xff]
        %v1502 = vld [vmem:[#allocation7 + $0x318] sm:$0xff]
        %v1503 = vld [vmem:[#allocation7 + $0x320] sm:$0xff]
        %v1504 = vld [vmem:[#allocation7 + $0x328] sm:$0xff]
        %v1505 = vld [vmem:[#allocation7 + $0x330] sm:$0xff]
        %v1506 = vld [vmem:[#allocation7 + $0x338] sm:$0xff]
        %v1507 = vld [vmem:[#allocation7 + $0x340] sm:$0xff]
        %v1508 = vld [vmem:[#allocation7 + $0x348] sm:$0xff]
        %v1509 = vld [vmem:[#allocation7 + $0x350] sm:$0xff]
        %v1510 = vld [vmem:[#allocation7 + $0x358] sm:$0xff]
        %v1511 = vld [vmem:[#allocation7 + $0x360] sm:$0xff]
        %v1512 = vld [vmem:[#allocation7 + $0x368] sm:$0xff]
        %v1513 = vld [vmem:[#allocation7 + $0x370] sm:$0xff]
        %v1514 = vld [vmem:[#allocation7 + $0x378] sm:$0xff]
        %1515 = vmatpush.msra.mxu0 %v1514
        %1516 = vmatpush.msra.mxu0 %v1513
        %1517 = vmatpush.msra.mxu0 %v1512
        %1518 = vmatpush.msra.mxu0 %v1511
        %1519 = vmatpush.msra.mxu0 %v1510
        %1520 = vmatpush.msra.mxu0 %v1509
        %1521 = vmatpush.msra.mxu0 %v1508
        %1522 = vmatpush.msra.mxu0 %v1507
        %1523 = vmatpush.msra.mxu0 %v1506
        %1524 = vmatpush.msra.mxu0 %v1505
        %1525 = vmatpush.msra.mxu0 %v1504
        %1526 = vmatpush.msra.mxu0 %v1503
        %1527 = vmatpush.msra.mxu0 %v1502
        %1528 = vmatpush.msra.mxu0 %v1501
        %1529 = vmatpush.msra.mxu0 %v1500
        %1530 = vmatpush.msra.mxu0 %v1499
        %1531 = vmatmul.f32.gmra.mxu0 %v1467
        %v1532 = vpop.f32.mrf.mxu0
        %v1533 = vadd.f32 0.0, %v1532
        %1534 = vmatmul.f32.gmra.mxu0 %v1468
        %v1535 = vpop.f32.mrf.mxu0
        %v1536 = vadd.f32 0.0, %v1535
        %1537 = vmatmul.f32.gmra.mxu0 %v1469
        %v1538 = vpop.f32.mrf.mxu0
        %v1539 = vadd.f32 0.0, %v1538
        %1540 = vmatmul.f32.gmra.mxu0 %v1470
        %v1541 = vpop.f32.mrf.mxu0
        %v1542 = vadd.f32 0.0, %v1541
        %1543 = vmatmul.f32.gmra.mxu0 %v1471
        %v1544 = vpop.f32.mrf.mxu0
        %v1545 = vadd.f32 0.0, %v1544
        %1546 = vmatmul.f32.gmra.mxu0 %v1472
        %v1547 = vpop.f32.mrf.mxu0
        %v1548 = vadd.f32 0.0, %v1547
        %1549 = vmatmul.f32.gmra.mxu0 %v1473
        %v1550 = vpop.f32.mrf.mxu0
        %v1551 = vadd.f32 0.0, %v1550
        %1552 = vmatmul.f32.gmra.mxu0 %v1474
        %v1553 = vpop.f32.mrf.mxu0
        %v1554 = vadd.f32 0.0, %v1553
        %1555 = vmatmul.f32.gmra.mxu0 %v1475
        %v1556 = vpop.f32.mrf.mxu0
        %v1557 = vadd.f32 0.0, %v1556
        %1558 = vmatmul.f32.gmra.mxu0 %v1476
        %v1559 = vpop.f32.mrf.mxu0
        %v1560 = vadd.f32 0.0, %v1559
        %1561 = vmatmul.f32.gmra.mxu0 %v1477
        %v1562 = vpop.f32.mrf.mxu0
        %v1563 = vadd.f32 0.0, %v1562
        %1564 = vmatmul.f32.gmra.mxu0 %v1478
        %v1565 = vpop.f32.mrf.mxu0
        %v1566 = vadd.f32 0.0, %v1565
        %1567 = vmatmul.f32.gmra.mxu0 %v1479
        %v1568 = vpop.f32.mrf.mxu0
        %v1569 = vadd.f32 0.0, %v1568
        %1570 = vmatmul.f32.gmra.mxu0 %v1480
        %v1571 = vpop.f32.mrf.mxu0
        %v1572 = vadd.f32 0.0, %v1571
        %1573 = vmatmul.f32.gmra.mxu0 %v1481
        %v1574 = vpop.f32.mrf.mxu0
        %v1575 = vadd.f32 0.0, %v1574
        %1576 = vmatmul.f32.gmra.mxu0 %v1482
        %v1577 = vpop.f32.mrf.mxu0
        %v1578 = vadd.f32 0.0, %v1577
        %1579 = vmatmul.f32.gmra.mxu0 %v1483
        %v1580 = vpop.f32.mrf.mxu0
        %v1581 = vadd.f32 0.0, %v1580
        %1582 = vmatmul.f32.gmra.mxu0 %v1484
        %v1583 = vpop.f32.mrf.mxu0
        %v1584 = vadd.f32 0.0, %v1583
        %1585 = vmatmul.f32.gmra.mxu0 %v1485
        %v1586 = vpop.f32.mrf.mxu0
        %v1587 = vadd.f32 0.0, %v1586
        %1588 = vmatmul.f32.gmra.mxu0 %v1486
        %v1589 = vpop.f32.mrf.mxu0
        %v1590 = vadd.f32 0.0, %v1589
        %1591 = vmatmul.f32.gmra.mxu0 %v1487
        %v1592 = vpop.f32.mrf.mxu0
        %v1593 = vadd.f32 0.0, %v1592
        %1594 = vmatmul.f32.gmra.mxu0 %v1488
        %v1595 = vpop.f32.mrf.mxu0
        %v1596 = vadd.f32 0.0, %v1595
        %1597 = vmatmul.f32.gmra.mxu0 %v1489
        %v1598 = vpop.f32.mrf.mxu0
        %v1599 = vadd.f32 0.0, %v1598
        %1600 = vmatmul.f32.gmra.mxu0 %v1490
        %v1601 = vpop.f32.mrf.mxu0
        %v1602 = vadd.f32 0.0, %v1601
        %1603 = vmatmul.f32.gmra.mxu0 %v1491
        %v1604 = vpop.f32.mrf.mxu0
        %v1605 = vadd.f32 0.0, %v1604
        %1606 = vmatmul.f32.gmra.mxu0 %v1492
        %v1607 = vpop.f32.mrf.mxu0
        %v1608 = vadd.f32 0.0, %v1607
        %1609 = vmatmul.f32.gmra.mxu0 %v1493
        %v1610 = vpop.f32.mrf.mxu0
        %v1611 = vadd.f32 0.0, %v1610
        %1612 = vmatmul.f32.gmra.mxu0 %v1494
        %v1613 = vpop.f32.mrf.mxu0
        %v1614 = vadd.f32 0.0, %v1613
        %1615 = vmatmul.f32.gmra.mxu0 %v1495
        %v1616 = vpop.f32.mrf.mxu0
        %v1617 = vadd.f32 0.0, %v1616
        %1618 = vmatmul.f32.gmra.mxu0 %v1496
        %v1619 = vpop.f32.mrf.mxu0
        %v1620 = vadd.f32 0.0, %v1619
        %1621 = vmatmul.f32.gmra.mxu0 %v1497
        %v1622 = vpop.f32.mrf.mxu0
        %v1623 = vadd.f32 0.0, %v1622
        %1624 = vmatmul.f32.gmra.mxu0 %v1498
        %v1625 = vpop.f32.mrf.mxu0
        %v1626 = vadd.f32 0.0, %v1625
        %1627 = vdwg.mxu0
        %v1628 = vadd.f32 %v1434, %v1533
        %v1629 = vadd.f32 %v1435, %v1536
        %v1630 = vadd.f32 %v1436, %v1539
        %v1631 = vadd.f32 %v1437, %v1542
        %v1632 = vadd.f32 %v1438, %v1545
        %v1633 = vadd.f32 %v1439, %v1548
        %v1634 = vadd.f32 %v1440, %v1551
        %v1635 = vadd.f32 %v1441, %v1554
        %v1636 = vadd.f32 %v1442, %v1557
        %v1637 = vadd.f32 %v1443, %v1560
        %v1638 = vadd.f32 %v1444, %v1563
        %v1639 = vadd.f32 %v1445, %v1566
        %v1640 = vadd.f32 %v1446, %v1569
        %v1641 = vadd.f32 %v1447, %v1572
        %v1642 = vadd.f32 %v1448, %v1575
        %v1643 = vadd.f32 %v1449, %v1578
        %v1644 = vadd.f32 %v1450, %v1581
        %v1645 = vadd.f32 %v1451, %v1584
        %v1646 = vadd.f32 %v1452, %v1587
        %v1647 = vadd.f32 %v1453, %v1590
        %v1648 = vadd.f32 %v1454, %v1593
        %v1649 = vadd.f32 %v1455, %v1596
        %v1650 = vadd.f32 %v1456, %v1599
        %v1651 = vadd.f32 %v1457, %v1602
        %v1652 = vadd.f32 %v1458, %v1605
        %v1653 = vadd.f32 %v1459, %v1608
        %v1654 = vadd.f32 %v1460, %v1611
        %v1655 = vadd.f32 %v1461, %v1614
        %v1656 = vadd.f32 %v1462, %v1617
        %v1657 = vadd.f32 %v1463, %v1620
        %v1658 = vadd.f32 %v1464, %v1623
        %v1659 = vadd.f32 %v1465, %v1626
        %v1660 = vld [vmem:[%s1466 + $0x1] sm:$0xff]
        %v1661 = vld [vmem:[%s1466 + $0x9] sm:$0xff]
        %v1662 = vld [vmem:[%s1466 + $0x19] sm:$0xff]
        %v1663 = vld [vmem:[%s1466 + $0x21] sm:$0xff]
        %v1664 = vld [vmem:[%s1466 + $0x31] sm:$0xff]
        %v1665 = vld [vmem:[%s1466 + $0x39] sm:$0xff]
        %v1666 = vld [vmem:[%s1466 + $0x49] sm:$0xff]
        %v1667 = vld [vmem:[%s1466 + $0x51] sm:$0xff]
        %v1668 = vld [vmem:[%s1466 + $0x61] sm:$0xff]
        %v1669 = vld [vmem:[%s1466 + $0x69] sm:$0xff]
        %v1670 = vld [vmem:[%s1466 + $0x79] sm:$0xff]
        %v1671 = vld [vmem:[%s1466 + $0x81] sm:$0xff]
        %v1672 = vld [vmem:[%s1466 + $0x91] sm:$0xff]
        %v1673 = vld [vmem:[%s1466 + $0x99] sm:$0xff]
        %v1674 = vld [vmem:[%s1466 + $0xa9] sm:$0xff]
        %v1675 = vld [vmem:[%s1466 + $0xb1] sm:$0xff]
        %v1676 = vld [vmem:[%s1466 + $0xc1] sm:$0xff]
        %v1677 = vld [vmem:[%s1466 + $0xc9] sm:$0xff]
        %v1678 = vld [vmem:[%s1466 + $0xd9] sm:$0xff]
        %v1679 = vld [vmem:[%s1466 + $0xe1] sm:$0xff]
        %v1680 = vld [vmem:[%s1466 + $0xf1] sm:$0xff]
        %v1681 = vld [vmem:[%s1466 + $0xf9] sm:$0xff]
        %v1682 = vld [vmem:[%s1466 + $0x109] sm:$0xff]
        %v1683 = vld [vmem:[%s1466 + $0x111] sm:$0xff]
        %v1684 = vld [vmem:[%s1466 + $0x121] sm:$0xff]
        %v1685 = vld [vmem:[%s1466 + $0x129] sm:$0xff]
        %v1686 = vld [vmem:[%s1466 + $0x139] sm:$0xff]
        %v1687 = vld [vmem:[%s1466 + $0x141] sm:$0xff]
        %v1688 = vld [vmem:[%s1466 + $0x151] sm:$0xff]
        %v1689 = vld [vmem:[%s1466 + $0x159] sm:$0xff]
        %v1690 = vld [vmem:[%s1466 + $0x169] sm:$0xff]
        %v1691 = vld [vmem:[%s1466 + $0x171] sm:$0xff]
        %v1692 = vld [vmem:[#allocation7 + $0x380] sm:$0xff]
        %v1693 = vld [vmem:[#allocation7 + $0x388] sm:$0xff]
        %v1694 = vld [vmem:[#allocation7 + $0x390] sm:$0xff]
        %v1695 = vld [vmem:[#allocation7 + $0x398] sm:$0xff]
        %v1696 = vld [vmem:[#allocation7 + $0x3a0] sm:$0xff]
        %v1697 = vld [vmem:[#allocation7 + $0x3a8] sm:$0xff]
        %v1698 = vld [vmem:[#allocation7 + $0x3b0] sm:$0xff]
        %v1699 = vld [vmem:[#allocation7 + $0x3b8] sm:$0xff]
        %v1700 = vld [vmem:[#allocation7 + $0x3c0] sm:$0xff]
        %v1701 = vld [vmem:[#allocation7 + $0x3c8] sm:$0xff]
        %v1702 = vld [vmem:[#allocation7 + $0x3d0] sm:$0xff]
        %v1703 = vld [vmem:[#allocation7 + $0x3d8] sm:$0xff]
        %v1704 = vld [vmem:[#allocation7 + $0x3e0] sm:$0xff]
        %v1705 = vld [vmem:[#allocation7 + $0x3e8] sm:$0xff]
        %v1706 = vld [vmem:[#allocation7 + $0x3f0] sm:$0xff]
        %v1707 = vld [vmem:[#allocation7 + $0x3f8] sm:$0xff]
        %1708 = vmatpush.msra.mxu0 %v1707
        %1709 = vmatpush.msra.mxu0 %v1706
        %1710 = vmatpush.msra.mxu0 %v1705
        %1711 = vmatpush.msra.mxu0 %v1704
        %1712 = vmatpush.msra.mxu0 %v1703
        %1713 = vmatpush.msra.mxu0 %v1702
        %1714 = vmatpush.msra.mxu0 %v1701
        %1715 = vmatpush.msra.mxu0 %v1700
        %1716 = vmatpush.msra.mxu0 %v1699
        %1717 = vmatpush.msra.mxu0 %v1698
        %1718 = vmatpush.msra.mxu0 %v1697
        %1719 = vmatpush.msra.mxu0 %v1696
        %1720 = vmatpush.msra.mxu0 %v1695
        %1721 = vmatpush.msra.mxu0 %v1694
        %1722 = vmatpush.msra.mxu0 %v1693
        %1723 = vmatpush.msra.mxu0 %v1692
        %1724 = vmatmul.f32.gmra.mxu0 %v1660
        %v1725 = vpop.f32.mrf.mxu0
        %v1726 = vadd.f32 0.0, %v1725
        %1727 = vmatmul.f32.gmra.mxu0 %v1661
        %v1728 = vpop.f32.mrf.mxu0
        %v1729 = vadd.f32 0.0, %v1728
        %1730 = vmatmul.f32.gmra.mxu0 %v1662
        %v1731 = vpop.f32.mrf.mxu0
        %v1732 = vadd.f32 0.0, %v1731
        %1733 = vmatmul.f32.gmra.mxu0 %v1663
        %v1734 = vpop.f32.mrf.mxu0
        %v1735 = vadd.f32 0.0, %v1734
        %1736 = vmatmul.f32.gmra.mxu0 %v1664
        %v1737 = vpop.f32.mrf.mxu0
        %v1738 = vadd.f32 0.0, %v1737
        %1739 = vmatmul.f32.gmra.mxu0 %v1665
        %v1740 = vpop.f32.mrf.mxu0
        %v1741 = vadd.f32 0.0, %v1740
        %1742 = vmatmul.f32.gmra.mxu0 %v1666
        %v1743 = vpop.f32.mrf.mxu0
        %v1744 = vadd.f32 0.0, %v1743
        %1745 = vmatmul.f32.gmra.mxu0 %v1667
        %v1746 = vpop.f32.mrf.mxu0
        %v1747 = vadd.f32 0.0, %v1746
        %1748 = vmatmul.f32.gmra.mxu0 %v1668
        %v1749 = vpop.f32.mrf.mxu0
        %v1750 = vadd.f32 0.0, %v1749
        %1751 = vmatmul.f32.gmra.mxu0 %v1669
        %v1752 = vpop.f32.mrf.mxu0
        %v1753 = vadd.f32 0.0, %v1752
        %1754 = vmatmul.f32.gmra.mxu0 %v1670
        %v1755 = vpop.f32.mrf.mxu0
        %v1756 = vadd.f32 0.0, %v1755
        %1757 = vmatmul.f32.gmra.mxu0 %v1671
        %v1758 = vpop.f32.mrf.mxu0
        %v1759 = vadd.f32 0.0, %v1758
        %1760 = vmatmul.f32.gmra.mxu0 %v1672
        %v1761 = vpop.f32.mrf.mxu0
        %v1762 = vadd.f32 0.0, %v1761
        %1763 = vmatmul.f32.gmra.mxu0 %v1673
        %v1764 = vpop.f32.mrf.mxu0
        %v1765 = vadd.f32 0.0, %v1764
        %1766 = vmatmul.f32.gmra.mxu0 %v1674
        %v1767 = vpop.f32.mrf.mxu0
        %v1768 = vadd.f32 0.0, %v1767
        %1769 = vmatmul.f32.gmra.mxu0 %v1675
        %v1770 = vpop.f32.mrf.mxu0
        %v1771 = vadd.f32 0.0, %v1770
        %1772 = vmatmul.f32.gmra.mxu0 %v1676
        %v1773 = vpop.f32.mrf.mxu0
        %v1774 = vadd.f32 0.0, %v1773
        %1775 = vmatmul.f32.gmra.mxu0 %v1677
        %v1776 = vpop.f32.mrf.mxu0
        %v1777 = vadd.f32 0.0, %v1776
        %1778 = vmatmul.f32.gmra.mxu0 %v1678
        %v1779 = vpop.f32.mrf.mxu0
        %v1780 = vadd.f32 0.0, %v1779
        %1781 = vmatmul.f32.gmra.mxu0 %v1679
        %v1782 = vpop.f32.mrf.mxu0
        %v1783 = vadd.f32 0.0, %v1782
        %1784 = vmatmul.f32.gmra.mxu0 %v1680
        %v1785 = vpop.f32.mrf.mxu0
        %v1786 = vadd.f32 0.0, %v1785
        %1787 = vmatmul.f32.gmra.mxu0 %v1681
        %v1788 = vpop.f32.mrf.mxu0
        %v1789 = vadd.f32 0.0, %v1788
        %1790 = vmatmul.f32.gmra.mxu0 %v1682
        %v1791 = vpop.f32.mrf.mxu0
        %v1792 = vadd.f32 0.0, %v1791
        %1793 = vmatmul.f32.gmra.mxu0 %v1683
        %v1794 = vpop.f32.mrf.mxu0
        %v1795 = vadd.f32 0.0, %v1794
        %1796 = vmatmul.f32.gmra.mxu0 %v1684
        %v1797 = vpop.f32.mrf.mxu0
        %v1798 = vadd.f32 0.0, %v1797
        %1799 = vmatmul.f32.gmra.mxu0 %v1685
        %v1800 = vpop.f32.mrf.mxu0
        %v1801 = vadd.f32 0.0, %v1800
        %1802 = vmatmul.f32.gmra.mxu0 %v1686
        %v1803 = vpop.f32.mrf.mxu0
        %v1804 = vadd.f32 0.0, %v1803
        %1805 = vmatmul.f32.gmra.mxu0 %v1687
        %v1806 = vpop.f32.mrf.mxu0
        %v1807 = vadd.f32 0.0, %v1806
        %1808 = vmatmul.f32.gmra.mxu0 %v1688
        %v1809 = vpop.f32.mrf.mxu0
        %v1810 = vadd.f32 0.0, %v1809
        %1811 = vmatmul.f32.gmra.mxu0 %v1689
        %v1812 = vpop.f32.mrf.mxu0
        %v1813 = vadd.f32 0.0, %v1812
        %1814 = vmatmul.f32.gmra.mxu0 %v1690
        %v1815 = vpop.f32.mrf.mxu0
        %v1816 = vadd.f32 0.0, %v1815
        %1817 = vmatmul.f32.gmra.mxu0 %v1691
        %v1818 = vpop.f32.mrf.mxu0
        %v1819 = vadd.f32 0.0, %v1818
        %1820 = vdwg.mxu0
        %v1821 = vadd.f32 %v1628, %v1726
        %v1822 = vadd.f32 %v1629, %v1729
        %v1823 = vadd.f32 %v1630, %v1732
        %v1824 = vadd.f32 %v1631, %v1735
        %v1825 = vadd.f32 %v1632, %v1738
        %v1826 = vadd.f32 %v1633, %v1741
        %v1827 = vadd.f32 %v1634, %v1744
        %v1828 = vadd.f32 %v1635, %v1747
        %v1829 = vadd.f32 %v1636, %v1750
        %v1830 = vadd.f32 %v1637, %v1753
        %v1831 = vadd.f32 %v1638, %v1756
        %v1832 = vadd.f32 %v1639, %v1759
        %v1833 = vadd.f32 %v1640, %v1762
        %v1834 = vadd.f32 %v1641, %v1765
        %v1835 = vadd.f32 %v1642, %v1768
        %v1836 = vadd.f32 %v1643, %v1771
        %v1837 = vadd.f32 %v1644, %v1774
        %v1838 = vadd.f32 %v1645, %v1777
        %v1839 = vadd.f32 %v1646, %v1780
        %v1840 = vadd.f32 %v1647, %v1783
        %v1841 = vadd.f32 %v1648, %v1786
        %v1842 = vadd.f32 %v1649, %v1789
        %v1843 = vadd.f32 %v1650, %v1792
        %v1844 = vadd.f32 %v1651, %v1795
        %v1845 = vadd.f32 %v1652, %v1798
        %v1846 = vadd.f32 %v1653, %v1801
        %v1847 = vadd.f32 %v1654, %v1804
        %v1848 = vadd.f32 %v1655, %v1807
        %v1849 = vadd.f32 %v1656, %v1810
        %v1850 = vadd.f32 %v1657, %v1813
        %v1851 = vadd.f32 %v1658, %v1816
        %v1852 = vadd.f32 %v1659, %v1819
        %v1853 = vld [vmem:[%s1466 + $0x2] sm:$0xff]
        %v1854 = vld [vmem:[%s1466 + $0xa] sm:$0xff]
        %v1855 = vld [vmem:[%s1466 + $0x1a] sm:$0xff]
        %v1856 = vld [vmem:[%s1466 + $0x22] sm:$0xff]
        %v1857 = vld [vmem:[%s1466 + $0x32] sm:$0xff]
        %v1858 = vld [vmem:[%s1466 + $0x3a] sm:$0xff]
        %v1859 = vld [vmem:[%s1466 + $0x4a] sm:$0xff]
        %v1860 = vld [vmem:[%s1466 + $0x52] sm:$0xff]
        %v1861 = vld [vmem:[%s1466 + $0x62] sm:$0xff]
        %v1862 = vld [vmem:[%s1466 + $0x6a] sm:$0xff]
        %v1863 = vld [vmem:[%s1466 + $0x7a] sm:$0xff]
        %v1864 = vld [vmem:[%s1466 + $0x82] sm:$0xff]
        %v1865 = vld [vmem:[%s1466 + $0x92] sm:$0xff]
        %v1866 = vld [vmem:[%s1466 + $0x9a] sm:$0xff]
        %v1867 = vld [vmem:[%s1466 + $0xaa] sm:$0xff]
        %v1868 = vld [vmem:[%s1466 + $0xb2] sm:$0xff]
        %v1869 = vld [vmem:[%s1466 + $0xc2] sm:$0xff]
        %v1870 = vld [vmem:[%s1466 + $0xca] sm:$0xff]
        %v1871 = vld [vmem:[%s1466 + $0xda] sm:$0xff]
        %v1872 = vld [vmem:[%s1466 + $0xe2] sm:$0xff]
        %v1873 = vld [vmem:[%s1466 + $0xf2] sm:$0xff]
        %v1874 = vld [vmem:[%s1466 + $0xfa] sm:$0xff]
        %v1875 = vld [vmem:[%s1466 + $0x10a] sm:$0xff]
        %v1876 = vld [vmem:[%s1466 + $0x112] sm:$0xff]
        %v1877 = vld [vmem:[%s1466 + $0x122] sm:$0xff]
        %v1878 = vld [vmem:[%s1466 + $0x12a] sm:$0xff]
        %v1879 = vld [vmem:[%s1466 + $0x13a] sm:$0xff]
        %v1880 = vld [vmem:[%s1466 + $0x142] sm:$0xff]
        %v1881 = vld [vmem:[%s1466 + $0x152] sm:$0xff]
        %v1882 = vld [vmem:[%s1466 + $0x15a] sm:$0xff]
        %v1883 = vld [vmem:[%s1466 + $0x16a] sm:$0xff]
        %v1884 = vld [vmem:[%s1466 + $0x172] sm:$0xff]
        %v1885 = vld [vmem:[#allocation7 + $0x400] sm:$0xff]
        %v1886 = vld [vmem:[#allocation7 + $0x408] sm:$0xff]
        %v1887 = vld [vmem:[#allocation7 + $0x410] sm:$0xff]
        %v1888 = vld [vmem:[#allocation7 + $0x418] sm:$0xff]
        %v1889 = vld [vmem:[#allocation7 + $0x420] sm:$0xff]
        %v1890 = vld [vmem:[#allocation7 + $0x428] sm:$0xff]
        %v1891 = vld [vmem:[#allocation7 + $0x430] sm:$0xff]
        %v1892 = vld [vmem:[#allocation7 + $0x438] sm:$0xff]
        %v1893 = vld [vmem:[#allocation7 + $0x440] sm:$0xff]
        %v1894 = vld [vmem:[#allocation7 + $0x448] sm:$0xff]
        %v1895 = vld [vmem:[#allocation7 + $0x450] sm:$0xff]
        %v1896 = vld [vmem:[#allocation7 + $0x458] sm:$0xff]
        %v1897 = vld [vmem:[#allocation7 + $0x460] sm:$0xff]
        %v1898 = vld [vmem:[#allocation7 + $0x468] sm:$0xff]
        %v1899 = vld [vmem:[#allocation7 + $0x470] sm:$0xff]
        %v1900 = vld [vmem:[#allocation7 + $0x478] sm:$0xff]
        %1901 = vmatpush.msra.mxu0 %v1900
        %1902 = vmatpush.msra.mxu0 %v1899
        %1903 = vmatpush.msra.mxu0 %v1898
        %1904 = vmatpush.msra.mxu0 %v1897
        %1905 = vmatpush.msra.mxu0 %v1896
        %1906 = vmatpush.msra.mxu0 %v1895
        %1907 = vmatpush.msra.mxu0 %v1894
        %1908 = vmatpush.msra.mxu0 %v1893
        %1909 = vmatpush.msra.mxu0 %v1892
        %1910 = vmatpush.msra.mxu0 %v1891
        %1911 = vmatpush.msra.mxu0 %v1890
        %1912 = vmatpush.msra.mxu0 %v1889
        %1913 = vmatpush.msra.mxu0 %v1888
        %1914 = vmatpush.msra.mxu0 %v1887
        %1915 = vmatpush.msra.mxu0 %v1886
        %1916 = vmatpush.msra.mxu0 %v1885
        %1917 = vmatmul.f32.gmra.mxu0 %v1853
        %v1918 = vpop.f32.mrf.mxu0
        %v1919 = vadd.f32 0.0, %v1918
        %1920 = vmatmul.f32.gmra.mxu0 %v1854
        %v1921 = vpop.f32.mrf.mxu0
        %v1922 = vadd.f32 0.0, %v1921
        %1923 = vmatmul.f32.gmra.mxu0 %v1855
        %v1924 = vpop.f32.mrf.mxu0
        %v1925 = vadd.f32 0.0, %v1924
        %1926 = vmatmul.f32.gmra.mxu0 %v1856
        %v1927 = vpop.f32.mrf.mxu0
        %v1928 = vadd.f32 0.0, %v1927
        %1929 = vmatmul.f32.gmra.mxu0 %v1857
        %v1930 = vpop.f32.mrf.mxu0
        %v1931 = vadd.f32 0.0, %v1930
        %1932 = vmatmul.f32.gmra.mxu0 %v1858
        %v1933 = vpop.f32.mrf.mxu0
        %v1934 = vadd.f32 0.0, %v1933
        %1935 = vmatmul.f32.gmra.mxu0 %v1859
        %v1936 = vpop.f32.mrf.mxu0
        %v1937 = vadd.f32 0.0, %v1936
        %1938 = vmatmul.f32.gmra.mxu0 %v1860
        %v1939 = vpop.f32.mrf.mxu0
        %v1940 = vadd.f32 0.0, %v1939
        %1941 = vmatmul.f32.gmra.mxu0 %v1861
        %v1942 = vpop.f32.mrf.mxu0
        %v1943 = vadd.f32 0.0, %v1942
        %1944 = vmatmul.f32.gmra.mxu0 %v1862
        %v1945 = vpop.f32.mrf.mxu0
        %v1946 = vadd.f32 0.0, %v1945
        %1947 = vmatmul.f32.gmra.mxu0 %v1863
        %v1948 = vpop.f32.mrf.mxu0
        %v1949 = vadd.f32 0.0, %v1948
        %1950 = vmatmul.f32.gmra.mxu0 %v1864
        %v1951 = vpop.f32.mrf.mxu0
        %v1952 = vadd.f32 0.0, %v1951
        %1953 = vmatmul.f32.gmra.mxu0 %v1865
        %v1954 = vpop.f32.mrf.mxu0
        %v1955 = vadd.f32 0.0, %v1954
        %1956 = vmatmul.f32.gmra.mxu0 %v1866
        %v1957 = vpop.f32.mrf.mxu0
        %v1958 = vadd.f32 0.0, %v1957
        %1959 = vmatmul.f32.gmra.mxu0 %v1867
        %v1960 = vpop.f32.mrf.mxu0
        %v1961 = vadd.f32 0.0, %v1960
        %1962 = vmatmul.f32.gmra.mxu0 %v1868
        %v1963 = vpop.f32.mrf.mxu0
        %v1964 = vadd.f32 0.0, %v1963
        %1965 = vmatmul.f32.gmra.mxu0 %v1869
        %v1966 = vpop.f32.mrf.mxu0
        %v1967 = vadd.f32 0.0, %v1966
        %1968 = vmatmul.f32.gmra.mxu0 %v1870
        %v1969 = vpop.f32.mrf.mxu0
        %v1970 = vadd.f32 0.0, %v1969
        %1971 = vmatmul.f32.gmra.mxu0 %v1871
        %v1972 = vpop.f32.mrf.mxu0
        %v1973 = vadd.f32 0.0, %v1972
        %1974 = vmatmul.f32.gmra.mxu0 %v1872
        %v1975 = vpop.f32.mrf.mxu0
        %v1976 = vadd.f32 0.0, %v1975
        %1977 = vmatmul.f32.gmra.mxu0 %v1873
        %v1978 = vpop.f32.mrf.mxu0
        %v1979 = vadd.f32 0.0, %v1978
        %1980 = vmatmul.f32.gmra.mxu0 %v1874
        %v1981 = vpop.f32.mrf.mxu0
        %v1982 = vadd.f32 0.0, %v1981
        %1983 = vmatmul.f32.gmra.mxu0 %v1875
        %v1984 = vpop.f32.mrf.mxu0
        %v1985 = vadd.f32 0.0, %v1984
        %1986 = vmatmul.f32.gmra.mxu0 %v1876
        %v1987 = vpop.f32.mrf.mxu0
        %v1988 = vadd.f32 0.0, %v1987
        %1989 = vmatmul.f32.gmra.mxu0 %v1877
        %v1990 = vpop.f32.mrf.mxu0
        %v1991 = vadd.f32 0.0, %v1990
        %1992 = vmatmul.f32.gmra.mxu0 %v1878
        %v1993 = vpop.f32.mrf.mxu0
        %v1994 = vadd.f32 0.0, %v1993
        %1995 = vmatmul.f32.gmra.mxu0 %v1879
        %v1996 = vpop.f32.mrf.mxu0
        %v1997 = vadd.f32 0.0, %v1996
        %1998 = vmatmul.f32.gmra.mxu0 %v1880
        %v1999 = vpop.f32.mrf.mxu0
        %v2000 = vadd.f32 0.0, %v1999
        %2001 = vmatmul.f32.gmra.mxu0 %v1881
        %v2002 = vpop.f32.mrf.mxu0
        %v2003 = vadd.f32 0.0, %v2002
        %2004 = vmatmul.f32.gmra.mxu0 %v1882
        %v2005 = vpop.f32.mrf.mxu0
        %v2006 = vadd.f32 0.0, %v2005
        %2007 = vmatmul.f32.gmra.mxu0 %v1883
        %v2008 = vpop.f32.mrf.mxu0
        %v2009 = vadd.f32 0.0, %v2008
        %2010 = vmatmul.f32.gmra.mxu0 %v1884
        %v2011 = vpop.f32.mrf.mxu0
        %v2012 = vadd.f32 0.0, %v2011
        %2013 = vdwg.mxu0
        %v2014 = vadd.f32 %v1821, %v1919
        %v2015 = vadd.f32 %v1822, %v1922
        %v2016 = vadd.f32 %v1823, %v1925
        %v2017 = vadd.f32 %v1824, %v1928
        %v2018 = vadd.f32 %v1825, %v1931
        %v2019 = vadd.f32 %v1826, %v1934
        %v2020 = vadd.f32 %v1827, %v1937
        %v2021 = vadd.f32 %v1828, %v1940
        %v2022 = vadd.f32 %v1829, %v1943
        %v2023 = vadd.f32 %v1830, %v1946
        %v2024 = vadd.f32 %v1831, %v1949
        %v2025 = vadd.f32 %v1832, %v1952
        %v2026 = vadd.f32 %v1833, %v1955
        %v2027 = vadd.f32 %v1834, %v1958
        %v2028 = vadd.f32 %v1835, %v1961
        %v2029 = vadd.f32 %v1836, %v1964
        %v2030 = vadd.f32 %v1837, %v1967
        %v2031 = vadd.f32 %v1838, %v1970
        %v2032 = vadd.f32 %v1839, %v1973
        %v2033 = vadd.f32 %v1840, %v1976
        %v2034 = vadd.f32 %v1841, %v1979
        %v2035 = vadd.f32 %v1842, %v1982
        %v2036 = vadd.f32 %v1843, %v1985
        %v2037 = vadd.f32 %v1844, %v1988
        %v2038 = vadd.f32 %v1845, %v1991
        %v2039 = vadd.f32 %v1846, %v1994
        %v2040 = vadd.f32 %v1847, %v1997
        %v2041 = vadd.f32 %v1848, %v2000
        %v2042 = vadd.f32 %v1849, %v2003
        %v2043 = vadd.f32 %v1850, %v2006
        %v2044 = vadd.f32 %v1851, %v2009
        %v2045 = vadd.f32 %v1852, %v2012
        %v2046 = vadd.f32 %v2014, %v2015
        %v2047 = vadd.f32 %v2046, %v2016
        %v2048 = vadd.f32 %v2047, %v2017
        %v2049 = vadd.f32 %v2048, %v2018
        %v2050 = vadd.f32 %v2049, %v2019
        %v2051 = vadd.f32 %v2050, %v2020
        %v2052 = vadd.f32 %v2051, %v2021
        %v2053 = vadd.f32 %v2052, %v2022
        %v2054 = vadd.f32 %v2053, %v2023
        %v2055 = vadd.f32 %v2054, %v2024
        %v2056 = vadd.f32 %v2055, %v2025
        %v2057 = vadd.f32 %v2056, %v2026
        %v2058 = vadd.f32 %v2057, %v2027
        %v2059 = vadd.f32 %v2058, %v2028
        %v2060 = vadd.f32 %v2059, %v2029
        %v2061 = vadd.f32 %v2060, %v2030
        %v2062 = vadd.f32 %v2061, %v2031
        %v2063 = vadd.f32 %v2062, %v2032
        %v2064 = vadd.f32 %v2063, %v2033
        %v2065 = vadd.f32 %v2064, %v2034
        %v2066 = vadd.f32 %v2065, %v2035
        %v2067 = vadd.f32 %v2066, %v2036
        %v2068 = vadd.f32 %v2067, %v2037
        %v2069 = vadd.f32 %v2068, %v2038
        %v2070 = vadd.f32 %v2069, %v2039
        %v2071 = vadd.f32 %v2070, %v2040
        %v2072 = vadd.f32 %v2071, %v2041
        %v2073 = vadd.f32 %v2072, %v2042
        %v2074 = vadd.f32 %v2073, %v2043
        %v2075 = vadd.f32 %v2074, %v2044
        %v2076 = vadd.f32 %v2075, %v2045
        %v2077 = vrot.slane %v2076, 4
        %v2078 = vadd.f32 %v2076, %v2077
        %v2079 = vrot.slane %v2078, 2
        %v2080 = vadd.f32 %v2078, %v2079
        %v2081 = vrot.slane %v2080, 1
        %v2082 = vadd.f32 %v2080, %v2081
        %v2083 = vrcp.pop 256.0
        %v2084 = vmul.f32 256.0, %v2083
        %v2085 = vsub.f32 1.0, %v2084
        %v2086 = vmul.f32 %v2083, %v2085
        %v2087 = vadd.f32 %v2083, %v2086
        %vm2088 = vweird.f32 %v2083
        %v2089 = vsel %vm2088, %v2083, %v2087
        %v2090 = vmul.f32 %v2082, %v2089
        %v2091 = vsub.f32 %v2014, %v2090
        %v2092 = vsub.f32 %v2015, %v2090
        %v2093 = vsub.f32 %v2016, %v2090
        %v2094 = vsub.f32 %v2017, %v2090
        %v2095 = vsub.f32 %v2018, %v2090
        %v2096 = vsub.f32 %v2019, %v2090
        %v2097 = vsub.f32 %v2020, %v2090
        %v2098 = vsub.f32 %v2021, %v2090
        %v2099 = vsub.f32 %v2022, %v2090
        %v2100 = vsub.f32 %v2023, %v2090
        %v2101 = vsub.f32 %v2024, %v2090
        %v2102 = vsub.f32 %v2025, %v2090
        %v2103 = vsub.f32 %v2026, %v2090
        %v2104 = vsub.f32 %v2027, %v2090
        %v2105 = vsub.f32 %v2028, %v2090
        %v2106 = vsub.f32 %v2029, %v2090
        %v2107 = vsub.f32 %v2030, %v2090
        %v2108 = vsub.f32 %v2031, %v2090
        %v2109 = vsub.f32 %v2032, %v2090
        %v2110 = vsub.f32 %v2033, %v2090
        %v2111 = vsub.f32 %v2034, %v2090
        %v2112 = vsub.f32 %v2035, %v2090
        %v2113 = vsub.f32 %v2036, %v2090
        %v2114 = vsub.f32 %v2037, %v2090
        %v2115 = vsub.f32 %v2038, %v2090
        %v2116 = vsub.f32 %v2039, %v2090
        %v2117 = vsub.f32 %v2040, %v2090
        %v2118 = vsub.f32 %v2041, %v2090
        %v2119 = vsub.f32 %v2042, %v2090
        %v2120 = vsub.f32 %v2043, %v2090
        %v2121 = vsub.f32 %v2044, %v2090
        %v2122 = vsub.f32 %v2045, %v2090
        %v2123 = vmul.f32 %v2091, %v2091
        %v2124 = vmul.f32 %v2092, %v2092
        %v2125 = vmul.f32 %v2093, %v2093
        %v2126 = vmul.f32 %v2094, %v2094
        %v2127 = vmul.f32 %v2095, %v2095
        %v2128 = vmul.f32 %v2096, %v2096
        %v2129 = vmul.f32 %v2097, %v2097
        %v2130 = vmul.f32 %v2098, %v2098
        %v2131 = vmul.f32 %v2099, %v2099
        %v2132 = vmul.f32 %v2100, %v2100
        %v2133 = vmul.f32 %v2101, %v2101
        %v2134 = vmul.f32 %v2102, %v2102
        %v2135 = vmul.f32 %v2103, %v2103
        %v2136 = vmul.f32 %v2104, %v2104
        %v2137 = vmul.f32 %v2105, %v2105
        %v2138 = vmul.f32 %v2106, %v2106
        %v2139 = vmul.f32 %v2107, %v2107
        %v2140 = vmul.f32 %v2108, %v2108
        %v2141 = vmul.f32 %v2109, %v2109
        %v2142 = vmul.f32 %v2110, %v2110
        %v2143 = vmul.f32 %v2111, %v2111
        %v2144 = vmul.f32 %v2112, %v2112
        %v2145 = vmul.f32 %v2113, %v2113
        %v2146 = vmul.f32 %v2114, %v2114
        %v2147 = vmul.f32 %v2115, %v2115
        %v2148 = vmul.f32 %v2116, %v2116
        %v2149 = vmul.f32 %v2117, %v2117
        %v2150 = vmul.f32 %v2118, %v2118
        %v2151 = vmul.f32 %v2119, %v2119
        %v2152 = vmul.f32 %v2120, %v2120
        %v2153 = vmul.f32 %v2121, %v2121
        %v2154 = vmul.f32 %v2122, %v2122
        %v2155 = vadd.f32 %v2123, %v2124
        %v2156 = vadd.f32 %v2155, %v2125
        %v2157 = vadd.f32 %v2156, %v2126
        %v2158 = vadd.f32 %v2157, %v2127
        %v2159 = vadd.f32 %v2158, %v2128
        %v2160 = vadd.f32 %v2159, %v2129
        %v2161 = vadd.f32 %v2160, %v2130
        %v2162 = vadd.f32 %v2161, %v2131
        %v2163 = vadd.f32 %v2162, %v2132
        %v2164 = vadd.f32 %v2163, %v2133
        %v2165 = vadd.f32 %v2164, %v2134
        %v2166 = vadd.f32 %v2165, %v2135
        %v2167 = vadd.f32 %v2166, %v2136
        %v2168 = vadd.f32 %v2167, %v2137
        %v2169 = vadd.f32 %v2168, %v2138
        %v2170 = vadd.f32 %v2169, %v2139
        %v2171 = vadd.f32 %v2170, %v2140
        %v2172 = vadd.f32 %v2171, %v2141
        %v2173 = vadd.f32 %v2172, %v2142
        %v2174 = vadd.f32 %v2173, %v2143
        %v2175 = vadd.f32 %v2174, %v2144
        %v2176 = vadd.f32 %v2175, %v2145
        %v2177 = vadd.f32 %v2176, %v2146
        %v2178 = vadd.f32 %v2177, %v2147
        %v2179 = vadd.f32 %v2178, %v2148
        %v2180 = vadd.f32 %v2179, %v2149
        %v2181 = vadd.f32 %v2180, %v2150
        %v2182 = vadd.f32 %v2181, %v2151
        %v2183 = vadd.f32 %v2182, %v2152
        %v2184 = vadd.f32 %v2183, %v2153
        %v2185 = vadd.f32 %v2184, %v2154
        %v2186 = vrot.slane %v2185, 4
        %v2187 = vadd.f32 %v2185, %v2186
        %v2188 = vrot.slane %v2187, 2
        %v2189 = vadd.f32 %v2187, %v2188
        %v2190 = vrot.slane %v2189, 1
        %v2191 = vadd.f32 %v2189, %v2190
        %v2192 = vmul.f32 %v2191, %v2089
        %v2193 = vadd.f32 %v2192, 1e-05
        %v2194 = vrsqrt.pop %v2193
        %v2195 = vmul.f32 %v2194, %v2193
        %v2196 = vmul.f32 %v2195, %v2194
        %v2197 = vmul.f32 0.5, %v2196
        %v2198 = vsub.f32 1.5, %v2197
        %v2199 = vmul.f32 %v2194, %v2198
        %vm2200 = vweird.f32 %v2193
        %vm2201 = vweird.f32 %v2194
        %vm2202 = vmor %vm2200, %vm2201
        %v2203 = vsel %vm2202, %v2194, %v2199
        %v2204 = vmul.f32 %v2091, %v2203
        %v2205 = vmul.f32 %v2092, %v2203
        %v2206 = vmul.f32 %v2093, %v2203
        %v2207 = vmul.f32 %v2094, %v2203
        %v2208 = vmul.f32 %v2095, %v2203
        %v2209 = vmul.f32 %v2096, %v2203
        %v2210 = vmul.f32 %v2097, %v2203
        %v2211 = vmul.f32 %v2098, %v2203
        %v2212 = vmul.f32 %v2099, %v2203
        %v2213 = vmul.f32 %v2100, %v2203
        %v2214 = vmul.f32 %v2101, %v2203
        %v2215 = vmul.f32 %v2102, %v2203
        %v2216 = vmul.f32 %v2103, %v2203
        %v2217 = vmul.f32 %v2104, %v2203
        %v2218 = vmul.f32 %v2105, %v2203
        %v2219 = vmul.f32 %v2106, %v2203
        %v2220 = vmul.f32 %v2107, %v2203
        %v2221 = vmul.f32 %v2108, %v2203
        %v2222 = vmul.f32 %v2109, %v2203
        %v2223 = vmul.f32 %v2110, %v2203
        %v2224 = vmul.f32 %v2111, %v2203
        %v2225 = vmul.f32 %v2112, %v2203
        %v2226 = vmul.f32 %v2113, %v2203
        %v2227 = vmul.f32 %v2114, %v2203
        %v2228 = vmul.f32 %v2115, %v2203
        %v2229 = vmul.f32 %v2116, %v2203
        %v2230 = vmul.f32 %v2117, %v2203
        %v2231 = vmul.f32 %v2118, %v2203
        %v2232 = vmul.f32 %v2119, %v2203
        %v2233 = vmul.f32 %v2120, %v2203
        %v2234 = vmul.f32 %v2121, %v2203
        %v2235 = vmul.f32 %v2122, %v2203
        %v2236 = vmax.f32 %v2204, 0.0
        %v2237 = vmax.f32 %v2205, 0.0
        %v2238 = vmax.f32 %v2206, 0.0
        %v2239 = vmax.f32 %v2207, 0.0
        %v2240 = vmax.f32 %v2208, 0.0
        %v2241 = vmax.f32 %v2209, 0.0
        %v2242 = vmax.f32 %v2210, 0.0
        %v2243 = vmax.f32 %v2211, 0.0
        %v2244 = vmax.f32 %v2212, 0.0
        %v2245 = vmax.f32 %v2213, 0.0
        %v2246 = vmax.f32 %v2214, 0.0
        %v2247 = vmax.f32 %v2215, 0.0
        %v2248 = vmax.f32 %v2216, 0.0
        %v2249 = vmax.f32 %v2217, 0.0
        %v2250 = vmax.f32 %v2218, 0.0
        %v2251 = vmax.f32 %v2219, 0.0
        %v2252 = vmax.f32 %v2220, 0.0
        %v2253 = vmax.f32 %v2221, 0.0
        %v2254 = vmax.f32 %v2222, 0.0
        %v2255 = vmax.f32 %v2223, 0.0
        %v2256 = vmax.f32 %v2224, 0.0
        %v2257 = vmax.f32 %v2225, 0.0
        %v2258 = vmax.f32 %v2226, 0.0
        %v2259 = vmax.f32 %v2227, 0.0
        %v2260 = vmax.f32 %v2228, 0.0
        %v2261 = vmax.f32 %v2229, 0.0
        %v2262 = vmax.f32 %v2230, 0.0
        %v2263 = vmax.f32 %v2231, 0.0
        %v2264 = vmax.f32 %v2232, 0.0
        %v2265 = vmax.f32 %v2233, 0.0
        %v2266 = vmax.f32 %v2234, 0.0
        %v2267 = vmax.f32 %v2235, 0.0
        %s2268 = scalar_lea.vmem [#allocation3], 24
        %2269 = vst [vmem:[%s2268 + $0x1] sm:$0xff] %v2236
        %2270 = vst [vmem:[%s2268 + $0x9] sm:$0xff] %v2237
        %2271 = vst [vmem:[%s2268 + $0x19] sm:$0xff] %v2238
        %2272 = vst [vmem:[%s2268 + $0x21] sm:$0xff] %v2239
        %2273 = vst [vmem:[%s2268 + $0x31] sm:$0xff] %v2240
        %2274 = vst [vmem:[%s2268 + $0x39] sm:$0xff] %v2241
        %2275 = vst [vmem:[%s2268 + $0x49] sm:$0xff] %v2242
        %2276 = vst [vmem:[%s2268 + $0x51] sm:$0xff] %v2243
        %2277 = vst [vmem:[%s2268 + $0x61] sm:$0xff] %v2244
        %2278 = vst [vmem:[%s2268 + $0x69] sm:$0xff] %v2245
        %2279 = vst [vmem:[%s2268 + $0x79] sm:$0xff] %v2246
        %2280 = vst [vmem:[%s2268 + $0x81] sm:$0xff] %v2247
        %2281 = vst [vmem:[%s2268 + $0x91] sm:$0xff] %v2248
        %2282 = vst [vmem:[%s2268 + $0x99] sm:$0xff] %v2249
        %2283 = vst [vmem:[%s2268 + $0xa9] sm:$0xff] %v2250
        %2284 = vst [vmem:[%s2268 + $0xb1] sm:$0xff] %v2251
        %2285 = vst [vmem:[%s2268 + $0xc1] sm:$0xff] %v2252
        %2286 = vst [vmem:[%s2268 + $0xc9] sm:$0xff] %v2253
        %2287 = vst [vmem:[%s2268 + $0xd9] sm:$0xff] %v2254
        %2288 = vst [vmem:[%s2268 + $0xe1] sm:$0xff] %v2255
        %2289 = vst [vmem:[%s2268 + $0xf1] sm:$0xff] %v2256
        %2290 = vst [vmem:[%s2268 + $0xf9] sm:$0xff] %v2257
        %2291 = vst [vmem:[%s2268 + $0x109] sm:$0xff] %v2258
        %2292 = vst [vmem:[%s2268 + $0x111] sm:$0xff] %v2259
        %2293 = vst [vmem:[%s2268 + $0x121] sm:$0xff] %v2260
        %2294 = vst [vmem:[%s2268 + $0x129] sm:$0xff] %v2261
        %2295 = vst [vmem:[%s2268 + $0x139] sm:$0xff] %v2262
        %2296 = vst [vmem:[%s2268 + $0x141] sm:$0xff] %v2263
        %2297 = vst [vmem:[%s2268 + $0x151] sm:$0xff] %v2264
        %2298 = vst [vmem:[%s2268 + $0x159] sm:$0xff] %v2265
        %2299 = vst [vmem:[%s2268 + $0x169] sm:$0xff] %v2266
        %2300 = vst [vmem:[%s2268 + $0x171] sm:$0xff] %v2267
        %2301 = vst [vmem:[#allocation3 + $0x1] sm:$0xff] %v2238
        %2302 = vst [vmem:[#allocation3 + $0x9] sm:$0xff] %v2239
        %s2303 = scalar_lea.vmem [#allocation3], 408
        %2304 = vst [vmem:[%s2303 + $0x1] sm:$0xff] %v2264
        %2305 = vst [vmem:[%s2303 + $0x9] sm:$0xff] %v2265
        %v2306 = vld [vmem:[#allocation3 + $0x2] sm:$0x1]
        %v2307 = vld [vmem:[#allocation3 + $0x1a] sm:$0x1]
        %v2308 = vld [vmem:[#allocation3 + $0x32] sm:$0x1]
        %v2309 = vld [vmem:[#allocation3 + $0x4a] sm:$0x1]
        %v2310 = vld [vmem:[#allocation3 + $0x62] sm:$0x1]
        %v2311 = vld [vmem:[#allocation3 + $0x7a] sm:$0x1]
        %v2312 = vld [vmem:[#allocation3 + $0x92] sm:$0x1]
        %v2313 = vld [vmem:[#allocation3 + $0xaa] sm:$0x1]
        %v2314 = vld [vmem:[#allocation3 + $0xc2] sm:$0x1]
        %v2315 = vld [vmem:[#allocation3 + $0xda] sm:$0x1]
        %v2316 = vld [vmem:[#allocation3 + $0xf2] sm:$0x1]
        %v2317 = vld [vmem:[#allocation3 + $0x10a] sm:$0x1]
        %v2318 = vld [vmem:[#allocation3 + $0x122] sm:$0x1]
        %v2319 = vld [vmem:[#allocation3 + $0x13a] sm:$0x1]
        %v2320 = vld [vmem:[#allocation3 + $0x152] sm:$0x1]
        %v2321 = vld [vmem:[#allocation3 + $0x16a] sm:$0x1]
        %v2322 = vld [vmem:[#allocation3 + $0x182] sm:$0x1]
        %v2323 = vld [vmem:[#allocation3 + $0x19a] sm:$0x1]
        %2324 = vst [vmem:[#allocation3] sm:$0x1] %v2306
        %2325 = vst [vmem:[#allocation3 + $0x18] sm:$0x1] %v2307
        %2326 = vst [vmem:[#allocation3 + $0x30] sm:$0x1] %v2308
        %2327 = vst [vmem:[#allocation3 + $0x48] sm:$0x1] %v2309
        %2328 = vst [vmem:[#allocation3 + $0x60] sm:$0x1] %v2310
        %2329 = vst [vmem:[#allocation3 + $0x78] sm:$0x1] %v2311
        %2330 = vst [vmem:[#allocation3 + $0x90] sm:$0x1] %v2312
        %2331 = vst [vmem:[#allocation3 + $0xa8] sm:$0x1] %v2313
        %2332 = vst [vmem:[#allocation3 + $0xc0] sm:$0x1] %v2314
        %2333 = vst [vmem:[#allocation3 + $0xd8] sm:$0x1] %v2315
        %2334 = vst [vmem:[#allocation3 + $0xf0] sm:$0x1] %v2316
        %2335 = vst [vmem:[#allocation3 + $0x108] sm:$0x1] %v2317
        %2336 = vst [vmem:[#allocation3 + $0x120] sm:$0x1] %v2318
        %2337 = vst [vmem:[#allocation3 + $0x138] sm:$0x1] %v2319
        %2338 = vst [vmem:[#allocation3 + $0x150] sm:$0x1] %v2320
        %2339 = vst [vmem:[#allocation3 + $0x168] sm:$0x1] %v2321
        %2340 = vst [vmem:[#allocation3 + $0x180] sm:$0x1] %v2322
        %2341 = vst [vmem:[#allocation3 + $0x198] sm:$0x1] %v2323
        %v2342 = vld [vmem:[#allocation3 + $0xf] sm:$0x1]
        %v2343 = vld [vmem:[#allocation3 + $0x27] sm:$0x1]
        %v2344 = vld [vmem:[#allocation3 + $0x3f] sm:$0x1]
        %v2345 = vld [vmem:[#allocation3 + $0x57] sm:$0x1]
        %v2346 = vld [vmem:[#allocation3 + $0x6f] sm:$0x1]
        %v2347 = vld [vmem:[#allocation3 + $0x87] sm:$0x1]
        %v2348 = vld [vmem:[#allocation3 + $0x9f] sm:$0x1]
        %v2349 = vld [vmem:[#allocation3 + $0xb7] sm:$0x1]
        %v2350 = vld [vmem:[#allocation3 + $0xcf] sm:$0x1]
        %v2351 = vld [vmem:[#allocation3 + $0xe7] sm:$0x1]
        %v2352 = vld [vmem:[#allocation3 + $0xff] sm:$0x1]
        %v2353 = vld [vmem:[#allocation3 + $0x117] sm:$0x1]
        %v2354 = vld [vmem:[#allocation3 + $0x12f] sm:$0x1]
        %v2355 = vld [vmem:[#allocation3 + $0x147] sm:$0x1]
        %v2356 = vld [vmem:[#allocation3 + $0x15f] sm:$0x1]
        %v2357 = vld [vmem:[#allocation3 + $0x177] sm:$0x1]
        %v2358 = vld [vmem:[#allocation3 + $0x18f] sm:$0x1]
        %v2359 = vld [vmem:[#allocation3 + $0x1a7] sm:$0x1]
        %2360 = vst [vmem:[#allocation3 + $0x11] sm:$0x1] %v2342
        %2361 = vst [vmem:[#allocation3 + $0x29] sm:$0x1] %v2343
        %2362 = vst [vmem:[#allocation3 + $0x41] sm:$0x1] %v2344
        %2363 = vst [vmem:[#allocation3 + $0x59] sm:$0x1] %v2345
        %2364 = vst [vmem:[#allocation3 + $0x71] sm:$0x1] %v2346
        %2365 = vst [vmem:[#allocation3 + $0x89] sm:$0x1] %v2347
        %2366 = vst [vmem:[#allocation3 + $0xa1] sm:$0x1] %v2348
        %2367 = vst [vmem:[#allocation3 + $0xb9] sm:$0x1] %v2349
        %2368 = vst [vmem:[#allocation3 + $0xd1] sm:$0x1] %v2350
        %2369 = vst [vmem:[#allocation3 + $0xe9] sm:$0x1] %v2351
        %2370 = vst [vmem:[#allocation3 + $0x101] sm:$0x1] %v2352
        %2371 = vst [vmem:[#allocation3 + $0x119] sm:$0x1] %v2353
        %2372 = vst [vmem:[#allocation3 + $0x131] sm:$0x1] %v2354
        %2373 = vst [vmem:[#allocation3 + $0x149] sm:$0x1] %v2355
        %2374 = vst [vmem:[#allocation3 + $0x161] sm:$0x1] %v2356
        %2375 = vst [vmem:[#allocation3 + $0x179] sm:$0x1] %v2357
        %2376 = vst [vmem:[#allocation3 + $0x191] sm:$0x1] %v2358
        %2377 = vst [vmem:[#allocation3 + $0x1a9] sm:$0x1] %v2359
        %v2378 = vld [vmem:[#allocation3] sm:$0xff]
        %v2379 = vld [vmem:[#allocation3 + $0x8] sm:$0xff]
        %v2380 = vld [vmem:[#allocation3 + $0x18] sm:$0xff]
        %v2381 = vld [vmem:[#allocation3 + $0x20] sm:$0xff]
        %v2382 = vld [vmem:[#allocation3 + $0x30] sm:$0xff]
        %v2383 = vld [vmem:[#allocation3 + $0x38] sm:$0xff]
        %v2384 = vld [vmem:[#allocation3 + $0x48] sm:$0xff]
        %v2385 = vld [vmem:[#allocation3 + $0x50] sm:$0xff]
        %v2386 = vld [vmem:[#allocation3 + $0x60] sm:$0xff]
        %v2387 = vld [vmem:[#allocation3 + $0x68] sm:$0xff]
        %v2388 = vld [vmem:[#allocation3 + $0x78] sm:$0xff]
        %v2389 = vld [vmem:[#allocation3 + $0x80] sm:$0xff]
        %v2390 = vld [vmem:[#allocation3 + $0x90] sm:$0xff]
        %v2391 = vld [vmem:[#allocation3 + $0x98] sm:$0xff]
        %v2392 = vld [vmem:[#allocation3 + $0xa8] sm:$0xff]
        %v2393 = vld [vmem:[#allocation3 + $0xb0] sm:$0xff]
        %v2394 = vld [vmem:[#allocation3 + $0xc0] sm:$0xff]
        %v2395 = vld [vmem:[#allocation3 + $0xc8] sm:$0xff]
        %v2396 = vld [vmem:[#allocation3 + $0xd8] sm:$0xff]
        %v2397 = vld [vmem:[#allocation3 + $0xe0] sm:$0xff]
        %v2398 = vld [vmem:[#allocation3 + $0xf0] sm:$0xff]
        %v2399 = vld [vmem:[#allocation3 + $0xf8] sm:$0xff]
        %v2400 = vld [vmem:[#allocation3 + $0x108] sm:$0xff]
        %v2401 = vld [vmem:[#allocation3 + $0x110] sm:$0xff]
        %v2402 = vld [vmem:[#allocation3 + $0x120] sm:$0xff]
        %v2403 = vld [vmem:[#allocation3 + $0x128] sm:$0xff]
        %v2404 = vld [vmem:[#allocation3 + $0x138] sm:$0xff]
        %v2405 = vld [vmem:[#allocation3 + $0x140] sm:$0xff]
        %v2406 = vld [vmem:[#allocation3 + $0x150] sm:$0xff]
        %v2407 = vld [vmem:[#allocation3 + $0x158] sm:$0xff]
        %v2408 = vld [vmem:[#allocation3 + $0x168] sm:$0xff]
        %v2409 = vld [vmem:[#allocation3 + $0x170] sm:$0xff]
        %v2410 = vld [vmem:[#allocation9] sm:$0xff]
        %v2411 = vld [vmem:[#allocation9 + $0x8] sm:$0xff]
        %v2412 = vld [vmem:[#allocation9 + $0x10] sm:$0xff]
        %v2413 = vld [vmem:[#allocation9 + $0x18] sm:$0xff]
        %v2414 = vld [vmem:[#allocation9 + $0x20] sm:$0xff]
        %v2415 = vld [vmem:[#allocation9 + $0x28] sm:$0xff]
        %v2416 = vld [vmem:[#allocation9 + $0x30] sm:$0xff]
        %v2417 = vld [vmem:[#allocation9 + $0x38] sm:$0xff]
        %v2418 = vld [vmem:[#allocation9 + $0x40] sm:$0xff]
        %v2419 = vld [vmem:[#allocation9 + $0x48] sm:$0xff]
        %v2420 = vld [vmem:[#allocation9 + $0x50] sm:$0xff]
        %v2421 = vld [vmem:[#allocation9 + $0x58] sm:$0xff]
        %v2422 = vld [vmem:[#allocation9 + $0x60] sm:$0xff]
        %v2423 = vld [vmem:[#allocation9 + $0x68] sm:$0xff]
        %v2424 = vld [vmem:[#allocation9 + $0x70] sm:$0xff]
        %v2425 = vld [vmem:[#allocation9 + $0x78] sm:$0xff]
        %v2426 = vld [vmem:[#allocation3 + $0x1] sm:$0xff]
        %v2427 = vld [vmem:[#allocation3 + $0x9] sm:$0xff]
        %v2428 = vld [vmem:[#allocation3 + $0x19] sm:$0xff]
        %v2429 = vld [vmem:[#allocation3 + $0x21] sm:$0xff]
        %v2430 = vld [vmem:[#allocation3 + $0x31] sm:$0xff]
        %v2431 = vld [vmem:[#allocation3 + $0x39] sm:$0xff]
        %v2432 = vld [vmem:[#allocation3 + $0x49] sm:$0xff]
        %v2433 = vld [vmem:[#allocation3 + $0x51] sm:$0xff]
        %v2434 = vld [vmem:[#allocation3 + $0x61] sm:$0xff]
        %v2435 = vld [vmem:[#allocation3 + $0x69] sm:$0xff]
        %v2436 = vld [vmem:[#allocation3 + $0x79] sm:$0xff]
        %v2437 = vld [vmem:[#allocation3 + $0x81] sm:$0xff]
        %v2438 = vld [vmem:[#allocation3 + $0x91] sm:$0xff]
        %v2439 = vld [vmem:[#allocation3 + $0x99] sm:$0xff]
        %v2440 = vld [vmem:[#allocation3 + $0xa9] sm:$0xff]
        %v2441 = vld [vmem:[#allocation3 + $0xb1] sm:$0xff]
        %v2442 = vld [vmem:[#allocation3 + $0xc1] sm:$0xff]
        %v2443 = vld [vmem:[#allocation3 + $0xc9] sm:$0xff]
        %v2444 = vld [vmem:[#allocation3 + $0xd9] sm:$0xff]
        %v2445 = vld [vmem:[#allocation3 + $0xe1] sm:$0xff]
        %v2446 = vld [vmem:[#allocation3 + $0xf1] sm:$0xff]
        %v2447 = vld [vmem:[#allocation3 + $0xf9] sm:$0xff]
        %v2448 = vld [vmem:[#allocation3 + $0x109] sm:$0xff]
        %v2449 = vld [vmem:[#allocation3 + $0x111] sm:$0xff]
        %v2450 = vld [vmem:[#allocation3 + $0x121] sm:$0xff]
        %v2451 = vld [vmem:[#allocation3 + $0x129] sm:$0xff]
        %v2452 = vld [vmem:[#allocation3 + $0x139] sm:$0xff]
        %v2453 = vld [vmem:[#allocation3 + $0x141] sm:$0xff]
        %v2454 = vld [vmem:[#allocation3 + $0x151] sm:$0xff]
        %v2455 = vld [vmem:[#allocation3 + $0x159] sm:$0xff]
        %v2456 = vld [vmem:[#allocation3 + $0x169] sm:$0xff]
        %v2457 = vld [vmem:[#allocation3 + $0x171] sm:$0xff]
        %v2458 = vld [vmem:[#allocation9 + $0x80] sm:$0xff]
        %v2459 = vld [vmem:[#allocation9 + $0x88] sm:$0xff]
        %v2460 = vld [vmem:[#allocation9 + $0x90] sm:$0xff]
        %v2461 = vld [vmem:[#allocation9 + $0x98] sm:$0xff]
        %v2462 = vld [vmem:[#allocation9 + $0xa0] sm:$0xff]
        %v2463 = vld [vmem:[#allocation9 + $0xa8] sm:$0xff]
        %v2464 = vld [vmem:[#allocation9 + $0xb0] sm:$0xff]
        %v2465 = vld [vmem:[#allocation9 + $0xb8] sm:$0xff]
        %v2466 = vld [vmem:[#allocation9 + $0xc0] sm:$0xff]
        %v2467 = vld [vmem:[#allocation9 + $0xc8] sm:$0xff]
        %v2468 = vld [vmem:[#allocation9 + $0xd0] sm:$0xff]
        %v2469 = vld [vmem:[#allocation9 + $0xd8] sm:$0xff]
        %v2470 = vld [vmem:[#allocation9 + $0xe0] sm:$0xff]
        %v2471 = vld [vmem:[#allocation9 + $0xe8] sm:$0xff]
        %v2472 = vld [vmem:[#allocation9 + $0xf0] sm:$0xff]
        %v2473 = vld [vmem:[#allocation9 + $0xf8] sm:$0xff]
        %2474 = vmatpush.msra.mxu0 %v2473
        %2475 = vmatpush.msra.mxu0 %v2472
        %2476 = vmatpush.msra.mxu0 %v2471
        %2477 = vmatpush.msra.mxu0 %v2470
        %2478 = vmatpush.msra.mxu0 %v2469
        %2479 = vmatpush.msra.mxu0 %v2468
        %2480 = vmatpush.msra.mxu0 %v2467
        %2481 = vmatpush.msra.mxu0 %v2466
        %2482 = vmatpush.msra.mxu0 %v2465
        %2483 = vmatpush.msra.mxu0 %v2464
        %2484 = vmatpush.msra.mxu0 %v2463
        %2485 = vmatpush.msra.mxu0 %v2462
        %2486 = vmatpush.msra.mxu0 %v2461
        %2487 = vmatpush.msra.mxu0 %v2460
        %2488 = vmatpush.msra.mxu0 %v2459
        %2489 = vmatpush.msra.mxu0 %v2458
        %2490 = vmatmul.f32.gmra.mxu0 %v2426
        %v2491 = vpop.f32.mrf.mxu0
        %v2492 = vadd.f32 0.0, %v2491
        %2493 = vmatmul.f32.gmra.mxu0 %v2427
        %v2494 = vpop.f32.mrf.mxu0
        %v2495 = vadd.f32 0.0, %v2494
        %2496 = vmatmul.f32.gmra.mxu0 %v2428
        %v2497 = vpop.f32.mrf.mxu0
        %v2498 = vadd.f32 0.0, %v2497
        %2499 = vmatmul.f32.gmra.mxu0 %v2429
        %v2500 = vpop.f32.mrf.mxu0
        %v2501 = vadd.f32 0.0, %v2500
        %2502 = vmatmul.f32.gmra.mxu0 %v2430
        %v2503 = vpop.f32.mrf.mxu0
        %v2504 = vadd.f32 0.0, %v2503
        %2505 = vmatmul.f32.gmra.mxu0 %v2431
        %v2506 = vpop.f32.mrf.mxu0
        %v2507 = vadd.f32 0.0, %v2506
        %2508 = vmatmul.f32.gmra.mxu0 %v2432
        %v2509 = vpop.f32.mrf.mxu0
        %v2510 = vadd.f32 0.0, %v2509
        %2511 = vmatmul.f32.gmra.mxu0 %v2433
        %v2512 = vpop.f32.mrf.mxu0
        %v2513 = vadd.f32 0.0, %v2512
        %2514 = vmatmul.f32.gmra.mxu0 %v2434
        %v2515 = vpop.f32.mrf.mxu0
        %v2516 = vadd.f32 0.0, %v2515
        %2517 = vmatmul.f32.gmra.mxu0 %v2435
        %v2518 = vpop.f32.mrf.mxu0
        %v2519 = vadd.f32 0.0, %v2518
        %2520 = vmatmul.f32.gmra.mxu0 %v2436
        %v2521 = vpop.f32.mrf.mxu0
        %v2522 = vadd.f32 0.0, %v2521
        %2523 = vmatmul.f32.gmra.mxu0 %v2437
        %v2524 = vpop.f32.mrf.mxu0
        %v2525 = vadd.f32 0.0, %v2524
        %2526 = vmatmul.f32.gmra.mxu0 %v2438
        %v2527 = vpop.f32.mrf.mxu0
        %v2528 = vadd.f32 0.0, %v2527
        %2529 = vmatmul.f32.gmra.mxu0 %v2439
        %v2530 = vpop.f32.mrf.mxu0
        %v2531 = vadd.f32 0.0, %v2530
        %2532 = vmatmul.f32.gmra.mxu0 %v2440
        %v2533 = vpop.f32.mrf.mxu0
        %v2534 = vadd.f32 0.0, %v2533
        %2535 = vmatmul.f32.gmra.mxu0 %v2441
        %v2536 = vpop.f32.mrf.mxu0
        %v2537 = vadd.f32 0.0, %v2536
        %2538 = vmatmul.f32.gmra.mxu0 %v2442
        %v2539 = vpop.f32.mrf.mxu0
        %v2540 = vadd.f32 0.0, %v2539
        %2541 = vmatmul.f32.gmra.mxu0 %v2443
        %v2542 = vpop.f32.mrf.mxu0
        %v2543 = vadd.f32 0.0, %v2542
        %2544 = vmatmul.f32.gmra.mxu0 %v2444
        %v2545 = vpop.f32.mrf.mxu0
        %v2546 = vadd.f32 0.0, %v2545
        %2547 = vmatmul.f32.gmra.mxu0 %v2445
        %v2548 = vpop.f32.mrf.mxu0
        %v2549 = vadd.f32 0.0, %v2548
        %2550 = vmatmul.f32.gmra.mxu0 %v2446
        %v2551 = vpop.f32.mrf.mxu0
        %v2552 = vadd.f32 0.0, %v2551
        %2553 = vmatmul.f32.gmra.mxu0 %v2447
        %v2554 = vpop.f32.mrf.mxu0
        %v2555 = vadd.f32 0.0, %v2554
        %2556 = vmatmul.f32.gmra.mxu0 %v2448
        %v2557 = vpop.f32.mrf.mxu0
        %v2558 = vadd.f32 0.0, %v2557
        %2559 = vmatmul.f32.gmra.mxu0 %v2449
        %v2560 = vpop.f32.mrf.mxu0
        %v2561 = vadd.f32 0.0, %v2560
        %2562 = vmatmul.f32.gmra.mxu0 %v2450
        %v2563 = vpop.f32.mrf.mxu0
        %v2564 = vadd.f32 0.0, %v2563
        %2565 = vmatmul.f32.gmra.mxu0 %v2451
        %v2566 = vpop.f32.mrf.mxu0
        %v2567 = vadd.f32 0.0, %v2566
        %2568 = vmatmul.f32.gmra.mxu0 %v2452
        %v2569 = vpop.f32.mrf.mxu0
        %v2570 = vadd.f32 0.0, %v2569
        %2571 = vmatmul.f32.gmra.mxu0 %v2453
        %v2572 = vpop.f32.mrf.mxu0
        %v2573 = vadd.f32 0.0, %v2572
        %2574 = vmatmul.f32.gmra.mxu0 %v2454
        %v2575 = vpop.f32.mrf.mxu0
        %v2576 = vadd.f32 0.0, %v2575
        %2577 = vmatmul.f32.gmra.mxu0 %v2455
        %v2578 = vpop.f32.mrf.mxu0
        %v2579 = vadd.f32 0.0, %v2578
        %2580 = vmatmul.f32.gmra.mxu0 %v2456
        %v2581 = vpop.f32.mrf.mxu0
        %v2582 = vadd.f32 0.0, %v2581
        %2583 = vmatmul.f32.gmra.mxu0 %v2457
        %v2584 = vpop.f32.mrf.mxu0
        %v2585 = vadd.f32 0.0, %v2584
        %2586 = vdwg.mxu0
        %2587 = vmatpush.msra.mxu0 %v2425
        %2588 = vmatpush.msra.mxu0 %v2424
        %2589 = vmatpush.msra.mxu0 %v2423
        %2590 = vmatpush.msra.mxu0 %v2422
        %2591 = vmatpush.msra.mxu0 %v2421
        %2592 = vmatpush.msra.mxu0 %v2420
        %2593 = vmatpush.msra.mxu0 %v2419
        %2594 = vmatpush.msra.mxu0 %v2418
        %2595 = vmatpush.msra.mxu0 %v2417
        %2596 = vmatpush.msra.mxu0 %v2416
        %2597 = vmatpush.msra.mxu0 %v2415
        %2598 = vmatpush.msra.mxu0 %v2414
        %2599 = vmatpush.msra.mxu0 %v2413
        %2600 = vmatpush.msra.mxu0 %v2412
        %2601 = vmatpush.msra.mxu0 %v2411
        %2602 = vmatpush.msra.mxu0 %v2410
        %2603 = vmatmul.f32.gmra.mxu0 %v2378
        %v2604 = vpop.f32.mrf.mxu0
        %v2605 = vadd.f32 %v2492, %v2604
        %2606 = vmatmul.f32.gmra.mxu0 %v2379
        %v2607 = vpop.f32.mrf.mxu0
        %v2608 = vadd.f32 %v2495, %v2607
        %2609 = vmatmul.f32.gmra.mxu0 %v2380
        %v2610 = vpop.f32.mrf.mxu0
        %v2611 = vadd.f32 %v2498, %v2610
        %2612 = vmatmul.f32.gmra.mxu0 %v2381
        %v2613 = vpop.f32.mrf.mxu0
        %v2614 = vadd.f32 %v2501, %v2613
        %2615 = vmatmul.f32.gmra.mxu0 %v2382
        %v2616 = vpop.f32.mrf.mxu0
        %v2617 = vadd.f32 %v2504, %v2616
        %2618 = vmatmul.f32.gmra.mxu0 %v2383
        %v2619 = vpop.f32.mrf.mxu0
        %v2620 = vadd.f32 %v2507, %v2619
        %2621 = vmatmul.f32.gmra.mxu0 %v2384
        %v2622 = vpop.f32.mrf.mxu0
        %v2623 = vadd.f32 %v2510, %v2622
        %2624 = vmatmul.f32.gmra.mxu0 %v2385
        %v2625 = vpop.f32.mrf.mxu0
        %v2626 = vadd.f32 %v2513, %v2625
        %2627 = vmatmul.f32.gmra.mxu0 %v2386
        %v2628 = vpop.f32.mrf.mxu0
        %v2629 = vadd.f32 %v2516, %v2628
        %2630 = vmatmul.f32.gmra.mxu0 %v2387
        %v2631 = vpop.f32.mrf.mxu0
        %v2632 = vadd.f32 %v2519, %v2631
        %2633 = vmatmul.f32.gmra.mxu0 %v2388
        %v2634 = vpop.f32.mrf.mxu0
        %v2635 = vadd.f32 %v2522, %v2634
        %2636 = vmatmul.f32.gmra.mxu0 %v2389
        %v2637 = vpop.f32.mrf.mxu0
        %v2638 = vadd.f32 %v2525, %v2637
        %2639 = vmatmul.f32.gmra.mxu0 %v2390
        %v2640 = vpop.f32.mrf.mxu0
        %v2641 = vadd.f32 %v2528, %v2640
        %2642 = vmatmul.f32.gmra.mxu0 %v2391
        %v2643 = vpop.f32.mrf.mxu0
        %v2644 = vadd.f32 %v2531, %v2643
        %2645 = vmatmul.f32.gmra.mxu0 %v2392
        %v2646 = vpop.f32.mrf.mxu0
        %v2647 = vadd.f32 %v2534, %v2646
        %2648 = vmatmul.f32.gmra.mxu0 %v2393
        %v2649 = vpop.f32.mrf.mxu0
        %v2650 = vadd.f32 %v2537, %v2649
        %2651 = vmatmul.f32.gmra.mxu0 %v2394
        %v2652 = vpop.f32.mrf.mxu0
        %v2653 = vadd.f32 %v2540, %v2652
        %2654 = vmatmul.f32.gmra.mxu0 %v2395
        %v2655 = vpop.f32.mrf.mxu0
        %v2656 = vadd.f32 %v2543, %v2655
        %2657 = vmatmul.f32.gmra.mxu0 %v2396
        %v2658 = vpop.f32.mrf.mxu0
        %v2659 = vadd.f32 %v2546, %v2658
        %2660 = vmatmul.f32.gmra.mxu0 %v2397
        %v2661 = vpop.f32.mrf.mxu0
        %v2662 = vadd.f32 %v2549, %v2661
        %2663 = vmatmul.f32.gmra.mxu0 %v2398
        %v2664 = vpop.f32.mrf.mxu0
        %v2665 = vadd.f32 %v2552, %v2664
        %2666 = vmatmul.f32.gmra.mxu0 %v2399
        %v2667 = vpop.f32.mrf.mxu0
        %v2668 = vadd.f32 %v2555, %v2667
        %2669 = vmatmul.f32.gmra.mxu0 %v2400
        %v2670 = vpop.f32.mrf.mxu0
        %v2671 = vadd.f32 %v2558, %v2670
        %2672 = vmatmul.f32.gmra.mxu0 %v2401
        %v2673 = vpop.f32.mrf.mxu0
        %v2674 = vadd.f32 %v2561, %v2673
        %2675 = vmatmul.f32.gmra.mxu0 %v2402
        %v2676 = vpop.f32.mrf.mxu0
        %v2677 = vadd.f32 %v2564, %v2676
        %2678 = vmatmul.f32.gmra.mxu0 %v2403
        %v2679 = vpop.f32.mrf.mxu0
        %v2680 = vadd.f32 %v2567, %v2679
        %2681 = vmatmul.f32.gmra.mxu0 %v2404
        %v2682 = vpop.f32.mrf.mxu0
        %v2683 = vadd.f32 %v2570, %v2682
        %2684 = vmatmul.f32.gmra.mxu0 %v2405
        %v2685 = vpop.f32.mrf.mxu0
        %v2686 = vadd.f32 %v2573, %v2685
        %2687 = vmatmul.f32.gmra.mxu0 %v2406
        %v2688 = vpop.f32.mrf.mxu0
        %v2689 = vadd.f32 %v2576, %v2688
        %2690 = vmatmul.f32.gmra.mxu0 %v2407
        %v2691 = vpop.f32.mrf.mxu0
        %v2692 = vadd.f32 %v2579, %v2691
        %2693 = vmatmul.f32.gmra.mxu0 %v2408
        %v2694 = vpop.f32.mrf.mxu0
        %v2695 = vadd.f32 %v2582, %v2694
        %2696 = vmatmul.f32.gmra.mxu0 %v2409
        %v2697 = vpop.f32.mrf.mxu0
        %v2698 = vadd.f32 %v2585, %v2697
        %2699 = vdwg.mxu0
        %v2700 = vld [vmem:[#allocation3 + $0x2] sm:$0xff]
        %v2701 = vld [vmem:[#allocation3 + $0xa] sm:$0xff]
        %v2702 = vld [vmem:[#allocation3 + $0x1a] sm:$0xff]
        %v2703 = vld [vmem:[#allocation3 + $0x22] sm:$0xff]
        %v2704 = vld [vmem:[#allocation3 + $0x32] sm:$0xff]
        %v2705 = vld [vmem:[#allocation3 + $0x3a] sm:$0xff]
        %v2706 = vld [vmem:[#allocation3 + $0x4a] sm:$0xff]
        %v2707 = vld [vmem:[#allocation3 + $0x52] sm:$0xff]
        %v2708 = vld [vmem:[#allocation3 + $0x62] sm:$0xff]
        %v2709 = vld [vmem:[#allocation3 + $0x6a] sm:$0xff]
        %v2710 = vld [vmem:[#allocation3 + $0x7a] sm:$0xff]
        %v2711 = vld [vmem:[#allocation3 + $0x82] sm:$0xff]
        %v2712 = vld [vmem:[#allocation3 + $0x92] sm:$0xff]
        %v2713 = vld [vmem:[#allocation3 + $0x9a] sm:$0xff]
        %v2714 = vld [vmem:[#allocation3 + $0xaa] sm:$0xff]
        %v2715 = vld [vmem:[#allocation3 + $0xb2] sm:$0xff]
        %v2716 = vld [vmem:[#allocation3 + $0xc2] sm:$0xff]
        %v2717 = vld [vmem:[#allocation3 + $0xca] sm:$0xff]
        %v2718 = vld [vmem:[#allocation3 + $0xda] sm:$0xff]
        %v2719 = vld [vmem:[#allocation3 + $0xe2] sm:$0xff]
        %v2720 = vld [vmem:[#allocation3 + $0xf2] sm:$0xff]
        %v2721 = vld [vmem:[#allocation3 + $0xfa] sm:$0xff]
        %v2722 = vld [vmem:[#allocation3 + $0x10a] sm:$0xff]
        %v2723 = vld [vmem:[#allocation3 + $0x112] sm:$0xff]
        %v2724 = vld [vmem:[#allocation3 + $0x122] sm:$0xff]
        %v2725 = vld [vmem:[#allocation3 + $0x12a] sm:$0xff]
        %v2726 = vld [vmem:[#allocation3 + $0x13a] sm:$0xff]
        %v2727 = vld [vmem:[#allocation3 + $0x142] sm:$0xff]
        %v2728 = vld [vmem:[#allocation3 + $0x152] sm:$0xff]
        %v2729 = vld [vmem:[#allocation3 + $0x15a] sm:$0xff]
        %v2730 = vld [vmem:[#allocation3 + $0x16a] sm:$0xff]
        %v2731 = vld [vmem:[#allocation3 + $0x172] sm:$0xff]
        %v2732 = vld [vmem:[#allocation9 + $0x100] sm:$0xff]
        %v2733 = vld [vmem:[#allocation9 + $0x108] sm:$0xff]
        %v2734 = vld [vmem:[#allocation9 + $0x110] sm:$0xff]
        %v2735 = vld [vmem:[#allocation9 + $0x118] sm:$0xff]
        %v2736 = vld [vmem:[#allocation9 + $0x120] sm:$0xff]
        %v2737 = vld [vmem:[#allocation9 + $0x128] sm:$0xff]
        %v2738 = vld [vmem:[#allocation9 + $0x130] sm:$0xff]
        %v2739 = vld [vmem:[#allocation9 + $0x138] sm:$0xff]
        %v2740 = vld [vmem:[#allocation9 + $0x140] sm:$0xff]
        %v2741 = vld [vmem:[#allocation9 + $0x148] sm:$0xff]
        %v2742 = vld [vmem:[#allocation9 + $0x150] sm:$0xff]
        %v2743 = vld [vmem:[#allocation9 + $0x158] sm:$0xff]
        %v2744 = vld [vmem:[#allocation9 + $0x160] sm:$0xff]
        %v2745 = vld [vmem:[#allocation9 + $0x168] sm:$0xff]
        %v2746 = vld [vmem:[#allocation9 + $0x170] sm:$0xff]
        %v2747 = vld [vmem:[#allocation9 + $0x178] sm:$0xff]
        %2748 = vmatpush.msra.mxu0 %v2747
        %2749 = vmatpush.msra.mxu0 %v2746
        %2750 = vmatpush.msra.mxu0 %v2745
        %2751 = vmatpush.msra.mxu0 %v2744
        %2752 = vmatpush.msra.mxu0 %v2743
        %2753 = vmatpush.msra.mxu0 %v2742
        %2754 = vmatpush.msra.mxu0 %v2741
        %2755 = vmatpush.msra.mxu0 %v2740
        %2756 = vmatpush.msra.mxu0 %v2739
        %2757 = vmatpush.msra.mxu0 %v2738
        %2758 = vmatpush.msra.mxu0 %v2737
        %2759 = vmatpush.msra.mxu0 %v2736
        %2760 = vmatpush.msra.mxu0 %v2735
        %2761 = vmatpush.msra.mxu0 %v2734
        %2762 = vmatpush.msra.mxu0 %v2733
        %2763 = vmatpush.msra.mxu0 %v2732
        %2764 = vmatmul.f32.gmra.mxu0 %v2700
        %v2765 = vpop.f32.mrf.mxu0
        %v2766 = vadd.f32 0.0, %v2765
        %2767 = vmatmul.f32.gmra.mxu0 %v2701
        %v2768 = vpop.f32.mrf.mxu0
        %v2769 = vadd.f32 0.0, %v2768
        %2770 = vmatmul.f32.gmra.mxu0 %v2702
        %v2771 = vpop.f32.mrf.mxu0
        %v2772 = vadd.f32 0.0, %v2771
        %2773 = vmatmul.f32.gmra.mxu0 %v2703
        %v2774 = vpop.f32.mrf.mxu0
        %v2775 = vadd.f32 0.0, %v2774
        %2776 = vmatmul.f32.gmra.mxu0 %v2704
        %v2777 = vpop.f32.mrf.mxu0
        %v2778 = vadd.f32 0.0, %v2777
        %2779 = vmatmul.f32.gmra.mxu0 %v2705
        %v2780 = vpop.f32.mrf.mxu0
        %v2781 = vadd.f32 0.0, %v2780
        %2782 = vmatmul.f32.gmra.mxu0 %v2706
        %v2783 = vpop.f32.mrf.mxu0
        %v2784 = vadd.f32 0.0, %v2783
        %2785 = vmatmul.f32.gmra.mxu0 %v2707
        %v2786 = vpop.f32.mrf.mxu0
        %v2787 = vadd.f32 0.0, %v2786
        %2788 = vmatmul.f32.gmra.mxu0 %v2708
        %v2789 = vpop.f32.mrf.mxu0
        %v2790 = vadd.f32 0.0, %v2789
        %2791 = vmatmul.f32.gmra.mxu0 %v2709
        %v2792 = vpop.f32.mrf.mxu0
        %v2793 = vadd.f32 0.0, %v2792
        %2794 = vmatmul.f32.gmra.mxu0 %v2710
        %v2795 = vpop.f32.mrf.mxu0
        %v2796 = vadd.f32 0.0, %v2795
        %2797 = vmatmul.f32.gmra.mxu0 %v2711
        %v2798 = vpop.f32.mrf.mxu0
        %v2799 = vadd.f32 0.0, %v2798
        %2800 = vmatmul.f32.gmra.mxu0 %v2712
        %v2801 = vpop.f32.mrf.mxu0
        %v2802 = vadd.f32 0.0, %v2801
        %2803 = vmatmul.f32.gmra.mxu0 %v2713
        %v2804 = vpop.f32.mrf.mxu0
        %v2805 = vadd.f32 0.0, %v2804
        %2806 = vmatmul.f32.gmra.mxu0 %v2714
        %v2807 = vpop.f32.mrf.mxu0
        %v2808 = vadd.f32 0.0, %v2807
        %2809 = vmatmul.f32.gmra.mxu0 %v2715
        %v2810 = vpop.f32.mrf.mxu0
        %v2811 = vadd.f32 0.0, %v2810
        %2812 = vmatmul.f32.gmra.mxu0 %v2716
        %v2813 = vpop.f32.mrf.mxu0
        %v2814 = vadd.f32 0.0, %v2813
        %2815 = vmatmul.f32.gmra.mxu0 %v2717
        %v2816 = vpop.f32.mrf.mxu0
        %v2817 = vadd.f32 0.0, %v2816
        %2818 = vmatmul.f32.gmra.mxu0 %v2718
        %v2819 = vpop.f32.mrf.mxu0
        %v2820 = vadd.f32 0.0, %v2819
        %2821 = vmatmul.f32.gmra.mxu0 %v2719
        %v2822 = vpop.f32.mrf.mxu0
        %v2823 = vadd.f32 0.0, %v2822
        %2824 = vmatmul.f32.gmra.mxu0 %v2720
        %v2825 = vpop.f32.mrf.mxu0
        %v2826 = vadd.f32 0.0, %v2825
        %2827 = vmatmul.f32.gmra.mxu0 %v2721
        %v2828 = vpop.f32.mrf.mxu0
        %v2829 = vadd.f32 0.0, %v2828
        %2830 = vmatmul.f32.gmra.mxu0 %v2722
        %v2831 = vpop.f32.mrf.mxu0
        %v2832 = vadd.f32 0.0, %v2831
        %2833 = vmatmul.f32.gmra.mxu0 %v2723
        %v2834 = vpop.f32.mrf.mxu0
        %v2835 = vadd.f32 0.0, %v2834
        %2836 = vmatmul.f32.gmra.mxu0 %v2724
        %v2837 = vpop.f32.mrf.mxu0
        %v2838 = vadd.f32 0.0, %v2837
        %2839 = vmatmul.f32.gmra.mxu0 %v2725
        %v2840 = vpop.f32.mrf.mxu0
        %v2841 = vadd.f32 0.0, %v2840
        %2842 = vmatmul.f32.gmra.mxu0 %v2726
        %v2843 = vpop.f32.mrf.mxu0
        %v2844 = vadd.f32 0.0, %v2843
        %2845 = vmatmul.f32.gmra.mxu0 %v2727
        %v2846 = vpop.f32.mrf.mxu0
        %v2847 = vadd.f32 0.0, %v2846
        %2848 = vmatmul.f32.gmra.mxu0 %v2728
        %v2849 = vpop.f32.mrf.mxu0
        %v2850 = vadd.f32 0.0, %v2849
        %2851 = vmatmul.f32.gmra.mxu0 %v2729
        %v2852 = vpop.f32.mrf.mxu0
        %v2853 = vadd.f32 0.0, %v2852
        %2854 = vmatmul.f32.gmra.mxu0 %v2730
        %v2855 = vpop.f32.mrf.mxu0
        %v2856 = vadd.f32 0.0, %v2855
        %2857 = vmatmul.f32.gmra.mxu0 %v2731
        %v2858 = vpop.f32.mrf.mxu0
        %v2859 = vadd.f32 0.0, %v2858
        %2860 = vdwg.mxu0
        %v2861 = vadd.f32 %v2605, %v2766
        %v2862 = vadd.f32 %v2608, %v2769
        %v2863 = vadd.f32 %v2611, %v2772
        %v2864 = vadd.f32 %v2614, %v2775
        %v2865 = vadd.f32 %v2617, %v2778
        %v2866 = vadd.f32 %v2620, %v2781
        %v2867 = vadd.f32 %v2623, %v2784
        %v2868 = vadd.f32 %v2626, %v2787
        %v2869 = vadd.f32 %v2629, %v2790
        %v2870 = vadd.f32 %v2632, %v2793
        %v2871 = vadd.f32 %v2635, %v2796
        %v2872 = vadd.f32 %v2638, %v2799
        %v2873 = vadd.f32 %v2641, %v2802
        %v2874 = vadd.f32 %v2644, %v2805
        %v2875 = vadd.f32 %v2647, %v2808
        %v2876 = vadd.f32 %v2650, %v2811
        %v2877 = vadd.f32 %v2653, %v2814
        %v2878 = vadd.f32 %v2656, %v2817
        %v2879 = vadd.f32 %v2659, %v2820
        %v2880 = vadd.f32 %v2662, %v2823
        %v2881 = vadd.f32 %v2665, %v2826
        %v2882 = vadd.f32 %v2668, %v2829
        %v2883 = vadd.f32 %v2671, %v2832
        %v2884 = vadd.f32 %v2674, %v2835
        %v2885 = vadd.f32 %v2677, %v2838
        %v2886 = vadd.f32 %v2680, %v2841
        %v2887 = vadd.f32 %v2683, %v2844
        %v2888 = vadd.f32 %v2686, %v2847
        %v2889 = vadd.f32 %v2689, %v2850
        %v2890 = vadd.f32 %v2692, %v2853
        %v2891 = vadd.f32 %v2695, %v2856
        %v2892 = vadd.f32 %v2698, %v2859
        %v2893 = vld [vmem:[%s2268] sm:$0xff]
        %v2894 = vld [vmem:[%s2268 + $0x8] sm:$0xff]
        %v2895 = vld [vmem:[%s2268 + $0x18] sm:$0xff]
        %v2896 = vld [vmem:[%s2268 + $0x20] sm:$0xff]
        %v2897 = vld [vmem:[%s2268 + $0x30] sm:$0xff]
        %v2898 = vld [vmem:[%s2268 + $0x38] sm:$0xff]
        %v2899 = vld [vmem:[%s2268 + $0x48] sm:$0xff]
        %v2900 = vld [vmem:[%s2268 + $0x50] sm:$0xff]
        %v2901 = vld [vmem:[%s2268 + $0x60] sm:$0xff]
        %v2902 = vld [vmem:[%s2268 + $0x68] sm:$0xff]
        %v2903 = vld [vmem:[%s2268 + $0x78] sm:$0xff]
        %v2904 = vld [vmem:[%s2268 + $0x80] sm:$0xff]
        %v2905 = vld [vmem:[%s2268 + $0x90] sm:$0xff]
        %v2906 = vld [vmem:[%s2268 + $0x98] sm:$0xff]
        %v2907 = vld [vmem:[%s2268 + $0xa8] sm:$0xff]
        %v2908 = vld [vmem:[%s2268 + $0xb0] sm:$0xff]
        %v2909 = vld [vmem:[%s2268 + $0xc0] sm:$0xff]
        %v2910 = vld [vmem:[%s2268 + $0xc8] sm:$0xff]
        %v2911 = vld [vmem:[%s2268 + $0xd8] sm:$0xff]
        %v2912 = vld [vmem:[%s2268 + $0xe0] sm:$0xff]
        %v2913 = vld [vmem:[%s2268 + $0xf0] sm:$0xff]
        %v2914 = vld [vmem:[%s2268 + $0xf8] sm:$0xff]
        %v2915 = vld [vmem:[%s2268 + $0x108] sm:$0xff]
        %v2916 = vld [vmem:[%s2268 + $0x110] sm:$0xff]
        %v2917 = vld [vmem:[%s2268 + $0x120] sm:$0xff]
        %v2918 = vld [vmem:[%s2268 + $0x128] sm:$0xff]
        %v2919 = vld [vmem:[%s2268 + $0x138] sm:$0xff]
        %v2920 = vld [vmem:[%s2268 + $0x140] sm:$0xff]
        %v2921 = vld [vmem:[%s2268 + $0x150] sm:$0xff]
        %v2922 = vld [vmem:[%s2268 + $0x158] sm:$0xff]
        %v2923 = vld [vmem:[%s2268 + $0x168] sm:$0xff]
        %v2924 = vld [vmem:[%s2268 + $0x170] sm:$0xff]
        %v2925 = vld [vmem:[#allocation9 + $0x180] sm:$0xff]
        %v2926 = vld [vmem:[#allocation9 + $0x188] sm:$0xff]
        %v2927 = vld [vmem:[#allocation9 + $0x190] sm:$0xff]
        %v2928 = vld [vmem:[#allocation9 + $0x198] sm:$0xff]
        %v2929 = vld [vmem:[#allocation9 + $0x1a0] sm:$0xff]
        %v2930 = vld [vmem:[#allocation9 + $0x1a8] sm:$0xff]
        %v2931 = vld [vmem:[#allocation9 + $0x1b0] sm:$0xff]
        %v2932 = vld [vmem:[#allocation9 + $0x1b8] sm:$0xff]
        %v2933 = vld [vmem:[#allocation9 + $0x1c0] sm:$0xff]
        %v2934 = vld [vmem:[#allocation9 + $0x1c8] sm:$0xff]
        %v2935 = vld [vmem:[#allocation9 + $0x1d0] sm:$0xff]
        %v2936 = vld [vmem:[#allocation9 + $0x1d8] sm:$0xff]
        %v2937 = vld [vmem:[#allocation9 + $0x1e0] sm:$0xff]
        %v2938 = vld [vmem:[#allocation9 + $0x1e8] sm:$0xff]
        %v2939 = vld [vmem:[#allocation9 + $0x1f0] sm:$0xff]
        %v2940 = vld [vmem:[#allocation9 + $0x1f8] sm:$0xff]
        %2941 = vmatpush.msra.mxu0 %v2940
        %2942 = vmatpush.msra.mxu0 %v2939
        %2943 = vmatpush.msra.mxu0 %v2938
        %2944 = vmatpush.msra.mxu0 %v2937
        %2945 = vmatpush.msra.mxu0 %v2936
        %2946 = vmatpush.msra.mxu0 %v2935
        %2947 = vmatpush.msra.mxu0 %v2934
        %2948 = vmatpush.msra.mxu0 %v2933
        %2949 = vmatpush.msra.mxu0 %v2932
        %2950 = vmatpush.msra.mxu0 %v2931
        %2951 = vmatpush.msra.mxu0 %v2930
        %2952 = vmatpush.msra.mxu0 %v2929
        %2953 = vmatpush.msra.mxu0 %v2928
        %2954 = vmatpush.msra.mxu0 %v2927
        %2955 = vmatpush.msra.mxu0 %v2926
        %2956 = vmatpush.msra.mxu0 %v2925
        %2957 = vmatmul.f32.gmra.mxu0 %v2893
        %v2958 = vpop.f32.mrf.mxu0
        %v2959 = vadd.f32 0.0, %v2958
        %2960 = vmatmul.f32.gmra.mxu0 %v2894
        %v2961 = vpop.f32.mrf.mxu0
        %v2962 = vadd.f32 0.0, %v2961
        %2963 = vmatmul.f32.gmra.mxu0 %v2895
        %v2964 = vpop.f32.mrf.mxu0
        %v2965 = vadd.f32 0.0, %v2964
        %2966 = vmatmul.f32.gmra.mxu0 %v2896
        %v2967 = vpop.f32.mrf.mxu0
        %v2968 = vadd.f32 0.0, %v2967
        %2969 = vmatmul.f32.gmra.mxu0 %v2897
        %v2970 = vpop.f32.mrf.mxu0
        %v2971 = vadd.f32 0.0, %v2970
        %2972 = vmatmul.f32.gmra.mxu0 %v2898
        %v2973 = vpop.f32.mrf.mxu0
        %v2974 = vadd.f32 0.0, %v2973
        %2975 = vmatmul.f32.gmra.mxu0 %v2899
        %v2976 = vpop.f32.mrf.mxu0
        %v2977 = vadd.f32 0.0, %v2976
        %2978 = vmatmul.f32.gmra.mxu0 %v2900
        %v2979 = vpop.f32.mrf.mxu0
        %v2980 = vadd.f32 0.0, %v2979
        %2981 = vmatmul.f32.gmra.mxu0 %v2901
        %v2982 = vpop.f32.mrf.mxu0
        %v2983 = vadd.f32 0.0, %v2982
        %2984 = vmatmul.f32.gmra.mxu0 %v2902
        %v2985 = vpop.f32.mrf.mxu0
        %v2986 = vadd.f32 0.0, %v2985
        %2987 = vmatmul.f32.gmra.mxu0 %v2903
        %v2988 = vpop.f32.mrf.mxu0
        %v2989 = vadd.f32 0.0, %v2988
        %2990 = vmatmul.f32.gmra.mxu0 %v2904
        %v2991 = vpop.f32.mrf.mxu0
        %v2992 = vadd.f32 0.0, %v2991
        %2993 = vmatmul.f32.gmra.mxu0 %v2905
        %v2994 = vpop.f32.mrf.mxu0
        %v2995 = vadd.f32 0.0, %v2994
        %2996 = vmatmul.f32.gmra.mxu0 %v2906
        %v2997 = vpop.f32.mrf.mxu0
        %v2998 = vadd.f32 0.0, %v2997
        %2999 = vmatmul.f32.gmra.mxu0 %v2907
        %v3000 = vpop.f32.mrf.mxu0
        %v3001 = vadd.f32 0.0, %v3000
        %3002 = vmatmul.f32.gmra.mxu0 %v2908
        %v3003 = vpop.f32.mrf.mxu0
        %v3004 = vadd.f32 0.0, %v3003
        %3005 = vmatmul.f32.gmra.mxu0 %v2909
        %v3006 = vpop.f32.mrf.mxu0
        %v3007 = vadd.f32 0.0, %v3006
        %3008 = vmatmul.f32.gmra.mxu0 %v2910
        %v3009 = vpop.f32.mrf.mxu0
        %v3010 = vadd.f32 0.0, %v3009
        %3011 = vmatmul.f32.gmra.mxu0 %v2911
        %v3012 = vpop.f32.mrf.mxu0
        %v3013 = vadd.f32 0.0, %v3012
        %3014 = vmatmul.f32.gmra.mxu0 %v2912
        %v3015 = vpop.f32.mrf.mxu0
        %v3016 = vadd.f32 0.0, %v3015
        %3017 = vmatmul.f32.gmra.mxu0 %v2913
        %v3018 = vpop.f32.mrf.mxu0
        %v3019 = vadd.f32 0.0, %v3018
        %3020 = vmatmul.f32.gmra.mxu0 %v2914
        %v3021 = vpop.f32.mrf.mxu0
        %v3022 = vadd.f32 0.0, %v3021
        %3023 = vmatmul.f32.gmra.mxu0 %v2915
        %v3024 = vpop.f32.mrf.mxu0
        %v3025 = vadd.f32 0.0, %v3024
        %3026 = vmatmul.f32.gmra.mxu0 %v2916
        %v3027 = vpop.f32.mrf.mxu0
        %v3028 = vadd.f32 0.0, %v3027
        %3029 = vmatmul.f32.gmra.mxu0 %v2917
        %v3030 = vpop.f32.mrf.mxu0
        %v3031 = vadd.f32 0.0, %v3030
        %3032 = vmatmul.f32.gmra.mxu0 %v2918
        %v3033 = vpop.f32.mrf.mxu0
        %v3034 = vadd.f32 0.0, %v3033
        %3035 = vmatmul.f32.gmra.mxu0 %v2919
        %v3036 = vpop.f32.mrf.mxu0
        %v3037 = vadd.f32 0.0, %v3036
        %3038 = vmatmul.f32.gmra.mxu0 %v2920
        %v3039 = vpop.f32.mrf.mxu0
        %v3040 = vadd.f32 0.0, %v3039
        %3041 = vmatmul.f32.gmra.mxu0 %v2921
        %v3042 = vpop.f32.mrf.mxu0
        %v3043 = vadd.f32 0.0, %v3042
        %3044 = vmatmul.f32.gmra.mxu0 %v2922
        %v3045 = vpop.f32.mrf.mxu0
        %v3046 = vadd.f32 0.0, %v3045
        %3047 = vmatmul.f32.gmra.mxu0 %v2923
        %v3048 = vpop.f32.mrf.mxu0
        %v3049 = vadd.f32 0.0, %v3048
        %3050 = vmatmul.f32.gmra.mxu0 %v2924
        %v3051 = vpop.f32.mrf.mxu0
        %v3052 = vadd.f32 0.0, %v3051
        %3053 = vdwg.mxu0
        %v3054 = vadd.f32 %v2861, %v2959
        %v3055 = vadd.f32 %v2862, %v2962
        %v3056 = vadd.f32 %v2863, %v2965
        %v3057 = vadd.f32 %v2864, %v2968
        %v3058 = vadd.f32 %v2865, %v2971
        %v3059 = vadd.f32 %v2866, %v2974
        %v3060 = vadd.f32 %v2867, %v2977
        %v3061 = vadd.f32 %v2868, %v2980
        %v3062 = vadd.f32 %v2869, %v2983
        %v3063 = vadd.f32 %v2870, %v2986
        %v3064 = vadd.f32 %v2871, %v2989
        %v3065 = vadd.f32 %v2872, %v2992
        %v3066 = vadd.f32 %v2873, %v2995
        %v3067 = vadd.f32 %v2874, %v2998
        %v3068 = vadd.f32 %v2875, %v3001
        %v3069 = vadd.f32 %v2876, %v3004
        %v3070 = vadd.f32 %v2877, %v3007
        %v3071 = vadd.f32 %v2878, %v3010
        %v3072 = vadd.f32 %v2879, %v3013
        %v3073 = vadd.f32 %v2880, %v3016
        %v3074 = vadd.f32 %v2881, %v3019
        %v3075 = vadd.f32 %v2882, %v3022
        %v3076 = vadd.f32 %v2883, %v3025
        %v3077 = vadd.f32 %v2884, %v3028
        %v3078 = vadd.f32 %v2885, %v3031
        %v3079 = vadd.f32 %v2886, %v3034
        %v3080 = vadd.f32 %v2887, %v3037
        %v3081 = vadd.f32 %v2888, %v3040
        %v3082 = vadd.f32 %v2889, %v3043
        %v3083 = vadd.f32 %v2890, %v3046
        %v3084 = vadd.f32 %v2891, %v3049
        %v3085 = vadd.f32 %v2892, %v3052
        %v3086 = vld [vmem:[%s2268 + $0x1] sm:$0xff]
        %v3087 = vld [vmem:[%s2268 + $0x9] sm:$0xff]
        %v3088 = vld [vmem:[%s2268 + $0x19] sm:$0xff]
        %v3089 = vld [vmem:[%s2268 + $0x21] sm:$0xff]
        %v3090 = vld [vmem:[%s2268 + $0x31] sm:$0xff]
        %v3091 = vld [vmem:[%s2268 + $0x39] sm:$0xff]
        %v3092 = vld [vmem:[%s2268 + $0x49] sm:$0xff]
        %v3093 = vld [vmem:[%s2268 + $0x51] sm:$0xff]
        %v3094 = vld [vmem:[%s2268 + $0x61] sm:$0xff]
        %v3095 = vld [vmem:[%s2268 + $0x69] sm:$0xff]
        %v3096 = vld [vmem:[%s2268 + $0x79] sm:$0xff]
        %v3097 = vld [vmem:[%s2268 + $0x81] sm:$0xff]
        %v3098 = vld [vmem:[%s2268 + $0x91] sm:$0xff]
        %v3099 = vld [vmem:[%s2268 + $0x99] sm:$0xff]
        %v3100 = vld [vmem:[%s2268 + $0xa9] sm:$0xff]
        %v3101 = vld [vmem:[%s2268 + $0xb1] sm:$0xff]
        %v3102 = vld [vmem:[%s2268 + $0xc1] sm:$0xff]
        %v3103 = vld [vmem:[%s2268 + $0xc9] sm:$0xff]
        %v3104 = vld [vmem:[%s2268 + $0xd9] sm:$0xff]
        %v3105 = vld [vmem:[%s2268 + $0xe1] sm:$0xff]
        %v3106 = vld [vmem:[%s2268 + $0xf1] sm:$0xff]
        %v3107 = vld [vmem:[%s2268 + $0xf9] sm:$0xff]
        %v3108 = vld [vmem:[%s2268 + $0x109] sm:$0xff]
        %v3109 = vld [vmem:[%s2268 + $0x111] sm:$0xff]
        %v3110 = vld [vmem:[%s2268 + $0x121] sm:$0xff]
        %v3111 = vld [vmem:[%s2268 + $0x129] sm:$0xff]
        %v3112 = vld [vmem:[%s2268 + $0x139] sm:$0xff]
        %v3113 = vld [vmem:[%s2268 + $0x141] sm:$0xff]
        %v3114 = vld [vmem:[%s2268 + $0x151] sm:$0xff]
        %v3115 = vld [vmem:[%s2268 + $0x159] sm:$0xff]
        %v3116 = vld [vmem:[%s2268 + $0x169] sm:$0xff]
        %v3117 = vld [vmem:[%s2268 + $0x171] sm:$0xff]
        %v3118 = vld [vmem:[#allocation9 + $0x200] sm:$0xff]
        %v3119 = vld [vmem:[#allocation9 + $0x208] sm:$0xff]
        %v3120 = vld [vmem:[#allocation9 + $0x210] sm:$0xff]
        %v3121 = vld [vmem:[#allocation9 + $0x218] sm:$0xff]
        %v3122 = vld [vmem:[#allocation9 + $0x220] sm:$0xff]
        %v3123 = vld [vmem:[#allocation9 + $0x228] sm:$0xff]
        %v3124 = vld [vmem:[#allocation9 + $0x230] sm:$0xff]
        %v3125 = vld [vmem:[#allocation9 + $0x238] sm:$0xff]
        %v3126 = vld [vmem:[#allocation9 + $0x240] sm:$0xff]
        %v3127 = vld [vmem:[#allocation9 + $0x248] sm:$0xff]
        %v3128 = vld [vmem:[#allocation9 + $0x250] sm:$0xff]
        %v3129 = vld [vmem:[#allocation9 + $0x258] sm:$0xff]
        %v3130 = vld [vmem:[#allocation9 + $0x260] sm:$0xff]
        %v3131 = vld [vmem:[#allocation9 + $0x268] sm:$0xff]
        %v3132 = vld [vmem:[#allocation9 + $0x270] sm:$0xff]
        %v3133 = vld [vmem:[#allocation9 + $0x278] sm:$0xff]
        %3134 = vmatpush.msra.mxu0 %v3133
        %3135 = vmatpush.msra.mxu0 %v3132
        %3136 = vmatpush.msra.mxu0 %v3131
        %3137 = vmatpush.msra.mxu0 %v3130
        %3138 = vmatpush.msra.mxu0 %v3129
        %3139 = vmatpush.msra.mxu0 %v3128
        %3140 = vmatpush.msra.mxu0 %v3127
        %3141 = vmatpush.msra.mxu0 %v3126
        %3142 = vmatpush.msra.mxu0 %v3125
        %3143 = vmatpush.msra.mxu0 %v3124
        %3144 = vmatpush.msra.mxu0 %v3123
        %3145 = vmatpush.msra.mxu0 %v3122
        %3146 = vmatpush.msra.mxu0 %v3121
        %3147 = vmatpush.msra.mxu0 %v3120
        %3148 = vmatpush.msra.mxu0 %v3119
        %3149 = vmatpush.msra.mxu0 %v3118
        %3150 = vmatmul.f32.gmra.mxu0 %v3086
        %v3151 = vpop.f32.mrf.mxu0
        %v3152 = vadd.f32 0.0, %v3151
        %3153 = vmatmul.f32.gmra.mxu0 %v3087
        %v3154 = vpop.f32.mrf.mxu0
        %v3155 = vadd.f32 0.0, %v3154
        %3156 = vmatmul.f32.gmra.mxu0 %v3088
        %v3157 = vpop.f32.mrf.mxu0
        %v3158 = vadd.f32 0.0, %v3157
        %3159 = vmatmul.f32.gmra.mxu0 %v3089
        %v3160 = vpop.f32.mrf.mxu0
        %v3161 = vadd.f32 0.0, %v3160
        %3162 = vmatmul.f32.gmra.mxu0 %v3090
        %v3163 = vpop.f32.mrf.mxu0
        %v3164 = vadd.f32 0.0, %v3163
        %3165 = vmatmul.f32.gmra.mxu0 %v3091
        %v3166 = vpop.f32.mrf.mxu0
        %v3167 = vadd.f32 0.0, %v3166
        %3168 = vmatmul.f32.gmra.mxu0 %v3092
        %v3169 = vpop.f32.mrf.mxu0
        %v3170 = vadd.f32 0.0, %v3169
        %3171 = vmatmul.f32.gmra.mxu0 %v3093
        %v3172 = vpop.f32.mrf.mxu0
        %v3173 = vadd.f32 0.0, %v3172
        %3174 = vmatmul.f32.gmra.mxu0 %v3094
        %v3175 = vpop.f32.mrf.mxu0
        %v3176 = vadd.f32 0.0, %v3175
        %3177 = vmatmul.f32.gmra.mxu0 %v3095
        %v3178 = vpop.f32.mrf.mxu0
        %v3179 = vadd.f32 0.0, %v3178
        %3180 = vmatmul.f32.gmra.mxu0 %v3096
        %v3181 = vpop.f32.mrf.mxu0
        %v3182 = vadd.f32 0.0, %v3181
        %3183 = vmatmul.f32.gmra.mxu0 %v3097
        %v3184 = vpop.f32.mrf.mxu0
        %v3185 = vadd.f32 0.0, %v3184
        %3186 = vmatmul.f32.gmra.mxu0 %v3098
        %v3187 = vpop.f32.mrf.mxu0
        %v3188 = vadd.f32 0.0, %v3187
        %3189 = vmatmul.f32.gmra.mxu0 %v3099
        %v3190 = vpop.f32.mrf.mxu0
        %v3191 = vadd.f32 0.0, %v3190
        %3192 = vmatmul.f32.gmra.mxu0 %v3100
        %v3193 = vpop.f32.mrf.mxu0
        %v3194 = vadd.f32 0.0, %v3193
        %3195 = vmatmul.f32.gmra.mxu0 %v3101
        %v3196 = vpop.f32.mrf.mxu0
        %v3197 = vadd.f32 0.0, %v3196
        %3198 = vmatmul.f32.gmra.mxu0 %v3102
        %v3199 = vpop.f32.mrf.mxu0
        %v3200 = vadd.f32 0.0, %v3199
        %3201 = vmatmul.f32.gmra.mxu0 %v3103
        %v3202 = vpop.f32.mrf.mxu0
        %v3203 = vadd.f32 0.0, %v3202
        %3204 = vmatmul.f32.gmra.mxu0 %v3104
        %v3205 = vpop.f32.mrf.mxu0
        %v3206 = vadd.f32 0.0, %v3205
        %3207 = vmatmul.f32.gmra.mxu0 %v3105
        %v3208 = vpop.f32.mrf.mxu0
        %v3209 = vadd.f32 0.0, %v3208
        %3210 = vmatmul.f32.gmra.mxu0 %v3106
        %v3211 = vpop.f32.mrf.mxu0
        %v3212 = vadd.f32 0.0, %v3211
        %3213 = vmatmul.f32.gmra.mxu0 %v3107
        %v3214 = vpop.f32.mrf.mxu0
        %v3215 = vadd.f32 0.0, %v3214
        %3216 = vmatmul.f32.gmra.mxu0 %v3108
        %v3217 = vpop.f32.mrf.mxu0
        %v3218 = vadd.f32 0.0, %v3217
        %3219 = vmatmul.f32.gmra.mxu0 %v3109
        %v3220 = vpop.f32.mrf.mxu0
        %v3221 = vadd.f32 0.0, %v3220
        %3222 = vmatmul.f32.gmra.mxu0 %v3110
        %v3223 = vpop.f32.mrf.mxu0
        %v3224 = vadd.f32 0.0, %v3223
        %3225 = vmatmul.f32.gmra.mxu0 %v3111
        %v3226 = vpop.f32.mrf.mxu0
        %v3227 = vadd.f32 0.0, %v3226
        %3228 = vmatmul.f32.gmra.mxu0 %v3112
        %v3229 = vpop.f32.mrf.mxu0
        %v3230 = vadd.f32 0.0, %v3229
        %3231 = vmatmul.f32.gmra.mxu0 %v3113
        %v3232 = vpop.f32.mrf.mxu0
        %v3233 = vadd.f32 0.0, %v3232
        %3234 = vmatmul.f32.gmra.mxu0 %v3114
        %v3235 = vpop.f32.mrf.mxu0
        %v3236 = vadd.f32 0.0, %v3235
        %3237 = vmatmul.f32.gmra.mxu0 %v3115
        %v3238 = vpop.f32.mrf.mxu0
        %v3239 = vadd.f32 0.0, %v3238
        %3240 = vmatmul.f32.gmra.mxu0 %v3116
        %v3241 = vpop.f32.mrf.mxu0
        %v3242 = vadd.f32 0.0, %v3241
        %3243 = vmatmul.f32.gmra.mxu0 %v3117
        %v3244 = vpop.f32.mrf.mxu0
        %v3245 = vadd.f32 0.0, %v3244
        %3246 = vdwg.mxu0
        %v3247 = vadd.f32 %v3054, %v3152
        %v3248 = vadd.f32 %v3055, %v3155
        %v3249 = vadd.f32 %v3056, %v3158
        %v3250 = vadd.f32 %v3057, %v3161
        %v3251 = vadd.f32 %v3058, %v3164
        %v3252 = vadd.f32 %v3059, %v3167
        %v3253 = vadd.f32 %v3060, %v3170
        %v3254 = vadd.f32 %v3061, %v3173
        %v3255 = vadd.f32 %v3062, %v3176
        %v3256 = vadd.f32 %v3063, %v3179
        %v3257 = vadd.f32 %v3064, %v3182
        %v3258 = vadd.f32 %v3065, %v3185
        %v3259 = vadd.f32 %v3066, %v3188
        %v3260 = vadd.f32 %v3067, %v3191
        %v3261 = vadd.f32 %v3068, %v3194
        %v3262 = vadd.f32 %v3069, %v3197
        %v3263 = vadd.f32 %v3070, %v3200
        %v3264 = vadd.f32 %v3071, %v3203
        %v3265 = vadd.f32 %v3072, %v3206
        %v3266 = vadd.f32 %v3073, %v3209
        %v3267 = vadd.f32 %v3074, %v3212
        %v3268 = vadd.f32 %v3075, %v3215
        %v3269 = vadd.f32 %v3076, %v3218
        %v3270 = vadd.f32 %v3077, %v3221
        %v3271 = vadd.f32 %v3078, %v3224
        %v3272 = vadd.f32 %v3079, %v3227
        %v3273 = vadd.f32 %v3080, %v3230
        %v3274 = vadd.f32 %v3081, %v3233
        %v3275 = vadd.f32 %v3082, %v3236
        %v3276 = vadd.f32 %v3083, %v3239
        %v3277 = vadd.f32 %v3084, %v3242
        %v3278 = vadd.f32 %v3085, %v3245
        %v3279 = vld [vmem:[%s2268 + $0x2] sm:$0xff]
        %v3280 = vld [vmem:[%s2268 + $0xa] sm:$0xff]
        %v3281 = vld [vmem:[%s2268 + $0x1a] sm:$0xff]
        %v3282 = vld [vmem:[%s2268 + $0x22] sm:$0xff]
        %v3283 = vld [vmem:[%s2268 + $0x32] sm:$0xff]
        %v3284 = vld [vmem:[%s2268 + $0x3a] sm:$0xff]
        %v3285 = vld [vmem:[%s2268 + $0x4a] sm:$0xff]
        %v3286 = vld [vmem:[%s2268 + $0x52] sm:$0xff]
        %v3287 = vld [vmem:[%s2268 + $0x62] sm:$0xff]
        %v3288 = vld [vmem:[%s2268 + $0x6a] sm:$0xff]
        %v3289 = vld [vmem:[%s2268 + $0x7a] sm:$0xff]
        %v3290 = vld [vmem:[%s2268 + $0x82] sm:$0xff]
        %v3291 = vld [vmem:[%s2268 + $0x92] sm:$0xff]
        %v3292 = vld [vmem:[%s2268 + $0x9a] sm:$0xff]
        %v3293 = vld [vmem:[%s2268 + $0xaa] sm:$0xff]
        %v3294 = vld [vmem:[%s2268 + $0xb2] sm:$0xff]
        %v3295 = vld [vmem:[%s2268 + $0xc2] sm:$0xff]
        %v3296 = vld [vmem:[%s2268 + $0xca] sm:$0xff]
        %v3297 = vld [vmem:[%s2268 + $0xda] sm:$0xff]
        %v3298 = vld [vmem:[%s2268 + $0xe2] sm:$0xff]
        %v3299 = vld [vmem:[%s2268 + $0xf2] sm:$0xff]
        %v3300 = vld [vmem:[%s2268 + $0xfa] sm:$0xff]
        %v3301 = vld [vmem:[%s2268 + $0x10a] sm:$0xff]
        %v3302 = vld [vmem:[%s2268 + $0x112] sm:$0xff]
        %v3303 = vld [vmem:[%s2268 + $0x122] sm:$0xff]
        %v3304 = vld [vmem:[%s2268 + $0x12a] sm:$0xff]
        %v3305 = vld [vmem:[%s2268 + $0x13a] sm:$0xff]
        %v3306 = vld [vmem:[%s2268 + $0x142] sm:$0xff]
        %v3307 = vld [vmem:[%s2268 + $0x152] sm:$0xff]
        %v3308 = vld [vmem:[%s2268 + $0x15a] sm:$0xff]
        %v3309 = vld [vmem:[%s2268 + $0x16a] sm:$0xff]
        %v3310 = vld [vmem:[%s2268 + $0x172] sm:$0xff]
        %v3311 = vld [vmem:[#allocation9 + $0x280] sm:$0xff]
        %v3312 = vld [vmem:[#allocation9 + $0x288] sm:$0xff]
        %v3313 = vld [vmem:[#allocation9 + $0x290] sm:$0xff]
        %v3314 = vld [vmem:[#allocation9 + $0x298] sm:$0xff]
        %v3315 = vld [vmem:[#allocation9 + $0x2a0] sm:$0xff]
        %v3316 = vld [vmem:[#allocation9 + $0x2a8] sm:$0xff]
        %v3317 = vld [vmem:[#allocation9 + $0x2b0] sm:$0xff]
        %v3318 = vld [vmem:[#allocation9 + $0x2b8] sm:$0xff]
        %v3319 = vld [vmem:[#allocation9 + $0x2c0] sm:$0xff]
        %v3320 = vld [vmem:[#allocation9 + $0x2c8] sm:$0xff]
        %v3321 = vld [vmem:[#allocation9 + $0x2d0] sm:$0xff]
        %v3322 = vld [vmem:[#allocation9 + $0x2d8] sm:$0xff]
        %v3323 = vld [vmem:[#allocation9 + $0x2e0] sm:$0xff]
        %v3324 = vld [vmem:[#allocation9 + $0x2e8] sm:$0xff]
        %v3325 = vld [vmem:[#allocation9 + $0x2f0] sm:$0xff]
        %v3326 = vld [vmem:[#allocation9 + $0x2f8] sm:$0xff]
        %3327 = vmatpush.msra.mxu0 %v3326
        %3328 = vmatpush.msra.mxu0 %v3325
        %3329 = vmatpush.msra.mxu0 %v3324
        %3330 = vmatpush.msra.mxu0 %v3323
        %3331 = vmatpush.msra.mxu0 %v3322
        %3332 = vmatpush.msra.mxu0 %v3321
        %3333 = vmatpush.msra.mxu0 %v3320
        %3334 = vmatpush.msra.mxu0 %v3319
        %3335 = vmatpush.msra.mxu0 %v3318
        %3336 = vmatpush.msra.mxu0 %v3317
        %3337 = vmatpush.msra.mxu0 %v3316
        %3338 = vmatpush.msra.mxu0 %v3315
        %3339 = vmatpush.msra.mxu0 %v3314
        %3340 = vmatpush.msra.mxu0 %v3313
        %3341 = vmatpush.msra.mxu0 %v3312
        %3342 = vmatpush.msra.mxu0 %v3311
        %3343 = vmatmul.f32.gmra.mxu0 %v3279
        %v3344 = vpop.f32.mrf.mxu0
        %v3345 = vadd.f32 0.0, %v3344
        %3346 = vmatmul.f32.gmra.mxu0 %v3280
        %v3347 = vpop.f32.mrf.mxu0
        %v3348 = vadd.f32 0.0, %v3347
        %3349 = vmatmul.f32.gmra.mxu0 %v3281
        %v3350 = vpop.f32.mrf.mxu0
        %v3351 = vadd.f32 0.0, %v3350
        %3352 = vmatmul.f32.gmra.mxu0 %v3282
        %v3353 = vpop.f32.mrf.mxu0
        %v3354 = vadd.f32 0.0, %v3353
        %3355 = vmatmul.f32.gmra.mxu0 %v3283
        %v3356 = vpop.f32.mrf.mxu0
        %v3357 = vadd.f32 0.0, %v3356
        %3358 = vmatmul.f32.gmra.mxu0 %v3284
        %v3359 = vpop.f32.mrf.mxu0
        %v3360 = vadd.f32 0.0, %v3359
        %3361 = vmatmul.f32.gmra.mxu0 %v3285
        %v3362 = vpop.f32.mrf.mxu0
        %v3363 = vadd.f32 0.0, %v3362
        %3364 = vmatmul.f32.gmra.mxu0 %v3286
        %v3365 = vpop.f32.mrf.mxu0
        %v3366 = vadd.f32 0.0, %v3365
        %3367 = vmatmul.f32.gmra.mxu0 %v3287
        %v3368 = vpop.f32.mrf.mxu0
        %v3369 = vadd.f32 0.0, %v3368
        %3370 = vmatmul.f32.gmra.mxu0 %v3288
        %v3371 = vpop.f32.mrf.mxu0
        %v3372 = vadd.f32 0.0, %v3371
        %3373 = vmatmul.f32.gmra.mxu0 %v3289
        %v3374 = vpop.f32.mrf.mxu0
        %v3375 = vadd.f32 0.0, %v3374
        %3376 = vmatmul.f32.gmra.mxu0 %v3290
        %v3377 = vpop.f32.mrf.mxu0
        %v3378 = vadd.f32 0.0, %v3377
        %3379 = vmatmul.f32.gmra.mxu0 %v3291
        %v3380 = vpop.f32.mrf.mxu0
        %v3381 = vadd.f32 0.0, %v3380
        %3382 = vmatmul.f32.gmra.mxu0 %v3292
        %v3383 = vpop.f32.mrf.mxu0
        %v3384 = vadd.f32 0.0, %v3383
        %3385 = vmatmul.f32.gmra.mxu0 %v3293
        %v3386 = vpop.f32.mrf.mxu0
        %v3387 = vadd.f32 0.0, %v3386
        %3388 = vmatmul.f32.gmra.mxu0 %v3294
        %v3389 = vpop.f32.mrf.mxu0
        %v3390 = vadd.f32 0.0, %v3389
        %3391 = vmatmul.f32.gmra.mxu0 %v3295
        %v3392 = vpop.f32.mrf.mxu0
        %v3393 = vadd.f32 0.0, %v3392
        %3394 = vmatmul.f32.gmra.mxu0 %v3296
        %v3395 = vpop.f32.mrf.mxu0
        %v3396 = vadd.f32 0.0, %v3395
        %3397 = vmatmul.f32.gmra.mxu0 %v3297
        %v3398 = vpop.f32.mrf.mxu0
        %v3399 = vadd.f32 0.0, %v3398
        %3400 = vmatmul.f32.gmra.mxu0 %v3298
        %v3401 = vpop.f32.mrf.mxu0
        %v3402 = vadd.f32 0.0, %v3401
        %3403 = vmatmul.f32.gmra.mxu0 %v3299
        %v3404 = vpop.f32.mrf.mxu0
        %v3405 = vadd.f32 0.0, %v3404
        %3406 = vmatmul.f32.gmra.mxu0 %v3300
        %v3407 = vpop.f32.mrf.mxu0
        %v3408 = vadd.f32 0.0, %v3407
        %3409 = vmatmul.f32.gmra.mxu0 %v3301
        %v3410 = vpop.f32.mrf.mxu0
        %v3411 = vadd.f32 0.0, %v3410
        %3412 = vmatmul.f32.gmra.mxu0 %v3302
        %v3413 = vpop.f32.mrf.mxu0
        %v3414 = vadd.f32 0.0, %v3413
        %3415 = vmatmul.f32.gmra.mxu0 %v3303
        %v3416 = vpop.f32.mrf.mxu0
        %v3417 = vadd.f32 0.0, %v3416
        %3418 = vmatmul.f32.gmra.mxu0 %v3304
        %v3419 = vpop.f32.mrf.mxu0
        %v3420 = vadd.f32 0.0, %v3419
        %3421 = vmatmul.f32.gmra.mxu0 %v3305
        %v3422 = vpop.f32.mrf.mxu0
        %v3423 = vadd.f32 0.0, %v3422
        %3424 = vmatmul.f32.gmra.mxu0 %v3306
        %v3425 = vpop.f32.mrf.mxu0
        %v3426 = vadd.f32 0.0, %v3425
        %3427 = vmatmul.f32.gmra.mxu0 %v3307
        %v3428 = vpop.f32.mrf.mxu0
        %v3429 = vadd.f32 0.0, %v3428
        %3430 = vmatmul.f32.gmra.mxu0 %v3308
        %v3431 = vpop.f32.mrf.mxu0
        %v3432 = vadd.f32 0.0, %v3431
        %3433 = vmatmul.f32.gmra.mxu0 %v3309
        %v3434 = vpop.f32.mrf.mxu0
        %v3435 = vadd.f32 0.0, %v3434
        %3436 = vmatmul.f32.gmra.mxu0 %v3310
        %v3437 = vpop.f32.mrf.mxu0
        %v3438 = vadd.f32 0.0, %v3437
        %3439 = vdwg.mxu0
        %v3440 = vadd.f32 %v3247, %v3345
        %v3441 = vadd.f32 %v3248, %v3348
        %v3442 = vadd.f32 %v3249, %v3351
        %v3443 = vadd.f32 %v3250, %v3354
        %v3444 = vadd.f32 %v3251, %v3357
        %v3445 = vadd.f32 %v3252, %v3360
        %v3446 = vadd.f32 %v3253, %v3363
        %v3447 = vadd.f32 %v3254, %v3366
        %v3448 = vadd.f32 %v3255, %v3369
        %v3449 = vadd.f32 %v3256, %v3372
        %v3450 = vadd.f32 %v3257, %v3375
        %v3451 = vadd.f32 %v3258, %v3378
        %v3452 = vadd.f32 %v3259, %v3381
        %v3453 = vadd.f32 %v3260, %v3384
        %v3454 = vadd.f32 %v3261, %v3387
        %v3455 = vadd.f32 %v3262, %v3390
        %v3456 = vadd.f32 %v3263, %v3393
        %v3457 = vadd.f32 %v3264, %v3396
        %v3458 = vadd.f32 %v3265, %v3399
        %v3459 = vadd.f32 %v3266, %v3402
        %v3460 = vadd.f32 %v3267, %v3405
        %v3461 = vadd.f32 %v3268, %v3408
        %v3462 = vadd.f32 %v3269, %v3411
        %v3463 = vadd.f32 %v3270, %v3414
        %v3464 = vadd.f32 %v3271, %v3417
        %v3465 = vadd.f32 %v3272, %v3420
        %v3466 = vadd.f32 %v3273, %v3423
        %v3467 = vadd.f32 %v3274, %v3426
        %v3468 = vadd.f32 %v3275, %v3429
        %v3469 = vadd.f32 %v3276, %v3432
        %v3470 = vadd.f32 %v3277, %v3435
        %v3471 = vadd.f32 %v3278, %v3438
        %s3472 = scalar_lea.vmem [#allocation3], 48
        %v3473 = vld [vmem:[%s3472] sm:$0xff]
        %v3474 = vld [vmem:[%s3472 + $0x8] sm:$0xff]
        %v3475 = vld [vmem:[%s3472 + $0x18] sm:$0xff]
        %v3476 = vld [vmem:[%s3472 + $0x20] sm:$0xff]
        %v3477 = vld [vmem:[%s3472 + $0x30] sm:$0xff]
        %v3478 = vld [vmem:[%s3472 + $0x38] sm:$0xff]
        %v3479 = vld [vmem:[%s3472 + $0x48] sm:$0xff]
        %v3480 = vld [vmem:[%s3472 + $0x50] sm:$0xff]
        %v3481 = vld [vmem:[%s3472 + $0x60] sm:$0xff]
        %v3482 = vld [vmem:[%s3472 + $0x68] sm:$0xff]
        %v3483 = vld [vmem:[%s3472 + $0x78] sm:$0xff]
        %v3484 = vld [vmem:[%s3472 + $0x80] sm:$0xff]
        %v3485 = vld [vmem:[%s3472 + $0x90] sm:$0xff]
        %v3486 = vld [vmem:[%s3472 + $0x98] sm:$0xff]
        %v3487 = vld [vmem:[%s3472 + $0xa8] sm:$0xff]
        %v3488 = vld [vmem:[%s3472 + $0xb0] sm:$0xff]
        %v3489 = vld [vmem:[%s3472 + $0xc0] sm:$0xff]
        %v3490 = vld [vmem:[%s3472 + $0xc8] sm:$0xff]
        %v3491 = vld [vmem:[%s3472 + $0xd8] sm:$0xff]
        %v3492 = vld [vmem:[%s3472 + $0xe0] sm:$0xff]
        %v3493 = vld [vmem:[%s3472 + $0xf0] sm:$0xff]
        %v3494 = vld [vmem:[%s3472 + $0xf8] sm:$0xff]
        %v3495 = vld [vmem:[%s3472 + $0x108] sm:$0xff]
        %v3496 = vld [vmem:[%s3472 + $0x110] sm:$0xff]
        %v3497 = vld [vmem:[%s3472 + $0x120] sm:$0xff]
        %v3498 = vld [vmem:[%s3472 + $0x128] sm:$0xff]
        %v3499 = vld [vmem:[%s3472 + $0x138] sm:$0xff]
        %v3500 = vld [vmem:[%s3472 + $0x140] sm:$0xff]
        %v3501 = vld [vmem:[%s3472 + $0x150] sm:$0xff]
        %v3502 = vld [vmem:[%s3472 + $0x158] sm:$0xff]
        %v3503 = vld [vmem:[%s3472 + $0x168] sm:$0xff]
        %v3504 = vld [vmem:[%s3472 + $0x170] sm:$0xff]
        %v3505 = vld [vmem:[#allocation9 + $0x300] sm:$0xff]
        %v3506 = vld [vmem:[#allocation9 + $0x308] sm:$0xff]
        %v3507 = vld [vmem:[#allocation9 + $0x310] sm:$0xff]
        %v3508 = vld [vmem:[#allocation9 + $0x318] sm:$0xff]
        %v3509 = vld [vmem:[#allocation9 + $0x320] sm:$0xff]
        %v3510 = vld [vmem:[#allocation9 + $0x328] sm:$0xff]
        %v3511 = vld [vmem:[#allocation9 + $0x330] sm:$0xff]
        %v3512 = vld [vmem:[#allocation9 + $0x338] sm:$0xff]
        %v3513 = vld [vmem:[#allocation9 + $0x340] sm:$0xff]
        %v3514 = vld [vmem:[#allocation9 + $0x348] sm:$0xff]
        %v3515 = vld [vmem:[#allocation9 + $0x350] sm:$0xff]
        %v3516 = vld [vmem:[#allocation9 + $0x358] sm:$0xff]
        %v3517 = vld [vmem:[#allocation9 + $0x360] sm:$0xff]
        %v3518 = vld [vmem:[#allocation9 + $0x368] sm:$0xff]
        %v3519 = vld [vmem:[#allocation9 + $0x370] sm:$0xff]
        %v3520 = vld [vmem:[#allocation9 + $0x378] sm:$0xff]
        %3521 = vmatpush.msra.mxu0 %v3520
        %3522 = vmatpush.msra.mxu0 %v3519
        %3523 = vmatpush.msra.mxu0 %v3518
        %3524 = vmatpush.msra.mxu0 %v3517
        %3525 = vmatpush.msra.mxu0 %v3516
        %3526 = vmatpush.msra.mxu0 %v3515
        %3527 = vmatpush.msra.mxu0 %v3514
        %3528 = vmatpush.msra.mxu0 %v3513
        %3529 = vmatpush.msra.mxu0 %v3512
        %3530 = vmatpush.msra.mxu0 %v3511
        %3531 = vmatpush.msra.mxu0 %v3510
        %3532 = vmatpush.msra.mxu0 %v3509
        %3533 = vmatpush.msra.mxu0 %v3508
        %3534 = vmatpush.msra.mxu0 %v3507
        %3535 = vmatpush.msra.mxu0 %v3506
        %3536 = vmatpush.msra.mxu0 %v3505
        %3537 = vmatmul.f32.gmra.mxu0 %v3473
        %v3538 = vpop.f32.mrf.mxu0
        %v3539 = vadd.f32 0.0, %v3538
        %3540 = vmatmul.f32.gmra.mxu0 %v3474
        %v3541 = vpop.f32.mrf.mxu0
        %v3542 = vadd.f32 0.0, %v3541
        %3543 = vmatmul.f32.gmra.mxu0 %v3475
        %v3544 = vpop.f32.mrf.mxu0
        %v3545 = vadd.f32 0.0, %v3544
        %3546 = vmatmul.f32.gmra.mxu0 %v3476
        %v3547 = vpop.f32.mrf.mxu0
        %v3548 = vadd.f32 0.0, %v3547
        %3549 = vmatmul.f32.gmra.mxu0 %v3477
        %v3550 = vpop.f32.mrf.mxu0
        %v3551 = vadd.f32 0.0, %v3550
        %3552 = vmatmul.f32.gmra.mxu0 %v3478
        %v3553 = vpop.f32.mrf.mxu0
        %v3554 = vadd.f32 0.0, %v3553
        %3555 = vmatmul.f32.gmra.mxu0 %v3479
        %v3556 = vpop.f32.mrf.mxu0
        %v3557 = vadd.f32 0.0, %v3556
        %3558 = vmatmul.f32.gmra.mxu0 %v3480
        %v3559 = vpop.f32.mrf.mxu0
        %v3560 = vadd.f32 0.0, %v3559
        %3561 = vmatmul.f32.gmra.mxu0 %v3481
        %v3562 = vpop.f32.mrf.mxu0
        %v3563 = vadd.f32 0.0, %v3562
        %3564 = vmatmul.f32.gmra.mxu0 %v3482
        %v3565 = vpop.f32.mrf.mxu0
        %v3566 = vadd.f32 0.0, %v3565
        %3567 = vmatmul.f32.gmra.mxu0 %v3483
        %v3568 = vpop.f32.mrf.mxu0
        %v3569 = vadd.f32 0.0, %v3568
        %3570 = vmatmul.f32.gmra.mxu0 %v3484
        %v3571 = vpop.f32.mrf.mxu0
        %v3572 = vadd.f32 0.0, %v3571
        %3573 = vmatmul.f32.gmra.mxu0 %v3485
        %v3574 = vpop.f32.mrf.mxu0
        %v3575 = vadd.f32 0.0, %v3574
        %3576 = vmatmul.f32.gmra.mxu0 %v3486
        %v3577 = vpop.f32.mrf.mxu0
        %v3578 = vadd.f32 0.0, %v3577
        %3579 = vmatmul.f32.gmra.mxu0 %v3487
        %v3580 = vpop.f32.mrf.mxu0
        %v3581 = vadd.f32 0.0, %v3580
        %3582 = vmatmul.f32.gmra.mxu0 %v3488
        %v3583 = vpop.f32.mrf.mxu0
        %v3584 = vadd.f32 0.0, %v3583
        %3585 = vmatmul.f32.gmra.mxu0 %v3489
        %v3586 = vpop.f32.mrf.mxu0
        %v3587 = vadd.f32 0.0, %v3586
        %3588 = vmatmul.f32.gmra.mxu0 %v3490
        %v3589 = vpop.f32.mrf.mxu0
        %v3590 = vadd.f32 0.0, %v3589
        %3591 = vmatmul.f32.gmra.mxu0 %v3491
        %v3592 = vpop.f32.mrf.mxu0
        %v3593 = vadd.f32 0.0, %v3592
        %3594 = vmatmul.f32.gmra.mxu0 %v3492
        %v3595 = vpop.f32.mrf.mxu0
        %v3596 = vadd.f32 0.0, %v3595
        %3597 = vmatmul.f32.gmra.mxu0 %v3493
        %v3598 = vpop.f32.mrf.mxu0
        %v3599 = vadd.f32 0.0, %v3598
        %3600 = vmatmul.f32.gmra.mxu0 %v3494
        %v3601 = vpop.f32.mrf.mxu0
        %v3602 = vadd.f32 0.0, %v3601
        %3603 = vmatmul.f32.gmra.mxu0 %v3495
        %v3604 = vpop.f32.mrf.mxu0
        %v3605 = vadd.f32 0.0, %v3604
        %3606 = vmatmul.f32.gmra.mxu0 %v3496
        %v3607 = vpop.f32.mrf.mxu0
        %v3608 = vadd.f32 0.0, %v3607
        %3609 = vmatmul.f32.gmra.mxu0 %v3497
        %v3610 = vpop.f32.mrf.mxu0
        %v3611 = vadd.f32 0.0, %v3610
        %3612 = vmatmul.f32.gmra.mxu0 %v3498
        %v3613 = vpop.f32.mrf.mxu0
        %v3614 = vadd.f32 0.0, %v3613
        %3615 = vmatmul.f32.gmra.mxu0 %v3499
        %v3616 = vpop.f32.mrf.mxu0
        %v3617 = vadd.f32 0.0, %v3616
        %3618 = vmatmul.f32.gmra.mxu0 %v3500
        %v3619 = vpop.f32.mrf.mxu0
        %v3620 = vadd.f32 0.0, %v3619
        %3621 = vmatmul.f32.gmra.mxu0 %v3501
        %v3622 = vpop.f32.mrf.mxu0
        %v3623 = vadd.f32 0.0, %v3622
        %3624 = vmatmul.f32.gmra.mxu0 %v3502
        %v3625 = vpop.f32.mrf.mxu0
        %v3626 = vadd.f32 0.0, %v3625
        %3627 = vmatmul.f32.gmra.mxu0 %v3503
        %v3628 = vpop.f32.mrf.mxu0
        %v3629 = vadd.f32 0.0, %v3628
        %3630 = vmatmul.f32.gmra.mxu0 %v3504
        %v3631 = vpop.f32.mrf.mxu0
        %v3632 = vadd.f32 0.0, %v3631
        %3633 = vdwg.mxu0
        %v3634 = vadd.f32 %v3440, %v3539
        %v3635 = vadd.f32 %v3441, %v3542
        %v3636 = vadd.f32 %v3442, %v3545
        %v3637 = vadd.f32 %v3443, %v3548
        %v3638 = vadd.f32 %v3444, %v3551
        %v3639 = vadd.f32 %v3445, %v3554
        %v3640 = vadd.f32 %v3446, %v3557
        %v3641 = vadd.f32 %v3447, %v3560
        %v3642 = vadd.f32 %v3448, %v3563
        %v3643 = vadd.f32 %v3449, %v3566
        %v3644 = vadd.f32 %v3450, %v3569
        %v3645 = vadd.f32 %v3451, %v3572
        %v3646 = vadd.f32 %v3452, %v3575
        %v3647 = vadd.f32 %v3453, %v3578
        %v3648 = vadd.f32 %v3454, %v3581
        %v3649 = vadd.f32 %v3455, %v3584
        %v3650 = vadd.f32 %v3456, %v3587
        %v3651 = vadd.f32 %v3457, %v3590
        %v3652 = vadd.f32 %v3458, %v3593
        %v3653 = vadd.f32 %v3459, %v3596
        %v3654 = vadd.f32 %v3460, %v3599
        %v3655 = vadd.f32 %v3461, %v3602
        %v3656 = vadd.f32 %v3462, %v3605
        %v3657 = vadd.f32 %v3463, %v3608
        %v3658 = vadd.f32 %v3464, %v3611
        %v3659 = vadd.f32 %v3465, %v3614
        %v3660 = vadd.f32 %v3466, %v3617
        %v3661 = vadd.f32 %v3467, %v3620
        %v3662 = vadd.f32 %v3468, %v3623
        %v3663 = vadd.f32 %v3469, %v3626
        %v3664 = vadd.f32 %v3470, %v3629
        %v3665 = vadd.f32 %v3471, %v3632
        %v3666 = vld [vmem:[%s3472 + $0x1] sm:$0xff]
        %v3667 = vld [vmem:[%s3472 + $0x9] sm:$0xff]
        %v3668 = vld [vmem:[%s3472 + $0x19] sm:$0xff]
        %v3669 = vld [vmem:[%s3472 + $0x21] sm:$0xff]
        %v3670 = vld [vmem:[%s3472 + $0x31] sm:$0xff]
        %v3671 = vld [vmem:[%s3472 + $0x39] sm:$0xff]
        %v3672 = vld [vmem:[%s3472 + $0x49] sm:$0xff]
        %v3673 = vld [vmem:[%s3472 + $0x51] sm:$0xff]
        %v3674 = vld [vmem:[%s3472 + $0x61] sm:$0xff]
        %v3675 = vld [vmem:[%s3472 + $0x69] sm:$0xff]
        %v3676 = vld [vmem:[%s3472 + $0x79] sm:$0xff]
        %v3677 = vld [vmem:[%s3472 + $0x81] sm:$0xff]
        %v3678 = vld [vmem:[%s3472 + $0x91] sm:$0xff]
        %v3679 = vld [vmem:[%s3472 + $0x99] sm:$0xff]
        %v3680 = vld [vmem:[%s3472 + $0xa9] sm:$0xff]
        %v3681 = vld [vmem:[%s3472 + $0xb1] sm:$0xff]
        %v3682 = vld [vmem:[%s3472 + $0xc1] sm:$0xff]
        %v3683 = vld [vmem:[%s3472 + $0xc9] sm:$0xff]
        %v3684 = vld [vmem:[%s3472 + $0xd9] sm:$0xff]
        %v3685 = vld [vmem:[%s3472 + $0xe1] sm:$0xff]
        %v3686 = vld [vmem:[%s3472 + $0xf1] sm:$0xff]
        %v3687 = vld [vmem:[%s3472 + $0xf9] sm:$0xff]
        %v3688 = vld [vmem:[%s3472 + $0x109] sm:$0xff]
        %v3689 = vld [vmem:[%s3472 + $0x111] sm:$0xff]
        %v3690 = vld [vmem:[%s3472 + $0x121] sm:$0xff]
        %v3691 = vld [vmem:[%s3472 + $0x129] sm:$0xff]
        %v3692 = vld [vmem:[%s3472 + $0x139] sm:$0xff]
        %v3693 = vld [vmem:[%s3472 + $0x141] sm:$0xff]
        %v3694 = vld [vmem:[%s3472 + $0x151] sm:$0xff]
        %v3695 = vld [vmem:[%s3472 + $0x159] sm:$0xff]
        %v3696 = vld [vmem:[%s3472 + $0x169] sm:$0xff]
        %v3697 = vld [vmem:[%s3472 + $0x171] sm:$0xff]
        %v3698 = vld [vmem:[#allocation9 + $0x380] sm:$0xff]
        %v3699 = vld [vmem:[#allocation9 + $0x388] sm:$0xff]
        %v3700 = vld [vmem:[#allocation9 + $0x390] sm:$0xff]
        %v3701 = vld [vmem:[#allocation9 + $0x398] sm:$0xff]
        %v3702 = vld [vmem:[#allocation9 + $0x3a0] sm:$0xff]
        %v3703 = vld [vmem:[#allocation9 + $0x3a8] sm:$0xff]
        %v3704 = vld [vmem:[#allocation9 + $0x3b0] sm:$0xff]
        %v3705 = vld [vmem:[#allocation9 + $0x3b8] sm:$0xff]
        %v3706 = vld [vmem:[#allocation9 + $0x3c0] sm:$0xff]
        %v3707 = vld [vmem:[#allocation9 + $0x3c8] sm:$0xff]
        %v3708 = vld [vmem:[#allocation9 + $0x3d0] sm:$0xff]
        %v3709 = vld [vmem:[#allocation9 + $0x3d8] sm:$0xff]
        %v3710 = vld [vmem:[#allocation9 + $0x3e0] sm:$0xff]
        %v3711 = vld [vmem:[#allocation9 + $0x3e8] sm:$0xff]
        %v3712 = vld [vmem:[#allocation9 + $0x3f0] sm:$0xff]
        %v3713 = vld [vmem:[#allocation9 + $0x3f8] sm:$0xff]
        %3714 = vmatpush.msra.mxu0 %v3713
        %3715 = vmatpush.msra.mxu0 %v3712
        %3716 = vmatpush.msra.mxu0 %v3711
        %3717 = vmatpush.msra.mxu0 %v3710
        %3718 = vmatpush.msra.mxu0 %v3709
        %3719 = vmatpush.msra.mxu0 %v3708
        %3720 = vmatpush.msra.mxu0 %v3707
        %3721 = vmatpush.msra.mxu0 %v3706
        %3722 = vmatpush.msra.mxu0 %v3705
        %3723 = vmatpush.msra.mxu0 %v3704
        %3724 = vmatpush.msra.mxu0 %v3703
        %3725 = vmatpush.msra.mxu0 %v3702
        %3726 = vmatpush.msra.mxu0 %v3701
        %3727 = vmatpush.msra.mxu0 %v3700
        %3728 = vmatpush.msra.mxu0 %v3699
        %3729 = vmatpush.msra.mxu0 %v3698
        %3730 = vmatmul.f32.gmra.mxu0 %v3666
        %v3731 = vpop.f32.mrf.mxu0
        %v3732 = vadd.f32 0.0, %v3731
        %3733 = vmatmul.f32.gmra.mxu0 %v3667
        %v3734 = vpop.f32.mrf.mxu0
        %v3735 = vadd.f32 0.0, %v3734
        %3736 = vmatmul.f32.gmra.mxu0 %v3668
        %v3737 = vpop.f32.mrf.mxu0
        %v3738 = vadd.f32 0.0, %v3737
        %3739 = vmatmul.f32.gmra.mxu0 %v3669
        %v3740 = vpop.f32.mrf.mxu0
        %v3741 = vadd.f32 0.0, %v3740
        %3742 = vmatmul.f32.gmra.mxu0 %v3670
        %v3743 = vpop.f32.mrf.mxu0
        %v3744 = vadd.f32 0.0, %v3743
        %3745 = vmatmul.f32.gmra.mxu0 %v3671
        %v3746 = vpop.f32.mrf.mxu0
        %v3747 = vadd.f32 0.0, %v3746
        %3748 = vmatmul.f32.gmra.mxu0 %v3672
        %v3749 = vpop.f32.mrf.mxu0
        %v3750 = vadd.f32 0.0, %v3749
        %3751 = vmatmul.f32.gmra.mxu0 %v3673
        %v3752 = vpop.f32.mrf.mxu0
        %v3753 = vadd.f32 0.0, %v3752
        %3754 = vmatmul.f32.gmra.mxu0 %v3674
        %v3755 = vpop.f32.mrf.mxu0
        %v3756 = vadd.f32 0.0, %v3755
        %3757 = vmatmul.f32.gmra.mxu0 %v3675
        %v3758 = vpop.f32.mrf.mxu0
        %v3759 = vadd.f32 0.0, %v3758
        %3760 = vmatmul.f32.gmra.mxu0 %v3676
        %v3761 = vpop.f32.mrf.mxu0
        %v3762 = vadd.f32 0.0, %v3761
        %3763 = vmatmul.f32.gmra.mxu0 %v3677
        %v3764 = vpop.f32.mrf.mxu0
        %v3765 = vadd.f32 0.0, %v3764
        %3766 = vmatmul.f32.gmra.mxu0 %v3678
        %v3767 = vpop.f32.mrf.mxu0
        %v3768 = vadd.f32 0.0, %v3767
        %3769 = vmatmul.f32.gmra.mxu0 %v3679
        %v3770 = vpop.f32.mrf.mxu0
        %v3771 = vadd.f32 0.0, %v3770
        %3772 = vmatmul.f32.gmra.mxu0 %v3680
        %v3773 = vpop.f32.mrf.mxu0
        %v3774 = vadd.f32 0.0, %v3773
        %3775 = vmatmul.f32.gmra.mxu0 %v3681
        %v3776 = vpop.f32.mrf.mxu0
        %v3777 = vadd.f32 0.0, %v3776
        %3778 = vmatmul.f32.gmra.mxu0 %v3682
        %v3779 = vpop.f32.mrf.mxu0
        %v3780 = vadd.f32 0.0, %v3779
        %3781 = vmatmul.f32.gmra.mxu0 %v3683
        %v3782 = vpop.f32.mrf.mxu0
        %v3783 = vadd.f32 0.0, %v3782
        %3784 = vmatmul.f32.gmra.mxu0 %v3684
        %v3785 = vpop.f32.mrf.mxu0
        %v3786 = vadd.f32 0.0, %v3785
        %3787 = vmatmul.f32.gmra.mxu0 %v3685
        %v3788 = vpop.f32.mrf.mxu0
        %v3789 = vadd.f32 0.0, %v3788
        %3790 = vmatmul.f32.gmra.mxu0 %v3686
        %v3791 = vpop.f32.mrf.mxu0
        %v3792 = vadd.f32 0.0, %v3791
        %3793 = vmatmul.f32.gmra.mxu0 %v3687
        %v3794 = vpop.f32.mrf.mxu0
        %v3795 = vadd.f32 0.0, %v3794
        %3796 = vmatmul.f32.gmra.mxu0 %v3688
        %v3797 = vpop.f32.mrf.mxu0
        %v3798 = vadd.f32 0.0, %v3797
        %3799 = vmatmul.f32.gmra.mxu0 %v3689
        %v3800 = vpop.f32.mrf.mxu0
        %v3801 = vadd.f32 0.0, %v3800
        %3802 = vmatmul.f32.gmra.mxu0 %v3690
        %v3803 = vpop.f32.mrf.mxu0
        %v3804 = vadd.f32 0.0, %v3803
        %3805 = vmatmul.f32.gmra.mxu0 %v3691
        %v3806 = vpop.f32.mrf.mxu0
        %v3807 = vadd.f32 0.0, %v3806
        %3808 = vmatmul.f32.gmra.mxu0 %v3692
        %v3809 = vpop.f32.mrf.mxu0
        %v3810 = vadd.f32 0.0, %v3809
        %3811 = vmatmul.f32.gmra.mxu0 %v3693
        %v3812 = vpop.f32.mrf.mxu0
        %v3813 = vadd.f32 0.0, %v3812
        %3814 = vmatmul.f32.gmra.mxu0 %v3694
        %v3815 = vpop.f32.mrf.mxu0
        %v3816 = vadd.f32 0.0, %v3815
        %3817 = vmatmul.f32.gmra.mxu0 %v3695
        %v3818 = vpop.f32.mrf.mxu0
        %v3819 = vadd.f32 0.0, %v3818
        %3820 = vmatmul.f32.gmra.mxu0 %v3696
        %v3821 = vpop.f32.mrf.mxu0
        %v3822 = vadd.f32 0.0, %v3821
        %3823 = vmatmul.f32.gmra.mxu0 %v3697
        %v3824 = vpop.f32.mrf.mxu0
        %v3825 = vadd.f32 0.0, %v3824
        %3826 = vdwg.mxu0
        %v3827 = vadd.f32 %v3634, %v3732
        %v3828 = vadd.f32 %v3635, %v3735
        %v3829 = vadd.f32 %v3636, %v3738
        %v3830 = vadd.f32 %v3637, %v3741
        %v3831 = vadd.f32 %v3638, %v3744
        %v3832 = vadd.f32 %v3639, %v3747
        %v3833 = vadd.f32 %v3640, %v3750
        %v3834 = vadd.f32 %v3641, %v3753
        %v3835 = vadd.f32 %v3642, %v3756
        %v3836 = vadd.f32 %v3643, %v3759
        %v3837 = vadd.f32 %v3644, %v3762
        %v3838 = vadd.f32 %v3645, %v3765
        %v3839 = vadd.f32 %v3646, %v3768
        %v3840 = vadd.f32 %v3647, %v3771
        %v3841 = vadd.f32 %v3648, %v3774
        %v3842 = vadd.f32 %v3649, %v3777
        %v3843 = vadd.f32 %v3650, %v3780
        %v3844 = vadd.f32 %v3651, %v3783
        %v3845 = vadd.f32 %v3652, %v3786
        %v3846 = vadd.f32 %v3653, %v3789
        %v3847 = vadd.f32 %v3654, %v3792
        %v3848 = vadd.f32 %v3655, %v3795
        %v3849 = vadd.f32 %v3656, %v3798
        %v3850 = vadd.f32 %v3657, %v3801
        %v3851 = vadd.f32 %v3658, %v3804
        %v3852 = vadd.f32 %v3659, %v3807
        %v3853 = vadd.f32 %v3660, %v3810
        %v3854 = vadd.f32 %v3661, %v3813
        %v3855 = vadd.f32 %v3662, %v3816
        %v3856 = vadd.f32 %v3663, %v3819
        %v3857 = vadd.f32 %v3664, %v3822
        %v3858 = vadd.f32 %v3665, %v3825
        %v3859 = vld [vmem:[%s3472 + $0x2] sm:$0xff]
        %v3860 = vld [vmem:[%s3472 + $0xa] sm:$0xff]
        %v3861 = vld [vmem:[%s3472 + $0x1a] sm:$0xff]
        %v3862 = vld [vmem:[%s3472 + $0x22] sm:$0xff]
        %v3863 = vld [vmem:[%s3472 + $0x32] sm:$0xff]
        %v3864 = vld [vmem:[%s3472 + $0x3a] sm:$0xff]
        %v3865 = vld [vmem:[%s3472 + $0x4a] sm:$0xff]
        %v3866 = vld [vmem:[%s3472 + $0x52] sm:$0xff]
        %v3867 = vld [vmem:[%s3472 + $0x62] sm:$0xff]
        %v3868 = vld [vmem:[%s3472 + $0x6a] sm:$0xff]
        %v3869 = vld [vmem:[%s3472 + $0x7a] sm:$0xff]
        %v3870 = vld [vmem:[%s3472 + $0x82] sm:$0xff]
        %v3871 = vld [vmem:[%s3472 + $0x92] sm:$0xff]
        %v3872 = vld [vmem:[%s3472 + $0x9a] sm:$0xff]
        %v3873 = vld [vmem:[%s3472 + $0xaa] sm:$0xff]
        %v3874 = vld [vmem:[%s3472 + $0xb2] sm:$0xff]
        %v3875 = vld [vmem:[%s3472 + $0xc2] sm:$0xff]
        %v3876 = vld [vmem:[%s3472 + $0xca] sm:$0xff]
        %v3877 = vld [vmem:[%s3472 + $0xda] sm:$0xff]
        %v3878 = vld [vmem:[%s3472 + $0xe2] sm:$0xff]
        %v3879 = vld [vmem:[%s3472 + $0xf2] sm:$0xff]
        %v3880 = vld [vmem:[%s3472 + $0xfa] sm:$0xff]
        %v3881 = vld [vmem:[%s3472 + $0x10a] sm:$0xff]
        %v3882 = vld [vmem:[%s3472 + $0x112] sm:$0xff]
        %v3883 = vld [vmem:[%s3472 + $0x122] sm:$0xff]
        %v3884 = vld [vmem:[%s3472 + $0x12a] sm:$0xff]
        %v3885 = vld [vmem:[%s3472 + $0x13a] sm:$0xff]
        %v3886 = vld [vmem:[%s3472 + $0x142] sm:$0xff]
        %v3887 = vld [vmem:[%s3472 + $0x152] sm:$0xff]
        %v3888 = vld [vmem:[%s3472 + $0x15a] sm:$0xff]
        %v3889 = vld [vmem:[%s3472 + $0x16a] sm:$0xff]
        %v3890 = vld [vmem:[%s3472 + $0x172] sm:$0xff]
        %v3891 = vld [vmem:[#allocation9 + $0x400] sm:$0xff]
        %v3892 = vld [vmem:[#allocation9 + $0x408] sm:$0xff]
        %v3893 = vld [vmem:[#allocation9 + $0x410] sm:$0xff]
        %v3894 = vld [vmem:[#allocation9 + $0x418] sm:$0xff]
        %v3895 = vld [vmem:[#allocation9 + $0x420] sm:$0xff]
        %v3896 = vld [vmem:[#allocation9 + $0x428] sm:$0xff]
        %v3897 = vld [vmem:[#allocation9 + $0x430] sm:$0xff]
        %v3898 = vld [vmem:[#allocation9 + $0x438] sm:$0xff]
        %v3899 = vld [vmem:[#allocation9 + $0x440] sm:$0xff]
        %v3900 = vld [vmem:[#allocation9 + $0x448] sm:$0xff]
        %v3901 = vld [vmem:[#allocation9 + $0x450] sm:$0xff]
        %v3902 = vld [vmem:[#allocation9 + $0x458] sm:$0xff]
        %v3903 = vld [vmem:[#allocation9 + $0x460] sm:$0xff]
        %v3904 = vld [vmem:[#allocation9 + $0x468] sm:$0xff]
        %v3905 = vld [vmem:[#allocation9 + $0x470] sm:$0xff]
        %v3906 = vld [vmem:[#allocation9 + $0x478] sm:$0xff]
        %3907 = vmatpush.msra.mxu0 %v3906
        %3908 = vmatpush.msra.mxu0 %v3905
        %3909 = vmatpush.msra.mxu0 %v3904
        %3910 = vmatpush.msra.mxu0 %v3903
        %3911 = vmatpush.msra.mxu0 %v3902
        %3912 = vmatpush.msra.mxu0 %v3901
        %3913 = vmatpush.msra.mxu0 %v3900
        %3914 = vmatpush.msra.mxu0 %v3899
        %3915 = vmatpush.msra.mxu0 %v3898
        %3916 = vmatpush.msra.mxu0 %v3897
        %3917 = vmatpush.msra.mxu0 %v3896
        %3918 = vmatpush.msra.mxu0 %v3895
        %3919 = vmatpush.msra.mxu0 %v3894
        %3920 = vmatpush.msra.mxu0 %v3893
        %3921 = vmatpush.msra.mxu0 %v3892
        %3922 = vmatpush.msra.mxu0 %v3891
        %3923 = vmatmul.f32.gmra.mxu0 %v3859
        %v3924 = vpop.f32.mrf.mxu0
        %v3925 = vadd.f32 0.0, %v3924
        %3926 = vmatmul.f32.gmra.mxu0 %v3860
        %v3927 = vpop.f32.mrf.mxu0
        %v3928 = vadd.f32 0.0, %v3927
        %3929 = vmatmul.f32.gmra.mxu0 %v3861
        %v3930 = vpop.f32.mrf.mxu0
        %v3931 = vadd.f32 0.0, %v3930
        %3932 = vmatmul.f32.gmra.mxu0 %v3862
        %v3933 = vpop.f32.mrf.mxu0
        %v3934 = vadd.f32 0.0, %v3933
        %3935 = vmatmul.f32.gmra.mxu0 %v3863
        %v3936 = vpop.f32.mrf.mxu0
        %v3937 = vadd.f32 0.0, %v3936
        %3938 = vmatmul.f32.gmra.mxu0 %v3864
        %v3939 = vpop.f32.mrf.mxu0
        %v3940 = vadd.f32 0.0, %v3939
        %3941 = vmatmul.f32.gmra.mxu0 %v3865
        %v3942 = vpop.f32.mrf.mxu0
        %v3943 = vadd.f32 0.0, %v3942
        %3944 = vmatmul.f32.gmra.mxu0 %v3866
        %v3945 = vpop.f32.mrf.mxu0
        %v3946 = vadd.f32 0.0, %v3945
        %3947 = vmatmul.f32.gmra.mxu0 %v3867
        %v3948 = vpop.f32.mrf.mxu0
        %v3949 = vadd.f32 0.0, %v3948
        %3950 = vmatmul.f32.gmra.mxu0 %v3868
        %v3951 = vpop.f32.mrf.mxu0
        %v3952 = vadd.f32 0.0, %v3951
        %3953 = vmatmul.f32.gmra.mxu0 %v3869
        %v3954 = vpop.f32.mrf.mxu0
        %v3955 = vadd.f32 0.0, %v3954
        %3956 = vmatmul.f32.gmra.mxu0 %v3870
        %v3957 = vpop.f32.mrf.mxu0
        %v3958 = vadd.f32 0.0, %v3957
        %3959 = vmatmul.f32.gmra.mxu0 %v3871
        %v3960 = vpop.f32.mrf.mxu0
        %v3961 = vadd.f32 0.0, %v3960
        %3962 = vmatmul.f32.gmra.mxu0 %v3872
        %v3963 = vpop.f32.mrf.mxu0
        %v3964 = vadd.f32 0.0, %v3963
        %3965 = vmatmul.f32.gmra.mxu0 %v3873
        %v3966 = vpop.f32.mrf.mxu0
        %v3967 = vadd.f32 0.0, %v3966
        %3968 = vmatmul.f32.gmra.mxu0 %v3874
        %v3969 = vpop.f32.mrf.mxu0
        %v3970 = vadd.f32 0.0, %v3969
        %3971 = vmatmul.f32.gmra.mxu0 %v3875
        %v3972 = vpop.f32.mrf.mxu0
        %v3973 = vadd.f32 0.0, %v3972
        %3974 = vmatmul.f32.gmra.mxu0 %v3876
        %v3975 = vpop.f32.mrf.mxu0
        %v3976 = vadd.f32 0.0, %v3975
        %3977 = vmatmul.f32.gmra.mxu0 %v3877
        %v3978 = vpop.f32.mrf.mxu0
        %v3979 = vadd.f32 0.0, %v3978
        %3980 = vmatmul.f32.gmra.mxu0 %v3878
        %v3981 = vpop.f32.mrf.mxu0
        %v3982 = vadd.f32 0.0, %v3981
        %3983 = vmatmul.f32.gmra.mxu0 %v3879
        %v3984 = vpop.f32.mrf.mxu0
        %v3985 = vadd.f32 0.0, %v3984
        %3986 = vmatmul.f32.gmra.mxu0 %v3880
        %v3987 = vpop.f32.mrf.mxu0
        %v3988 = vadd.f32 0.0, %v3987
        %3989 = vmatmul.f32.gmra.mxu0 %v3881
        %v3990 = vpop.f32.mrf.mxu0
        %v3991 = vadd.f32 0.0, %v3990
        %3992 = vmatmul.f32.gmra.mxu0 %v3882
        %v3993 = vpop.f32.mrf.mxu0
        %v3994 = vadd.f32 0.0, %v3993
        %3995 = vmatmul.f32.gmra.mxu0 %v3883
        %v3996 = vpop.f32.mrf.mxu0
        %v3997 = vadd.f32 0.0, %v3996
        %3998 = vmatmul.f32.gmra.mxu0 %v3884
        %v3999 = vpop.f32.mrf.mxu0
        %v4000 = vadd.f32 0.0, %v3999
        %4001 = vmatmul.f32.gmra.mxu0 %v3885
        %v4002 = vpop.f32.mrf.mxu0
        %v4003 = vadd.f32 0.0, %v4002
        %4004 = vmatmul.f32.gmra.mxu0 %v3886
        %v4005 = vpop.f32.mrf.mxu0
        %v4006 = vadd.f32 0.0, %v4005
        %4007 = vmatmul.f32.gmra.mxu0 %v3887
        %v4008 = vpop.f32.mrf.mxu0
        %v4009 = vadd.f32 0.0, %v4008
        %4010 = vmatmul.f32.gmra.mxu0 %v3888
        %v4011 = vpop.f32.mrf.mxu0
        %v4012 = vadd.f32 0.0, %v4011
        %4013 = vmatmul.f32.gmra.mxu0 %v3889
        %v4014 = vpop.f32.mrf.mxu0
        %v4015 = vadd.f32 0.0, %v4014
        %4016 = vmatmul.f32.gmra.mxu0 %v3890
        %v4017 = vpop.f32.mrf.mxu0
        %v4018 = vadd.f32 0.0, %v4017
        %4019 = vdwg.mxu0
        %v4020 = vadd.f32 %v3827, %v3925
        %v4021 = vadd.f32 %v3828, %v3928
        %v4022 = vadd.f32 %v3829, %v3931
        %v4023 = vadd.f32 %v3830, %v3934
        %v4024 = vadd.f32 %v3831, %v3937
        %v4025 = vadd.f32 %v3832, %v3940
        %v4026 = vadd.f32 %v3833, %v3943
        %v4027 = vadd.f32 %v3834, %v3946
        %v4028 = vadd.f32 %v3835, %v3949
        %v4029 = vadd.f32 %v3836, %v3952
        %v4030 = vadd.f32 %v3837, %v3955
        %v4031 = vadd.f32 %v3838, %v3958
        %v4032 = vadd.f32 %v3839, %v3961
        %v4033 = vadd.f32 %v3840, %v3964
        %v4034 = vadd.f32 %v3841, %v3967
        %v4035 = vadd.f32 %v3842, %v3970
        %v4036 = vadd.f32 %v3843, %v3973
        %v4037 = vadd.f32 %v3844, %v3976
        %v4038 = vadd.f32 %v3845, %v3979
        %v4039 = vadd.f32 %v3846, %v3982
        %v4040 = vadd.f32 %v3847, %v3985
        %v4041 = vadd.f32 %v3848, %v3988
        %v4042 = vadd.f32 %v3849, %v3991
        %v4043 = vadd.f32 %v3850, %v3994
        %v4044 = vadd.f32 %v3851, %v3997
        %v4045 = vadd.f32 %v3852, %v4000
        %v4046 = vadd.f32 %v3853, %v4003
        %v4047 = vadd.f32 %v3854, %v4006
        %v4048 = vadd.f32 %v3855, %v4009
        %v4049 = vadd.f32 %v3856, %v4012
        %v4050 = vadd.f32 %v3857, %v4015
        %v4051 = vadd.f32 %v3858, %v4018
        %v4052 = vadd.f32 %v4020, %v4021
        %v4053 = vadd.f32 %v4052, %v4022
        %v4054 = vadd.f32 %v4053, %v4023
        %v4055 = vadd.f32 %v4054, %v4024
        %v4056 = vadd.f32 %v4055, %v4025
        %v4057 = vadd.f32 %v4056, %v4026
        %v4058 = vadd.f32 %v4057, %v4027
        %v4059 = vadd.f32 %v4058, %v4028
        %v4060 = vadd.f32 %v4059, %v4029
        %v4061 = vadd.f32 %v4060, %v4030
        %v4062 = vadd.f32 %v4061, %v4031
        %v4063 = vadd.f32 %v4062, %v4032
        %v4064 = vadd.f32 %v4063, %v4033
        %v4065 = vadd.f32 %v4064, %v4034
        %v4066 = vadd.f32 %v4065, %v4035
        %v4067 = vadd.f32 %v4066, %v4036
        %v4068 = vadd.f32 %v4067, %v4037
        %v4069 = vadd.f32 %v4068, %v4038
        %v4070 = vadd.f32 %v4069, %v4039
        %v4071 = vadd.f32 %v4070, %v4040
        %v4072 = vadd.f32 %v4071, %v4041
        %v4073 = vadd.f32 %v4072, %v4042
        %v4074 = vadd.f32 %v4073, %v4043
        %v4075 = vadd.f32 %v4074, %v4044
        %v4076 = vadd.f32 %v4075, %v4045
        %v4077 = vadd.f32 %v4076, %v4046
        %v4078 = vadd.f32 %v4077, %v4047
        %v4079 = vadd.f32 %v4078, %v4048
        %v4080 = vadd.f32 %v4079, %v4049
        %v4081 = vadd.f32 %v4080, %v4050
        %v4082 = vadd.f32 %v4081, %v4051
        %v4083 = vrot.slane %v4082, 4
        %v4084 = vadd.f32 %v4082, %v4083
        %v4085 = vrot.slane %v4084, 2
        %v4086 = vadd.f32 %v4084, %v4085
        %v4087 = vrot.slane %v4086, 1
        %v4088 = vadd.f32 %v4086, %v4087
        %v4089 = vmul.f32 %v4088, %v2089
        %v4090 = vsub.f32 %v4020, %v4089
        %v4091 = vsub.f32 %v4021, %v4089
        %v4092 = vsub.f32 %v4022, %v4089
        %v4093 = vsub.f32 %v4023, %v4089
        %v4094 = vsub.f32 %v4024, %v4089
        %v4095 = vsub.f32 %v4025, %v4089
        %v4096 = vsub.f32 %v4026, %v4089
        %v4097 = vsub.f32 %v4027, %v4089
        %v4098 = vsub.f32 %v4028, %v4089
        %v4099 = vsub.f32 %v4029, %v4089
        %v4100 = vsub.f32 %v4030, %v4089
        %v4101 = vsub.f32 %v4031, %v4089
        %v4102 = vsub.f32 %v4032, %v4089
        %v4103 = vsub.f32 %v4033, %v4089
        %v4104 = vsub.f32 %v4034, %v4089
        %v4105 = vsub.f32 %v4035, %v4089
        %v4106 = vsub.f32 %v4036, %v4089
        %v4107 = vsub.f32 %v4037, %v4089
        %v4108 = vsub.f32 %v4038, %v4089
        %v4109 = vsub.f32 %v4039, %v4089
        %v4110 = vsub.f32 %v4040, %v4089
        %v4111 = vsub.f32 %v4041, %v4089
        %v4112 = vsub.f32 %v4042, %v4089
        %v4113 = vsub.f32 %v4043, %v4089
        %v4114 = vsub.f32 %v4044, %v4089
        %v4115 = vsub.f32 %v4045, %v4089
        %v4116 = vsub.f32 %v4046, %v4089
        %v4117 = vsub.f32 %v4047, %v4089
        %v4118 = vsub.f32 %v4048, %v4089
        %v4119 = vsub.f32 %v4049, %v4089
        %v4120 = vsub.f32 %v4050, %v4089
        %v4121 = vsub.f32 %v4051, %v4089
        %v4122 = vmul.f32 %v4090, %v4090
        %v4123 = vmul.f32 %v4091, %v4091
        %v4124 = vmul.f32 %v4092, %v4092
        %v4125 = vmul.f32 %v4093, %v4093
        %v4126 = vmul.f32 %v4094, %v4094
        %v4127 = vmul.f32 %v4095, %v4095
        %v4128 = vmul.f32 %v4096, %v4096
        %v4129 = vmul.f32 %v4097, %v4097
        %v4130 = vmul.f32 %v4098, %v4098
        %v4131 = vmul.f32 %v4099, %v4099
        %v4132 = vmul.f32 %v4100, %v4100
        %v4133 = vmul.f32 %v4101, %v4101
        %v4134 = vmul.f32 %v4102, %v4102
        %v4135 = vmul.f32 %v4103, %v4103
        %v4136 = vmul.f32 %v4104, %v4104
        %v4137 = vmul.f32 %v4105, %v4105
        %v4138 = vmul.f32 %v4106, %v4106
        %v4139 = vmul.f32 %v4107, %v4107
        %v4140 = vmul.f32 %v4108, %v4108
        %v4141 = vmul.f32 %v4109, %v4109
        %v4142 = vmul.f32 %v4110, %v4110
        %v4143 = vmul.f32 %v4111, %v4111
        %v4144 = vmul.f32 %v4112, %v4112
        %v4145 = vmul.f32 %v4113, %v4113
        %v4146 = vmul.f32 %v4114, %v4114
        %v4147 = vmul.f32 %v4115, %v4115
        %v4148 = vmul.f32 %v4116, %v4116
        %v4149 = vmul.f32 %v4117, %v4117
        %v4150 = vmul.f32 %v4118, %v4118
        %v4151 = vmul.f32 %v4119, %v4119
        %v4152 = vmul.f32 %v4120, %v4120
        %v4153 = vmul.f32 %v4121, %v4121
        %v4154 = vadd.f32 %v4122, %v4123
        %v4155 = vadd.f32 %v4154, %v4124
        %v4156 = vadd.f32 %v4155, %v4125
        %v4157 = vadd.f32 %v4156, %v4126
        %v4158 = vadd.f32 %v4157, %v4127
        %v4159 = vadd.f32 %v4158, %v4128
        %v4160 = vadd.f32 %v4159, %v4129
        %v4161 = vadd.f32 %v4160, %v4130
        %v4162 = vadd.f32 %v4161, %v4131
        %v4163 = vadd.f32 %v4162, %v4132
        %v4164 = vadd.f32 %v4163, %v4133
        %v4165 = vadd.f32 %v4164, %v4134
        %v4166 = vadd.f32 %v4165, %v4135
        %v4167 = vadd.f32 %v4166, %v4136
        %v4168 = vadd.f32 %v4167, %v4137
        %v4169 = vadd.f32 %v4168, %v4138
        %v4170 = vadd.f32 %v4169, %v4139
        %v4171 = vadd.f32 %v4170, %v4140
        %v4172 = vadd.f32 %v4171, %v4141
        %v4173 = vadd.f32 %v4172, %v4142
        %v4174 = vadd.f32 %v4173, %v4143
        %v4175 = vadd.f32 %v4174, %v4144
        %v4176 = vadd.f32 %v4175, %v4145
        %v4177 = vadd.f32 %v4176, %v4146
        %v4178 = vadd.f32 %v4177, %v4147
        %v4179 = vadd.f32 %v4178, %v4148
        %v4180 = vadd.f32 %v4179, %v4149
        %v4181 = vadd.f32 %v4180, %v4150
        %v4182 = vadd.f32 %v4181, %v4151
        %v4183 = vadd.f32 %v4182, %v4152
        %v4184 = vadd.f32 %v4183, %v4153
        %v4185 = vrot.slane %v4184, 4
        %v4186 = vadd.f32 %v4184, %v4185
        %v4187 = vrot.slane %v4186, 2
        %v4188 = vadd.f32 %v4186, %v4187
        %v4189 = vrot.slane %v4188, 1
        %v4190 = vadd.f32 %v4188, %v4189
        %v4191 = vmul.f32 %v4190, %v2089
        %v4192 = vadd.f32 %v4191, 1e-05
        %v4193 = vrsqrt.pop %v4192
        %v4194 = vmul.f32 %v4193, %v4192
        %v4195 = vmul.f32 %v4194, %v4193
        %v4196 = vmul.f32 0.5, %v4195
        %v4197 = vsub.f32 1.5, %v4196
        %v4198 = vmul.f32 %v4193, %v4197
        %vm4199 = vweird.f32 %v4192
        %vm4200 = vweird.f32 %v4193
        %vm4201 = vmor %vm4199, %vm4200
        %v4202 = vsel %vm4201, %v4193, %v4198
        %v4203 = vmul.f32 %v4090, %v4202
        %v4204 = vmul.f32 %v4091, %v4202
        %v4205 = vmul.f32 %v4092, %v4202
        %v4206 = vmul.f32 %v4093, %v4202
        %v4207 = vmul.f32 %v4094, %v4202
        %v4208 = vmul.f32 %v4095, %v4202
        %v4209 = vmul.f32 %v4096, %v4202
        %v4210 = vmul.f32 %v4097, %v4202
        %v4211 = vmul.f32 %v4098, %v4202
        %v4212 = vmul.f32 %v4099, %v4202
        %v4213 = vmul.f32 %v4100, %v4202
        %v4214 = vmul.f32 %v4101, %v4202
        %v4215 = vmul.f32 %v4102, %v4202
        %v4216 = vmul.f32 %v4103, %v4202
        %v4217 = vmul.f32 %v4104, %v4202
        %v4218 = vmul.f32 %v4105, %v4202
        %v4219 = vmul.f32 %v4106, %v4202
        %v4220 = vmul.f32 %v4107, %v4202
        %v4221 = vmul.f32 %v4108, %v4202
        %v4222 = vmul.f32 %v4109, %v4202
        %v4223 = vmul.f32 %v4110, %v4202
        %v4224 = vmul.f32 %v4111, %v4202
        %v4225 = vmul.f32 %v4112, %v4202
        %v4226 = vmul.f32 %v4113, %v4202
        %v4227 = vmul.f32 %v4114, %v4202
        %v4228 = vmul.f32 %v4115, %v4202
        %v4229 = vmul.f32 %v4116, %v4202
        %v4230 = vmul.f32 %v4117, %v4202
        %v4231 = vmul.f32 %v4118, %v4202
        %v4232 = vmul.f32 %v4119, %v4202
        %v4233 = vmul.f32 %v4120, %v4202
        %v4234 = vmul.f32 %v4121, %v4202
        %v4235 = vld [vmem:[%s190] sm:$0xff]
        %v4236 = vld [vmem:[%s190 + $0x8] sm:$0xff]
        %v4237 = vld [vmem:[%s190 + $0x10] sm:$0xff]
        %v4238 = vld [vmem:[%s190 + $0x18] sm:$0xff]
        %v4239 = vld [vmem:[%s190 + $0x20] sm:$0xff]
        %v4240 = vld [vmem:[%s190 + $0x28] sm:$0xff]
        %v4241 = vld [vmem:[%s190 + $0x30] sm:$0xff]
        %v4242 = vld [vmem:[%s190 + $0x38] sm:$0xff]
        %v4243 = vld [vmem:[%s190 + $0x40] sm:$0xff]
        %v4244 = vld [vmem:[%s190 + $0x48] sm:$0xff]
        %v4245 = vld [vmem:[%s190 + $0x50] sm:$0xff]
        %v4246 = vld [vmem:[%s190 + $0x58] sm:$0xff]
        %v4247 = vld [vmem:[%s190 + $0x60] sm:$0xff]
        %v4248 = vld [vmem:[%s190 + $0x68] sm:$0xff]
        %v4249 = vld [vmem:[%s190 + $0x70] sm:$0xff]
        %v4250 = vld [vmem:[%s190 + $0x78] sm:$0xff]
        %v4251 = vld [vmem:[%s190 + $0x80] sm:$0xff]
        %v4252 = vld [vmem:[%s190 + $0x88] sm:$0xff]
        %v4253 = vld [vmem:[%s190 + $0x90] sm:$0xff]
        %v4254 = vld [vmem:[%s190 + $0x98] sm:$0xff]
        %v4255 = vld [vmem:[%s190 + $0xa0] sm:$0xff]
        %v4256 = vld [vmem:[%s190 + $0xa8] sm:$0xff]
        %v4257 = vld [vmem:[%s190 + $0xb0] sm:$0xff]
        %v4258 = vld [vmem:[%s190 + $0xb8] sm:$0xff]
        %v4259 = vld [vmem:[%s190 + $0xc0] sm:$0xff]
        %v4260 = vld [vmem:[%s190 + $0xc8] sm:$0xff]
        %v4261 = vld [vmem:[%s190 + $0xd0] sm:$0xff]
        %v4262 = vld [vmem:[%s190 + $0xd8] sm:$0xff]
        %v4263 = vld [vmem:[%s190 + $0xe0] sm:$0xff]
        %v4264 = vld [vmem:[%s190 + $0xe8] sm:$0xff]
        %v4265 = vld [vmem:[%s190 + $0xf0] sm:$0xff]
        %v4266 = vld [vmem:[%s190 + $0xf8] sm:$0xff]
        %v4267 = vadd.f32 %v4235, %v4203
        %v4268 = vadd.f32 %v4236, %v4204
        %v4269 = vadd.f32 %v4237, %v4205
        %v4270 = vadd.f32 %v4238, %v4206
        %v4271 = vadd.f32 %v4239, %v4207
        %v4272 = vadd.f32 %v4240, %v4208
        %v4273 = vadd.f32 %v4241, %v4209
        %v4274 = vadd.f32 %v4242, %v4210
        %v4275 = vadd.f32 %v4243, %v4211
        %v4276 = vadd.f32 %v4244, %v4212
        %v4277 = vadd.f32 %v4245, %v4213
        %v4278 = vadd.f32 %v4246, %v4214
        %v4279 = vadd.f32 %v4247, %v4215
        %v4280 = vadd.f32 %v4248, %v4216
        %v4281 = vadd.f32 %v4249, %v4217
        %v4282 = vadd.f32 %v4250, %v4218
        %v4283 = vadd.f32 %v4251, %v4219
        %v4284 = vadd.f32 %v4252, %v4220
        %v4285 = vadd.f32 %v4253, %v4221
        %v4286 = vadd.f32 %v4254, %v4222
        %v4287 = vadd.f32 %v4255, %v4223
        %v4288 = vadd.f32 %v4256, %v4224
        %v4289 = vadd.f32 %v4257, %v4225
        %v4290 = vadd.f32 %v4258, %v4226
        %v4291 = vadd.f32 %v4259, %v4227
        %v4292 = vadd.f32 %v4260, %v4228
        %v4293 = vadd.f32 %v4261, %v4229
        %v4294 = vadd.f32 %v4262, %v4230
        %v4295 = vadd.f32 %v4263, %v4231
        %v4296 = vadd.f32 %v4264, %v4232
        %v4297 = vadd.f32 %v4265, %v4233
        %v4298 = vadd.f32 %v4266, %v4234
        %4299 = vst [vmem:[%s223] sm:$0xff] %v4267
        %4300 = vst [vmem:[%s223 + $0x8] sm:$0xff] %v4268
        %4301 = vst [vmem:[%s223 + $0x10] sm:$0xff] %v4269
        %4302 = vst [vmem:[%s223 + $0x18] sm:$0xff] %v4270
        %4303 = vst [vmem:[%s223 + $0x20] sm:$0xff] %v4271
        %4304 = vst [vmem:[%s223 + $0x28] sm:$0xff] %v4272
        %4305 = vst [vmem:[%s223 + $0x30] sm:$0xff] %v4273
        %4306 = vst [vmem:[%s223 + $0x38] sm:$0xff] %v4274
        %4307 = vst [vmem:[%s223 + $0x40] sm:$0xff] %v4275
        %4308 = vst [vmem:[%s223 + $0x48] sm:$0xff] %v4276
        %4309 = vst [vmem:[%s223 + $0x50] sm:$0xff] %v4277
        %4310 = vst [vmem:[%s223 + $0x58] sm:$0xff] %v4278
        %4311 = vst [vmem:[%s223 + $0x60] sm:$0xff] %v4279
        %4312 = vst [vmem:[%s223 + $0x68] sm:$0xff] %v4280
        %4313 = vst [vmem:[%s223 + $0x70] sm:$0xff] %v4281
        %4314 = vst [vmem:[%s223 + $0x78] sm:$0xff] %v4282
        %4315 = vst [vmem:[%s223 + $0x80] sm:$0xff] %v4283
        %4316 = vst [vmem:[%s223 + $0x88] sm:$0xff] %v4284
        %4317 = vst [vmem:[%s223 + $0x90] sm:$0xff] %v4285
        %4318 = vst [vmem:[%s223 + $0x98] sm:$0xff] %v4286
        %4319 = vst [vmem:[%s223 + $0xa0] sm:$0xff] %v4287
        %4320 = vst [vmem:[%s223 + $0xa8] sm:$0xff] %v4288
        %4321 = vst [vmem:[%s223 + $0xb0] sm:$0xff] %v4289
        %4322 = vst [vmem:[%s223 + $0xb8] sm:$0xff] %v4290
        %4323 = vst [vmem:[%s223 + $0xc0] sm:$0xff] %v4291
        %4324 = vst [vmem:[%s223 + $0xc8] sm:$0xff] %v4292
        %4325 = vst [vmem:[%s223 + $0xd0] sm:$0xff] %v4293
        %4326 = vst [vmem:[%s223 + $0xd8] sm:$0xff] %v4294
        %4327 = vst [vmem:[%s223 + $0xe0] sm:$0xff] %v4295
        %4328 = vst [vmem:[%s223 + $0xe8] sm:$0xff] %v4296
        %4329 = vst [vmem:[%s223 + $0xf0] sm:$0xff] %v4297
        %4330 = vst [vmem:[%s223 + $0xf8] sm:$0xff] %v4298
        %s4331 = sand.u32 %s97, 1
        %s4332 = scalar_lea.sflag [#allocation6], %s4331
        %s4333 = sand.u32 %s97, 1
        %s4334 = smul.addr %s4333, 256
        %s4335 = scalar_lea.vmem [#allocation10], %s4334
        // Predicated region
        $region45: #{tpu_custom_call.1} parent=31 // pred_check
          %p4336 = pneg %p107
        $region46: #{tpu_custom_call.1} parent=31 // pred_check_branch
          %4338 = sbr.rel (%p4336) target = $region48
        $region47: #{tpu_custom_call.1} parent=31 // pred_region
          %4340 = vsyncadd %s4332, 0
          %s4341 = smul.addr %s21, 32
          %s4342 = smul.addr %s4341, 8
          %s4343 = scalar_lea.hbm %s3, %s4342
          %s4344 = sshll.u32 %s4335, 4
          %s4345 = int_to_ptr.vmem [resolvable:$true] %s4344
          %s4346 = sshll.u32 %s4343, 4
          %s4347 = int_to_ptr.hbm [resolvable:$true] %s4346
          %4352 = dma.vmem_to_hbm [thread:$0]  %s4345, 4096, %s4347, %s4332, 128, 128, 8
        $region48: #{tpu_custom_call.1} parent=31 // pred_fallthru
          _
      $region32: #{tpu_custom_call.1} parent=5 // pred_fallthru
        _
      %p4353 = scmp.le.s32.totalorder 2, %s16
      // Predicated region
      $region49: #{tpu_custom_call.1} parent=5 // pred_check
        %p4354 = pneg %p4353
      $region50: #{tpu_custom_call.1} parent=5 // pred_check_branch
        %4356 = sbr.rel (%p4354) target = $region52
      $region51: #{tpu_custom_call.1} parent=5 // pred_region
        %s4357 = ssub.s32 %s16, 2
        // Predicated region
        $region53: #{tpu_custom_call.1} parent=51 // pred_check
          %p4358 = pneg %p113
        $region54: #{tpu_custom_call.1} parent=51 // pred_check_branch
          %4360 = sbr.rel (%p4358) target = $region56
        $region55: #{tpu_custom_call.1} parent=51 // pred_region
          %s4361 = sand.u32 %s98, 1
          %s4362 = scalar_lea.sflag [#allocation6], %s4361
          %s4363 = sand.u32 %s98, 1
          %s4364 = smul.addr %s4363, 256
          %s4365 = scalar_lea.vmem [#allocation10], %s4364
          %4367 = dma.done %s4362, 4096
        $region56: #{tpu_custom_call.1} parent=51 // pred_fallthru
          _
      $region52: #{tpu_custom_call.1} parent=5 // pred_fallthru
        _
    $region6: #{tpu_custom_call.1} parent=1 // loop_footer
      %s20 = sadd.s32 1, %s16
    $region7: #{tpu_custom_call.1} parent=1 // loop_footer_branch
      %15 = sbr.rel target = $region3
    $region8: #{tpu_custom_call.1} parent=1 // loop_exit
      _
    %4368 = vsyncpa [#allocation5], 1
    %s4369 = scalar_lea.sflag [#allocation5], 1
    %4370 = vsyncpa %s4369, 1
    %4371 = vsyncpa [#allocation8], 1
    %4372 = vsyncpa [#allocation6], 1
    %s4373 = scalar_lea.sflag [#allocation6], 1
    %4374 = vsyncpa %s4373, 1

</llo_original>
